<compile_context>
chip_gen: v6e
topology: v6e:2x2x1
jax: 0.10.0
libtpu: 0.0.40
codegen_flags: <defaults>
</compile_context>

<pallas_src>
import math
import functools

import jax
import jax.numpy as jnp
from jax.experimental import pallas as pl
from jax.experimental.pallas import tpu as pltpu

_LN_EPS = 1e-12                     # espnet/funasr LayerNorm eps
_MXU_ROWS_TARGET = 256              # target R = bb*L rows for the projection matmuls
_VMEM_BUDGET = 24 * 1024 * 1024     # conservative activation budget (fits v7x)
_VMEM_LIMIT = 40 * 1024 * 1024      # raise v5e's 16 MiB scoped default, < v7x physical


def rwkv_block_kernel(
    x_ref,
    ln_a_g, ln_a_b, w_dec, u_first,
    w_att_x, w_att_s, w_out,
    ln_f_g, ln_f_b, w_ffn_x, w_ffn_s, w_fv,
    out_ref,
    k_sc, v_sc, r_sc, wkv_sc,
    *, g, unroll_wkv,
):
    f32, bf16 = jnp.float32, jnp.bfloat16
    bb, L, D = x_ref.shape
    A = w_out.shape[0]
    H = w_fv.shape[0]
    R = bb * L
    bbg = bb // g
    gA = g * A

    x = x_ref[...].astype(f32).reshape(R, D)        # leading-dim merge: layout no-op

    # rows where t == 0 inside each length-L sequence (built once, reused twice)
    row = jax.lax.broadcasted_iota(jnp.int32, (R, 1), 0)
    not_first = (row % L) != 0

    def time_shift(z):
        # shifted[b, t] = z[b, t-1], shifted[b, 0] = 0   (ZeroPad2d((0,0,1,-1)))
        return jnp.where(not_first, pltpu.roll(z, shift=1, axis=0), 0.0)

    def layernorm(z, gamma, beta):
        mu = jnp.mean(z, axis=-1, keepdims=True)
        var = jnp.mean(jnp.square(z - mu), axis=-1, keepdims=True)
        return (z - mu) * jax.lax.rsqrt(var + _LN_EPS) * gamma[...] + beta[...]

    def pack_batch(z):
        # (R, A) b-major rows -> (bb//g, L, g*A): g batch rows side by side in lanes.
        z = z.reshape(bb, L, A)
        if g == 1:
            return z
        z = z.reshape(bbg, g, L, A)
        return jnp.concatenate([z[:, i] for i in range(g)], axis=-1)

    def unpack_batch(z):
        # (bb//g, L, g*A) -> (R, A) b-major rows (inverse of pack_batch).
        if g == 1:
            return z.reshape(R, A)
        chunks = [z[:, :, i * A:(i + 1) * A] for i in range(g)]
        return jnp.stack(chunks, axis=1).reshape(R, A)

    # ---------------- attention (time mixing) branch ----------------
    xa = layernorm(x, ln_a_g, ln_a_b)
    sx = time_shift(xa)
    # mix coefficients folded into w_att_{x,s}; two MXU dots accumulated into one
    # f32 result (no lane-dim concat of the activations).
    kvr = (jnp.dot(xa.astype(bf16), w_att_x[...], preferred_element_type=f32) +
           jnp.dot(sx.astype(bf16), w_att_s[...], preferred_element_type=f32))   # (R, 3A)

    k_sc[...] = pack_batch(kvr[:, 0 * A:1 * A])
    v_sc[...] = pack_batch(kvr[:, 1 * A:2 * A])
    r_sc[...] = jax.nn.sigmoid(pack_batch(kvr[:, 2 * A:3 * A]))

    # loop-invariant operands hoisted out of the recurrence
    w_b = jnp.broadcast_to(w_dec[...], (bbg, gA))     # -exp(time_decay), lane-tiled
    u_b = jnp.broadcast_to(u_first[...], (bbg, gA))   # time_first, lane-tiled

    def wkv_step(t, carry):
        # numerically-stable RWKV-v4 WKV recurrence on the lane-packed state
        num, den, p = carry
        kt = k_sc[:, t, :]
        vt = v_sc[:, t, :]
        ww = u_b + kt
        q = jnp.maximum(p, ww)
        e1 = jnp.exp(p - q)
        e2 = jnp.exp(ww - q)
        # output row (off the carry critical path) streams straight to scratch
        wkv_sc[:, t, :] = (r_sc[:, t, :] * (e1 * num + e2 * vt) *
                           pl.reciprocal(e1 * den + e2, approx=True))
        ww2 = p + w_b
        q2 = jnp.maximum(ww2, kt)
        e1 = jnp.exp(ww2 - q2)
        e2 = jnp.exp(kt - q2)
        return e1 * num + e2 * vt, e1 * den + e2, q2

    init = (jnp.zeros((bbg, gA), f32),
            jnp.zeros((bbg, gA), f32),
            jnp.full((bbg, gA), -1e38, f32))
    if unroll_wkv:
        carry = init
        for t in range(L):                       # L static -> full unroll
            carry = wkv_step(t, carry)
    else:
        jax.lax.fori_loop(0, L, wkv_step, init, unroll=4)

    rwkv = unpack_batch(wkv_sc[...])                                    # (R, A), includes sigmoid(r)
    att = jnp.dot(rwkv.astype(bf16), w_out[...], preferred_element_type=f32)   # (R, D)
    x1 = x + att                                   # dropout_att(p=0) == identity

    # ---------------- feed-forward (channel mixing) branch ----------------
    xf = layernorm(x1, ln_f_g, ln_f_b)
    sxf = time_shift(xf)
    kr = (jnp.dot(xf.astype(bf16), w_ffn_x[...], preferred_element_type=f32) +
          jnp.dot(sxf.astype(bf16), w_ffn_s[...], preferred_element_type=f32))  # (R, H+D)
    kf = jnp.square(jnp.maximum(kr[:, :H], 0.0))
    rf = jax.nn.sigmoid(kr[:, H:])
    ffn = rf * jnp.dot(kf.astype(bf16), w_fv[...], preferred_element_type=f32)

    out_ref[...] = (x1 + ffn).reshape(bb, L, D).astype(out_ref.dtype)  # dropout_ffn == identity


def _vmem_estimate_bytes(bb, L, D, A, H, x_itemsize, const_bytes):
    R = bb * L
    act = R * 4 * (6 * D + 4 * A + 2 * H)     # rough peak of live f32 activations
    act += R * 2 * (2 * D + A + H)            # bf16 matmul operand copies
    scr = 4 * R * A * 4                       # k/v/r/wkv VMEM scratch
    io = 2 * 2 * bb * L * D * x_itemsize      # double-buffered x / out blocks
    return act + scr + io + 2 * const_bytes   # consts conservatively double-buffered


def rwkv_block(x, params, *, batch_block=None, wkv_unroll_max=32):
    """x: (B, L, D) float32 -> (B, L, D).  Encoder path only (state=None)."""
    B, L, D = x.shape
    A = params["w_k"].shape[1]
    H = params["fw_k"].shape[1]
    f32, bf16 = jnp.float32, jnp.bfloat16

    # ---- fold mix coefficients into the projection weights (offline precompute) ----
    def col(v):                         # (1, D) -> (D, 1) per-input-channel scaler
        return v.reshape(-1, 1).astype(f32)

    mk, mv, mr = col(params["a_mix_k"]), col(params["a_mix_v"]), col(params["a_mix_r"])
    fmk, fmr = col(params["f_mix_k"]), col(params["f_mix_r"])
    w_k, w_v, w_r = params["w_k"], params["w_v"], params["w_r"]
    fw_k, fw_r = params["fw_k"], params["fw_r"]

    w_att_x = jnp.concatenate([mk * w_k, mv * w_v, mr * w_r], axis=1).astype(bf16)
    w_att_s = jnp.concatenate([(1 - mk) * w_k, (1 - mv) * w_v, (1 - mr) * w_r],
                              axis=1).astype(bf16)                    # (D, 3A) each
    w_ffn_x = jnp.concatenate([fmk * fw_k, fmr * fw_r], axis=1).astype(bf16)
    w_ffn_s = jnp.concatenate([(1 - fmk) * fw_k, (1 - fmr) * fw_r],
                              axis=1).astype(bf16)                    # (D, H+D) each
    w_out = params["w_o"].astype(bf16)                                # (A, D)
    w_fv = params["fw_v"].astype(bf16)                                # (H, D)
    w_dec = (-jnp.exp(params["t_decay"])).astype(f32)                 # (1, A)
    u_first = params["t_first"].astype(f32)                           # (1, A)
    ln_a_g, ln_a_b = params["ln_a_g"].astype(f32), params["ln_a_b"].astype(f32)
    ln_f_g, ln_f_b = params["ln_f_g"].astype(f32), params["ln_f_b"].astype(f32)

    big_consts = [ln_a_g, ln_a_b, w_att_x, w_att_s, w_out,
                  ln_f_g, ln_f_b, w_ffn_x, w_ffn_s, w_fv]
    const_bytes = sum(int(c.size) * c.dtype.itemsize for c in big_consts) + 2 * A * 4

    # ---- choose the batch block (MXU rows target, v7x 2-TC sharding, VMEM budget) ----
    if batch_block is None:
        bb = max(1, min(B, pl.cdiv(_MXU_ROWS_TARGET, L)))   # R = bb*L >= 256 if B allows
        if B >= 2 and pl.cdiv(B, bb) < 2:
            bb = pl.cdiv(B, 2)         # >= 2 grid steps so both v7x TensorCores get work
    else:
        bb = max(1, min(int(batch_block), B))
    while bb > 1 and _vmem_estimate_bytes(bb, L, D, A, H, x.dtype.itemsize,
                                          const_bytes) > _VMEM_BUDGET:
        bb = max(1, bb // 2)

    # lane-packing group: fold g batch rows into lanes when A < 128
    g = 1
    if A < 128:
        for cand in range(min(bb, max(1, 128 // A)), 1, -1):
            if bb % cand == 0:
                g = cand
                break
    bbg, gA = bb // g, g * A

    w_dec_t = jnp.tile(w_dec, (1, g))        # (1, g*A), matches the packed lane layout
    u_first_t = jnp.tile(u_first, (1, g))

    consts = [ln_a_g, ln_a_b, w_dec_t, u_first_t, w_att_x, w_att_s, w_out,
              ln_f_g, ln_f_b, w_ffn_x, w_ffn_s, w_fv]

    # ---- pad B so tail grid blocks never run the recurrence on junk rows ----
    nb = pl.cdiv(B, bb)
    B_pad = nb * bb
    xp = x if B_pad == B else jnp.pad(x, ((0, B_pad - B), (0, 0), (0, 0)))

    kernel = functools.partial(rwkv_block_kernel, g=g,
                               unroll_wkv=(L <= wkv_unroll_max))
    scratch = [pltpu.VMEM((bbg, L, gA), jnp.float32) for _ in range(4)]

    def run(single_buffer_consts):
        const_specs = []
        for c in consts:
            kw = {"pipeline_mode": pl.Buffered(1)} if single_buffer_consts else {}
            const_specs.append(
                pl.BlockSpec(c.shape, (lambda b, _n=c.ndim: (0,) * _n), **kw))
        fn = pl.pallas_call(
            kernel,
            out_shape=jax.ShapeDtypeStruct((B_pad, L, D), x.dtype),
            grid_spec=pltpu.PrefetchScalarGridSpec(
                num_scalar_prefetch=0,
                grid=(nb,),
                in_specs=[pl.BlockSpec((bb, L, D), lambda b: (b, 0, 0))] + const_specs,
                out_specs=pl.BlockSpec((bb, L, D), lambda b: (b, 0, 0)),
                scratch_shapes=scratch,
            ),
            compiler_params=pltpu.CompilerParams(
                dimension_semantics=("parallel",),      # batch axis -> v7x 2-TC sharding
                vmem_limit_bytes=_VMEM_LIMIT),
        )
        return fn(xp, *consts)

    try:
        y = run(True)      # single-buffer the grid-invariant weights (halves their VMEM)
    except Exception:      # pl.Buffered(1) not supported on this JAX version -> default
        y = run(False)

    return y if B_pad == B else y[:B]


def rwkv_block_ref(x, params):
    """Pure-JAX f32 reference (exact division) for validation."""
    def ln(z, gamma, beta):
        mu = jnp.mean(z, -1, keepdims=True)
        var = jnp.mean(jnp.square(z - mu), -1, keepdims=True)
        return (z - mu) * jax.lax.rsqrt(var + _LN_EPS) * gamma + beta

    def shift(z):
        return jnp.pad(z, ((0, 0), (1, 0), (0, 0)))[:, :-1]

    B, L, _ = x.shape
    xa = ln(x, params["ln_a_g"], params["ln_a_b"])
    sx = shift(xa)
    k = (xa * params["a_mix_k"] + sx * (1 - params["a_mix_k"])) @ params["w_k"]
    v = (xa * params["a_mix_v"] + sx * (1 - params["a_mix_v"])) @ params["w_v"]
    r = jax.nn.sigmoid(
        (xa * params["a_mix_r"] + sx * (1 - params["a_mix_r"])) @ params["w_r"])
    w = -jnp.exp(params["t_decay"])
    u = params["t_first"]
    A = k.shape[-1]
    num = jnp.zeros((B, A)); den = jnp.zeros((B, A)); p = jnp.full((B, A), -1e38)
    rows = []
    for t in range(L):
        kt, vt = k[:, t], v[:, t]
        ww = u + kt
        q = jnp.maximum(p, ww)
        e1, e2 = jnp.exp(p - q), jnp.exp(ww - q)
        rows.append((e1 * num + e2 * vt) / (e1 * den + e2))
        ww2 = p + w
        q2 = jnp.maximum(ww2, kt)
        e1, e2 = jnp.exp(ww2 - q2), jnp.exp(kt - q2)
        num, den, p = e1 * num + e2 * vt, e1 * den + e2, q2
    wkv = jnp.stack(rows, axis=1)
    x1 = x + (r * wkv) @ params["w_o"]
    xf = ln(x1, params["ln_f_g"], params["ln_f_b"])
    sxf = shift(xf)
    kf = jnp.square(jax.nn.relu(
        (xf * params["f_mix_k"] + sxf * (1 - params["f_mix_k"])) @ params["fw_k"]))
    rf = jax.nn.sigmoid(
        (xf * params["f_mix_r"] + sxf * (1 - params["f_mix_r"])) @ params["fw_r"])
    return x1 + rf * (kf @ params["fw_v"])


def init_params(key, D, A, H, block_id, num_blocks):
    """Deterministic init mirroring the RWKV reset_parameters formulas."""
    ratio_0_to_1 = block_id / max(num_blocks - 1, 1)
    ratio_1_to_almost0 = 1.0 - (block_id / num_blocks)

    time_weight = jnp.arange(D, dtype=jnp.float32) / D
    h = jnp.arange(A, dtype=jnp.float32)
    decay_speed = -5.0 + 8.0 * (h / (A - 1)) ** (0.7 + 1.3 * ratio_0_to_1)
    zigzag = jnp.asarray([((j + 1) % 3 - 1) for j in range(A)], dtype=jnp.float32) * 0.5
    time_first = jnp.full((A,), math.log(0.3), jnp.float32) + zigzag

    keys = jax.random.split(key, 7)

    def lin(k, fan_in, fan_out):
        return jax.random.normal(k, (fan_in, fan_out), jnp.float32) * (fan_in ** -0.5)

    return {
        "ln_a_g": jnp.ones((1, D), jnp.float32),
        "ln_a_b": jnp.zeros((1, D), jnp.float32),
        "t_decay": decay_speed[None, :],
        "t_first": time_first[None, :],
        "a_mix_k": (time_weight ** ratio_1_to_almost0)[None, :],
        "a_mix_v": (time_weight ** ratio_1_to_almost0 + 0.3 * ratio_0_to_1)[None, :],
        "a_mix_r": (time_weight ** (0.5 * ratio_1_to_almost0))[None, :],
        "w_k": lin(keys[0], D, A),
        "w_v": lin(keys[1], D, A),
        "w_r": lin(keys[2], D, A),
        "w_o": lin(keys[3], A, D),
        "ln_f_g": jnp.ones((1, D), jnp.float32),
        "ln_f_b": jnp.zeros((1, D), jnp.float32),
        "f_mix_k": (time_weight ** ratio_1_to_almost0)[None, :],
        "f_mix_r": (time_weight ** ratio_1_to_almost0)[None, :],
        "fw_k": lin(keys[4], D, H),
        "fw_v": lin(keys[5], H, D),
        "fw_r": lin(keys[6], D, D),
    }


if __name__ == "__main__":
    # size=32, attention_size=32, linear_size=64, context_size=L=8, block_id=0, num_blocks=2
    B, L, D, A, H = 2, 8, 32, 32, 64
    key = jax.random.PRNGKey(0)
    kx, kp = jax.random.split(key)
    x = jax.random.normal(kx, (B, L, D), jnp.float32)
    params = init_params(kp, D, A, H, block_id=0, num_blocks=2)

    y_ref = rwkv_block_ref(x, params)

    # exercise all code paths: plain (g=1) unrolled, lane-packed (g=2) unrolled,
    # lane-packed + fori-loop WKV (production long-L path)
    outs = [
        jax.block_until_ready(rwkv_block(x, params)),
        jax.block_until_ready(rwkv_block(x, params, batch_block=2)),
        jax.block_until_ready(rwkv_block(x, params, batch_block=2, wkv_unroll_max=0)),
    ]
    for y in outs:
        assert y.shape == (B, L, D)
        assert bool(jnp.all(jnp.isfinite(y)))
        # bf16 MXU operands + approximate EUP reciprocal => not bit-exact vs f32 ref
        assert float(jnp.max(jnp.abs(y - y_ref))) < 1e-1
    print("KERNEL_OK")
</pallas_src>

<mosaic_0001>
module attributes {stable_mosaic.version = 11 : i64} {
  func.func @rwkv_block_kernel(%arg0: i32, %arg1: memref<1x8x32xf32, #tpu.memory_space<vmem>>, %arg2: memref<1x32xf32, #tpu.memory_space<vmem>>, %arg3: memref<1x32xf32, #tpu.memory_space<vmem>>, %arg4: memref<1x32xf32, #tpu.memory_space<vmem>>, %arg5: memref<1x32xf32, #tpu.memory_space<vmem>>, %arg6: memref<32x96xbf16, #tpu.memory_space<vmem>>, %arg7: memref<32x96xbf16, #tpu.memory_space<vmem>>, %arg8: memref<32x32xbf16, #tpu.memory_space<vmem>>, %arg9: memref<1x32xf32, #tpu.memory_space<vmem>>, %arg10: memref<1x32xf32, #tpu.memory_space<vmem>>, %arg11: memref<32x96xbf16, #tpu.memory_space<vmem>>, %arg12: memref<32x96xbf16, #tpu.memory_space<vmem>>, %arg13: memref<64x32xbf16, #tpu.memory_space<vmem>>, %arg14: memref<1x8x32xf32, #tpu.memory_space<vmem>>, %arg15: memref<1x8x32xf32, #tpu.memory_space<vmem>>, %arg16: memref<1x8x32xf32, #tpu.memory_space<vmem>>, %arg17: memref<1x8x32xf32, #tpu.memory_space<vmem>>, %arg18: memref<1x8x32xf32, #tpu.memory_space<vmem>>) attributes {dimension_semantics = [#tpu.dimension_semantics<parallel>], iteration_bounds = array<i64: 2>, scalar_prefetch = 0 : i64, scratch_operands = 4 : i64, tpu.core_type = #tpu.core_type<tc>, window_params = [{transform_indices = @transform_0, window_bounds = array<i64: 1, 8, 32>}, {pipeline_mode = #tpu.pipeline_mode<synchronous>, transform_indices = @transform_1, window_bounds = array<i64: 1, 32>}, {pipeline_mode = #tpu.pipeline_mode<synchronous>, transform_indices = @transform_2, window_bounds = array<i64: 1, 32>}, {pipeline_mode = #tpu.pipeline_mode<synchronous>, transform_indices = @transform_3, window_bounds = array<i64: 1, 32>}, {pipeline_mode = #tpu.pipeline_mode<synchronous>, transform_indices = @transform_4, window_bounds = array<i64: 1, 32>}, {pipeline_mode = #tpu.pipeline_mode<synchronous>, transform_indices = @transform_5, window_bounds = array<i64: 32, 96>}, {pipeline_mode = #tpu.pipeline_mode<synchronous>, transform_indices = @transform_6, window_bounds = array<i64: 32, 96>}, {pipeline_mode = #tpu.pipeline_mode<synchronous>, transform_indices = @transform_7, window_bounds = array<i64: 32, 32>}, {pipeline_mode = #tpu.pipeline_mode<synchronous>, transform_indices = @transform_8, window_bounds = array<i64: 1, 32>}, {pipeline_mode = #tpu.pipeline_mode<synchronous>, transform_indices = @transform_9, window_bounds = array<i64: 1, 32>}, {pipeline_mode = #tpu.pipeline_mode<synchronous>, transform_indices = @transform_10, window_bounds = array<i64: 32, 96>}, {pipeline_mode = #tpu.pipeline_mode<synchronous>, transform_indices = @transform_11, window_bounds = array<i64: 32, 96>}, {pipeline_mode = #tpu.pipeline_mode<synchronous>, transform_indices = @transform_12, window_bounds = array<i64: 64, 32>}, {transform_indices = @transform_13, window_bounds = array<i64: 1, 8, 32>}]} {
    %c0 = arith.constant 0 : index
    %c0_0 = arith.constant 0 : index
    %c0_1 = arith.constant 0 : index
    %0 = vector.load %arg1[%c0, %c0_0, %c0_1] : memref<1x8x32xf32, #tpu.memory_space<vmem>>, vector<1x8x32xf32>
    %1 = vector.shape_cast %0 : vector<1x8x32xf32> to vector<8x32xf32>
    %2 = tpu.iota {dimensions = array<i32: 0>} : vector<8x1xi32>
    %c8_i32 = arith.constant 8 : i32
    %c0_i32 = arith.constant 0 : i32
    %3 = arith.cmpi eq, %c8_i32, %c0_i32 : i32
    %c1_i32 = arith.constant 1 : i32
    %4 = arith.select %3, %c1_i32, %c8_i32 : i32
    %5 = vector.broadcast %4 : i32 to vector<8x1xi32>
    %6 = arith.remsi %2, %5 : vector<8x1xi32>
    %c0_i32_2 = arith.constant 0 : i32
    %7 = vector.broadcast %c0_i32_2 : i32 to vector<8x1xi32>
    %8 = arith.cmpi ne, %6, %7 : vector<8x1xi32>
    %c0_i32_3 = arith.constant 0 : i32
    %9 = vector.broadcast %c0_i32_3 : i32 to vector<8x1xi32>
    %10 = arith.cmpi slt, %6, %9 : vector<8x1xi32>
    %c0_i32_4 = arith.constant 0 : i32
    %11 = arith.cmpi slt, %4, %c0_i32_4 : i32
    %12 = vector.broadcast %11 : i1 to vector<8x1xi1>
    %13 = vector.broadcast %12 : vector<8x1xi1> to vector<8x1xi1>
    %14 = arith.xori %10, %13 : vector<8x1xi1>
    %15 = arith.andi %14, %8 : vector<8x1xi1>
    %16 = vector.broadcast %4 : i32 to vector<8x1xi32>
    %17 = arith.addi %6, %16 : vector<8x1xi32>
    %18 = arith.select %15, %17, %6 : vector<8x1xi1>, vector<8x1xi32>
    %c0_i32_5 = arith.constant 0 : i32
    %19 = vector.broadcast %c0_i32_5 : i32 to vector<8x1xi32>
    %20 = arith.cmpi ne, %18, %19 : vector<8x1xi32>
    %cst = arith.constant dense<0.000000e+00> : vector<8xf32>
    %21 = vector.multi_reduction <add>, %1, %cst [1] : vector<8x32xf32> to vector<8xf32>
    %22 = vector.shape_cast %21 : vector<8xf32> to vector<8x1xf32>
    %cst_6 = arith.constant 3.200000e+01 : f32
    %23 = vector.broadcast %cst_6 : f32 to vector<8x1xf32>
    %24 = arith.divf %22, %23 : vector<8x1xf32>
    %25 = vector.broadcast %24 : vector<8x1xf32> to vector<8x32xf32>
    %26 = arith.subf %1, %25 : vector<8x32xf32>
    %27 = arith.mulf %26, %26 : vector<8x32xf32>
    %cst_7 = arith.constant dense<0.000000e+00> : vector<8xf32>
    %28 = vector.multi_reduction <add>, %27, %cst_7 [1] : vector<8x32xf32> to vector<8xf32>
    %29 = vector.shape_cast %28 : vector<8xf32> to vector<8x1xf32>
    %cst_8 = arith.constant 3.200000e+01 : f32
    %30 = vector.broadcast %cst_8 : f32 to vector<8x1xf32>
    %31 = arith.divf %29, %30 : vector<8x1xf32>
    %32 = vector.broadcast %24 : vector<8x1xf32> to vector<8x32xf32>
    %33 = arith.subf %1, %32 : vector<8x32xf32>
    %cst_9 = arith.constant 9.99999996E-13 : f32
    %34 = vector.broadcast %cst_9 : f32 to vector<8x1xf32>
    %35 = arith.addf %31, %34 : vector<8x1xf32>
    %36 = math.rsqrt %35 : vector<8x1xf32>
    %37 = vector.broadcast %36 : vector<8x1xf32> to vector<8x32xf32>
    %38 = arith.mulf %33, %37 : vector<8x32xf32>
    %c0_10 = arith.constant 0 : index
    %c0_11 = arith.constant 0 : index
    %39 = vector.load %arg2[%c0_10, %c0_11] : memref<1x32xf32, #tpu.memory_space<vmem>>, vector<1x32xf32>
    %40 = vector.broadcast %39 : vector<1x32xf32> to vector<8x32xf32>
    %41 = arith.mulf %38, %40 : vector<8x32xf32>
    %c0_12 = arith.constant 0 : index
    %c0_13 = arith.constant 0 : index
    %42 = vector.load %arg3[%c0_12, %c0_13] : memref<1x32xf32, #tpu.memory_space<vmem>>, vector<1x32xf32>
    %43 = vector.broadcast %42 : vector<1x32xf32> to vector<8x32xf32>
    %44 = arith.addf %41, %43 : vector<8x32xf32>
    %c1_i32_14 = arith.constant 1 : i32
    %45 = tpu.dynamic_rotate %44 by %c1_i32_14 dim 0 : vector<8x32xf32>, i32 -> vector<8x32xf32>
    %cst_15 = arith.constant 0.000000e+00 : f32
    %46 = vector.shape_cast %20 : vector<8x1xi1> to vector<8x1xi1>
    %47 = vector.broadcast %46 : vector<8x1xi1> to vector<8x32xi1>
    %48 = vector.broadcast %cst_15 : f32 to vector<8x32xf32>
    %49 = arith.select %47, %45, %48 : vector<8x32xi1>, vector<8x32xf32>
    %50 = arith.truncf %44 : vector<8x32xf32> to vector<8x32xbf16>
    %c0_16 = arith.constant 0 : index
    %c0_17 = arith.constant 0 : index
    %51 = vector.load %arg6[%c0_16, %c0_17] : memref<32x96xbf16, #tpu.memory_space<vmem>>, vector<32x96xbf16>
    %cst_18 = arith.constant dense<0.000000e+00> : vector<8x96xf32>
    %52 = tpu.matmul %50, %51, %cst_18 {dimension_numbers = #tpu.dot_dimension_numbers<[1], [0], [0], [1], [0, 0, 1, 1], [], []>} : vector<8x32xbf16>, vector<32x96xbf16>, vector<8x96xf32> -> vector<8x96xf32>
    %53 = arith.truncf %49 : vector<8x32xf32> to vector<8x32xbf16>
    %c0_19 = arith.constant 0 : index
    %c0_20 = arith.constant 0 : index
    %54 = vector.load %arg7[%c0_19, %c0_20] : memref<32x96xbf16, #tpu.memory_space<vmem>>, vector<32x96xbf16>
    %cst_21 = arith.constant dense<0.000000e+00> : vector<8x96xf32>
    %55 = tpu.matmul %53, %54, %cst_21 {dimension_numbers = #tpu.dot_dimension_numbers<[1], [0], [0], [1], [0, 0, 1, 1], [], []>} : vector<8x32xbf16>, vector<32x96xbf16>, vector<8x96xf32> -> vector<8x96xf32>
    %56 = arith.addf %52, %55 : vector<8x96xf32>
    %57 = vector.extract_strided_slice %56 {offsets = [0, 0], sizes = [8, 32], strides = [1, 1]} : vector<8x96xf32> to vector<8x32xf32>
    %58 = vector.shape_cast %57 : vector<8x32xf32> to vector<1x8x32xf32>
    %c0_22 = arith.constant 0 : index
    %c0_23 = arith.constant 0 : index
    %c0_24 = arith.constant 0 : index
    %59 = vector.load %arg15[%c0_22, %c0_23, %c0_24] : memref<1x8x32xf32, #tpu.memory_space<vmem>>, vector<1x8x32xf32>
    tpu.vector_store %arg15[%c0_22, %c0_23, %c0_24], %58 {strides = array<i32>} : memref<1x8x32xf32, #tpu.memory_space<vmem>>, vector<1x8x32xf32>,
    %60 = vector.extract_strided_slice %56 {offsets = [0, 32], sizes = [8, 32], strides = [1, 1]} : vector<8x96xf32> to vector<8x32xf32>
    %61 = vector.shape_cast %60 : vector<8x32xf32> to vector<1x8x32xf32>
    %c0_25 = arith.constant 0 : index
    %c0_26 = arith.constant 0 : index
    %c0_27 = arith.constant 0 : index
    %62 = vector.load %arg16[%c0_25, %c0_26, %c0_27] : memref<1x8x32xf32, #tpu.memory_space<vmem>>, vector<1x8x32xf32>
    tpu.vector_store %arg16[%c0_25, %c0_26, %c0_27], %61 {strides = array<i32>} : memref<1x8x32xf32, #tpu.memory_space<vmem>>, vector<1x8x32xf32>,
    %63 = vector.extract_strided_slice %56 {offsets = [0, 64], sizes = [8, 32], strides = [1, 1]} : vector<8x96xf32> to vector<8x32xf32>
    %64 = vector.shape_cast %63 : vector<8x32xf32> to vector<1x8x32xf32>
    %65 = arith.negf %64 : vector<1x8x32xf32>
    %66 = math.exp %65 : vector<1x8x32xf32>
    %cst_28 = arith.constant 1.000000e+00 : f32
    %67 = vector.broadcast %cst_28 : f32 to vector<1x8x32xf32>
    %68 = arith.addf %67, %66 : vector<1x8x32xf32>
    %69 = arith.divf %67, %68 : vector<1x8x32xf32>
    %c0_29 = arith.constant 0 : index
    %c0_30 = arith.constant 0 : index
    %c0_31 = arith.constant 0 : index
    %70 = vector.load %arg17[%c0_29, %c0_30, %c0_31] : memref<1x8x32xf32, #tpu.memory_space<vmem>>, vector<1x8x32xf32>
    tpu.vector_store %arg17[%c0_29, %c0_30, %c0_31], %69 {strides = array<i32>} : memref<1x8x32xf32, #tpu.memory_space<vmem>>, vector<1x8x32xf32>,
    %c0_32 = arith.constant 0 : index
    %c0_33 = arith.constant 0 : index
    %71 = vector.load %arg4[%c0_32, %c0_33] : memref<1x32xf32, #tpu.memory_space<vmem>>, vector<1x32xf32>
    %c0_34 = arith.constant 0 : index
    %c0_35 = arith.constant 0 : index
    %72 = vector.load %arg5[%c0_34, %c0_35] : memref<1x32xf32, #tpu.memory_space<vmem>>, vector<1x32xf32>
    %cst_36 = arith.constant 0.000000e+00 : f32
    %73 = vector.broadcast %cst_36 : f32 to vector<1x32xf32>
    %cst_37 = arith.constant 0.000000e+00 : f32
    %74 = vector.broadcast %cst_37 : f32 to vector<1x32xf32>
    %cst_38 = arith.constant -9.99999968E+37 : f32
    %75 = vector.broadcast %cst_38 : f32 to vector<1x32xf32>
    %c0_39 = arith.constant 0 : index
    %c0_40 = arith.constant 0 : index
    %c0_41 = arith.constant 0 : index
    %76 = vector.load %arg15[%c0_39, %c0_40, %c0_41] : memref<1x8x32xf32, #tpu.memory_space<vmem>>, vector<1x1x32xf32>
    %77 = vector.shape_cast %76 : vector<1x1x32xf32> to vector<1x32xf32>
    %c0_42 = arith.constant 0 : index
    %c0_43 = arith.constant 0 : index
    %c0_44 = arith.constant 0 : index
    %78 = vector.load %arg16[%c0_42, %c0_43, %c0_44] : memref<1x8x32xf32, #tpu.memory_space<vmem>>, vector<1x1x32xf32>
    %79 = vector.shape_cast %78 : vector<1x1x32xf32> to vector<1x32xf32>
    %80 = arith.addf %72, %77 : vector<1x32xf32>
    %81 = arith.maximumf %75, %80 : vector<1x32xf32>
    %82 = arith.subf %75, %81 : vector<1x32xf32>
    %83 = math.exp %82 : vector<1x32xf32>
    %84 = arith.subf %80, %81 : vector<1x32xf32>
    %85 = math.exp %84 : vector<1x32xf32>
    %c0_45 = arith.constant 0 : index
    %c0_46 = arith.constant 0 : index
    %c0_47 = arith.constant 0 : index
    %86 = vector.load %arg17[%c0_45, %c0_46, %c0_47] : memref<1x8x32xf32, #tpu.memory_space<vmem>>, vector<1x1x32xf32>
    %87 = vector.shape_cast %86 : vector<1x1x32xf32> to vector<1x32xf32>
    %88 = arith.mulf %83, %73 : vector<1x32xf32>
    %89 = arith.mulf %85, %79 : vector<1x32xf32>
    %90 = arith.addf %88, %89 : vector<1x32xf32>
    %91 = arith.mulf %87, %90 : vector<1x32xf32>
    %92 = arith.mulf %83, %74 : vector<1x32xf32>
    %93 = arith.addf %92, %85 : vector<1x32xf32>
    %94 = tpu.reciprocal %93 {approx = true} : vector<1x32xf32> -> vector<1x32xf32>
    %95 = arith.mulf %91, %94 : vector<1x32xf32>
    %c0_48 = arith.constant 0 : index
    %c0_49 = arith.constant 0 : index
    %c0_50 = arith.constant 0 : index
    %96 = vector.load %arg18[%c0_48, %c0_49, %c0_50] : memref<1x8x32xf32, #tpu.memory_space<vmem>>, vector<1x1x32xf32>
    %97 = vector.shape_cast %96 : vector<1x1x32xf32> to vector<1x32xf32>
    %98 = vector.shape_cast %95 : vector<1x32xf32> to vector<1x1x32xf32>
    tpu.vector_store %arg18[%c0_48, %c0_49, %c0_50], %98 {strides = array<i32>} : memref<1x8x32xf32, #tpu.memory_space<vmem>>, vector<1x1x32xf32>,
    %99 = arith.addf %75, %71 : vector<1x32xf32>
    %100 = arith.maximumf %99, %77 : vector<1x32xf32>
    %101 = arith.subf %99, %100 : vector<1x32xf32>
    %102 = math.exp %101 : vector<1x32xf32>
    %103 = arith.subf %77, %100 : vector<1x32xf32>
    %104 = math.exp %103 : vector<1x32xf32>
    %105 = arith.mulf %102, %73 : vector<1x32xf32>
    %106 = arith.mulf %104, %79 : vector<1x32xf32>
    %107 = arith.addf %105, %106 : vector<1x32xf32>
    %108 = arith.mulf %102, %74 : vector<1x32xf32>
    %109 = arith.addf %108, %104 : vector<1x32xf32>
    %c0_51 = arith.constant 0 : index
    %c1 = arith.constant 1 : index
    %c0_52 = arith.constant 0 : index
    %110 = vector.load %arg15[%c0_51, %c1, %c0_52] : memref<1x8x32xf32, #tpu.memory_space<vmem>>, vector<1x1x32xf32>
    %111 = vector.shape_cast %110 : vector<1x1x32xf32> to vector<1x32xf32>
    %c0_53 = arith.constant 0 : index
    %c1_54 = arith.constant 1 : index
    %c0_55 = arith.constant 0 : index
    %112 = vector.load %arg16[%c0_53, %c1_54, %c0_55] : memref<1x8x32xf32, #tpu.memory_space<vmem>>, vector<1x1x32xf32>
    %113 = vector.shape_cast %112 : vector<1x1x32xf32> to vector<1x32xf32>
    %114 = arith.addf %72, %111 : vector<1x32xf32>
    %115 = arith.maximumf %100, %114 : vector<1x32xf32>
    %116 = arith.subf %100, %115 : vector<1x32xf32>
    %117 = math.exp %116 : vector<1x32xf32>
    %118 = arith.subf %114, %115 : vector<1x32xf32>
    %119 = math.exp %118 : vector<1x32xf32>
    %c0_56 = arith.constant 0 : index
    %c1_57 = arith.constant 1 : index
    %c0_58 = arith.constant 0 : index
    %120 = vector.load %arg17[%c0_56, %c1_57, %c0_58] : memref<1x8x32xf32, #tpu.memory_space<vmem>>, vector<1x1x32xf32>
    %121 = vector.shape_cast %120 : vector<1x1x32xf32> to vector<1x32xf32>
    %122 = arith.mulf %117, %107 : vector<1x32xf32>
    %123 = arith.mulf %119, %113 : vector<1x32xf32>
    %124 = arith.addf %122, %123 : vector<1x32xf32>
    %125 = arith.mulf %121, %124 : vector<1x32xf32>
    %126 = arith.mulf %117, %109 : vector<1x32xf32>
    %127 = arith.addf %126, %119 : vector<1x32xf32>
    %128 = tpu.reciprocal %127 {approx = true} : vector<1x32xf32> -> vector<1x32xf32>
    %129 = arith.mulf %125, %128 : vector<1x32xf32>
    %c0_59 = arith.constant 0 : index
    %c1_60 = arith.constant 1 : index
    %c0_61 = arith.constant 0 : index
    %130 = vector.load %arg18[%c0_59, %c1_60, %c0_61] : memref<1x8x32xf32, #tpu.memory_space<vmem>>, vector<1x1x32xf32>
    %131 = vector.shape_cast %130 : vector<1x1x32xf32> to vector<1x32xf32>
    %132 = vector.shape_cast %129 : vector<1x32xf32> to vector<1x1x32xf32>
    tpu.vector_store %arg18[%c0_59, %c1_60, %c0_61], %132 {strides = array<i32>} : memref<1x8x32xf32, #tpu.memory_space<vmem>>, vector<1x1x32xf32>,
    %133 = arith.addf %100, %71 : vector<1x32xf32>
    %134 = arith.maximumf %133, %111 : vector<1x32xf32>
    %135 = arith.subf %133, %134 : vector<1x32xf32>
    %136 = math.exp %135 : vector<1x32xf32>
    %137 = arith.subf %111, %134 : vector<1x32xf32>
    %138 = math.exp %137 : vector<1x32xf32>
    %139 = arith.mulf %136, %107 : vector<1x32xf32>
    %140 = arith.mulf %138, %113 : vector<1x32xf32>
    %141 = arith.addf %139, %140 : vector<1x32xf32>
    %142 = arith.mulf %136, %109 : vector<1x32xf32>
    %143 = arith.addf %142, %138 : vector<1x32xf32>
    %c0_62 = arith.constant 0 : index
    %c2 = arith.constant 2 : index
    %c0_63 = arith.constant 0 : index
    %144 = vector.load %arg15[%c0_62, %c2, %c0_63] : memref<1x8x32xf32, #tpu.memory_space<vmem>>, vector<1x1x32xf32>
    %145 = vector.shape_cast %144 : vector<1x1x32xf32> to vector<1x32xf32>
    %c0_64 = arith.constant 0 : index
    %c2_65 = arith.constant 2 : index
    %c0_66 = arith.constant 0 : index
    %146 = vector.load %arg16[%c0_64, %c2_65, %c0_66] : memref<1x8x32xf32, #tpu.memory_space<vmem>>, vector<1x1x32xf32>
    %147 = vector.shape_cast %146 : vector<1x1x32xf32> to vector<1x32xf32>
    %148 = arith.addf %72, %145 : vector<1x32xf32>
    %149 = arith.maximumf %134, %148 : vector<1x32xf32>
    %150 = arith.subf %134, %149 : vector<1x32xf32>
    %151 = math.exp %150 : vector<1x32xf32>
    %152 = arith.subf %148, %149 : vector<1x32xf32>
    %153 = math.exp %152 : vector<1x32xf32>
    %c0_67 = arith.constant 0 : index
    %c2_68 = arith.constant 2 : index
    %c0_69 = arith.constant 0 : index
    %154 = vector.load %arg17[%c0_67, %c2_68, %c0_69] : memref<1x8x32xf32, #tpu.memory_space<vmem>>, vector<1x1x32xf32>
    %155 = vector.shape_cast %154 : vector<1x1x32xf32> to vector<1x32xf32>
    %156 = arith.mulf %151, %141 : vector<1x32xf32>
    %157 = arith.mulf %153, %147 : vector<1x32xf32>
    %158 = arith.addf %156, %157 : vector<1x32xf32>
    %159 = arith.mulf %155, %158 : vector<1x32xf32>
    %160 = arith.mulf %151, %143 : vector<1x32xf32>
    %161 = arith.addf %160, %153 : vector<1x32xf32>
    %162 = tpu.reciprocal %161 {approx = true} : vector<1x32xf32> -> vector<1x32xf32>
    %163 = arith.mulf %159, %162 : vector<1x32xf32>
    %c0_70 = arith.constant 0 : index
    %c2_71 = arith.constant 2 : index
    %c0_72 = arith.constant 0 : index
    %164 = vector.load %arg18[%c0_70, %c2_71, %c0_72] : memref<1x8x32xf32, #tpu.memory_space<vmem>>, vector<1x1x32xf32>
    %165 = vector.shape_cast %164 : vector<1x1x32xf32> to vector<1x32xf32>
    %166 = vector.shape_cast %163 : vector<1x32xf32> to vector<1x1x32xf32>
    tpu.vector_store %arg18[%c0_70, %c2_71, %c0_72], %166 {strides = array<i32>} : memref<1x8x32xf32, #tpu.memory_space<vmem>>, vector<1x1x32xf32>,
    %167 = arith.addf %134, %71 : vector<1x32xf32>
    %168 = arith.maximumf %167, %145 : vector<1x32xf32>
    %169 = arith.subf %167, %168 : vector<1x32xf32>
    %170 = math.exp %169 : vector<1x32xf32>
    %171 = arith.subf %145, %168 : vector<1x32xf32>
    %172 = math.exp %171 : vector<1x32xf32>
    %173 = arith.mulf %170, %141 : vector<1x32xf32>
    %174 = arith.mulf %172, %147 : vector<1x32xf32>
    %175 = arith.addf %173, %174 : vector<1x32xf32>
    %176 = arith.mulf %170, %143 : vector<1x32xf32>
    %177 = arith.addf %176, %172 : vector<1x32xf32>
    %c0_73 = arith.constant 0 : index
    %c3 = arith.constant 3 : index
    %c0_74 = arith.constant 0 : index
    %178 = vector.load %arg15[%c0_73, %c3, %c0_74] : memref<1x8x32xf32, #tpu.memory_space<vmem>>, vector<1x1x32xf32>
    %179 = vector.shape_cast %178 : vector<1x1x32xf32> to vector<1x32xf32>
    %c0_75 = arith.constant 0 : index
    %c3_76 = arith.constant 3 : index
    %c0_77 = arith.constant 0 : index
    %180 = vector.load %arg16[%c0_75, %c3_76, %c0_77] : memref<1x8x32xf32, #tpu.memory_space<vmem>>, vector<1x1x32xf32>
    %181 = vector.shape_cast %180 : vector<1x1x32xf32> to vector<1x32xf32>
    %182 = arith.addf %72, %179 : vector<1x32xf32>
    %183 = arith.maximumf %168, %182 : vector<1x32xf32>
    %184 = arith.subf %168, %183 : vector<1x32xf32>
    %185 = math.exp %184 : vector<1x32xf32>
    %186 = arith.subf %182, %183 : vector<1x32xf32>
    %187 = math.exp %186 : vector<1x32xf32>
    %c0_78 = arith.constant 0 : index
    %c3_79 = arith.constant 3 : index
    %c0_80 = arith.constant 0 : index
    %188 = vector.load %arg17[%c0_78, %c3_79, %c0_80] : memref<1x8x32xf32, #tpu.memory_space<vmem>>, vector<1x1x32xf32>
    %189 = vector.shape_cast %188 : vector<1x1x32xf32> to vector<1x32xf32>
    %190 = arith.mulf %185, %175 : vector<1x32xf32>
    %191 = arith.mulf %187, %181 : vector<1x32xf32>
    %192 = arith.addf %190, %191 : vector<1x32xf32>
    %193 = arith.mulf %189, %192 : vector<1x32xf32>
    %194 = arith.mulf %185, %177 : vector<1x32xf32>
    %195 = arith.addf %194, %187 : vector<1x32xf32>
    %196 = tpu.reciprocal %195 {approx = true} : vector<1x32xf32> -> vector<1x32xf32>
    %197 = arith.mulf %193, %196 : vector<1x32xf32>
    %c0_81 = arith.constant 0 : index
    %c3_82 = arith.constant 3 : index
    %c0_83 = arith.constant 0 : index
    %198 = vector.load %arg18[%c0_81, %c3_82, %c0_83] : memref<1x8x32xf32, #tpu.memory_space<vmem>>, vector<1x1x32xf32>
    %199 = vector.shape_cast %198 : vector<1x1x32xf32> to vector<1x32xf32>
    %200 = vector.shape_cast %197 : vector<1x32xf32> to vector<1x1x32xf32>
    tpu.vector_store %arg18[%c0_81, %c3_82, %c0_83], %200 {strides = array<i32>} : memref<1x8x32xf32, #tpu.memory_space<vmem>>, vector<1x1x32xf32>,
    %201 = arith.addf %168, %71 : vector<1x32xf32>
    %202 = arith.maximumf %201, %179 : vector<1x32xf32>
    %203 = arith.subf %201, %202 : vector<1x32xf32>
    %204 = math.exp %203 : vector<1x32xf32>
    %205 = arith.subf %179, %202 : vector<1x32xf32>
    %206 = math.exp %205 : vector<1x32xf32>
    %207 = arith.mulf %204, %175 : vector<1x32xf32>
    %208 = arith.mulf %206, %181 : vector<1x32xf32>
    %209 = arith.addf %207, %208 : vector<1x32xf32>
    %210 = arith.mulf %204, %177 : vector<1x32xf32>
    %211 = arith.addf %210, %206 : vector<1x32xf32>
    %c0_84 = arith.constant 0 : index
    %c4 = arith.constant 4 : index
    %c0_85 = arith.constant 0 : index
    %212 = vector.load %arg15[%c0_84, %c4, %c0_85] : memref<1x8x32xf32, #tpu.memory_space<vmem>>, vector<1x1x32xf32>
    %213 = vector.shape_cast %212 : vector<1x1x32xf32> to vector<1x32xf32>
    %c0_86 = arith.constant 0 : index
    %c4_87 = arith.constant 4 : index
    %c0_88 = arith.constant 0 : index
    %214 = vector.load %arg16[%c0_86, %c4_87, %c0_88] : memref<1x8x32xf32, #tpu.memory_space<vmem>>, vector<1x1x32xf32>
    %215 = vector.shape_cast %214 : vector<1x1x32xf32> to vector<1x32xf32>
    %216 = arith.addf %72, %213 : vector<1x32xf32>
    %217 = arith.maximumf %202, %216 : vector<1x32xf32>
    %218 = arith.subf %202, %217 : vector<1x32xf32>
    %219 = math.exp %218 : vector<1x32xf32>
    %220 = arith.subf %216, %217 : vector<1x32xf32>
    %221 = math.exp %220 : vector<1x32xf32>
    %c0_89 = arith.constant 0 : index
    %c4_90 = arith.constant 4 : index
    %c0_91 = arith.constant 0 : index
    %222 = vector.load %arg17[%c0_89, %c4_90, %c0_91] : memref<1x8x32xf32, #tpu.memory_space<vmem>>, vector<1x1x32xf32>
    %223 = vector.shape_cast %222 : vector<1x1x32xf32> to vector<1x32xf32>
    %224 = arith.mulf %219, %209 : vector<1x32xf32>
    %225 = arith.mulf %221, %215 : vector<1x32xf32>
    %226 = arith.addf %224, %225 : vector<1x32xf32>
    %227 = arith.mulf %223, %226 : vector<1x32xf32>
    %228 = arith.mulf %219, %211 : vector<1x32xf32>
    %229 = arith.addf %228, %221 : vector<1x32xf32>
    %230 = tpu.reciprocal %229 {approx = true} : vector<1x32xf32> -> vector<1x32xf32>
    %231 = arith.mulf %227, %230 : vector<1x32xf32>
    %c0_92 = arith.constant 0 : index
    %c4_93 = arith.constant 4 : index
    %c0_94 = arith.constant 0 : index
    %232 = vector.load %arg18[%c0_92, %c4_93, %c0_94] : memref<1x8x32xf32, #tpu.memory_space<vmem>>, vector<1x1x32xf32>
    %233 = vector.shape_cast %232 : vector<1x1x32xf32> to vector<1x32xf32>
    %234 = vector.shape_cast %231 : vector<1x32xf32> to vector<1x1x32xf32>
    tpu.vector_store %arg18[%c0_92, %c4_93, %c0_94], %234 {strides = array<i32>} : memref<1x8x32xf32, #tpu.memory_space<vmem>>, vector<1x1x32xf32>,
    %235 = arith.addf %202, %71 : vector<1x32xf32>
    %236 = arith.maximumf %235, %213 : vector<1x32xf32>
    %237 = arith.subf %235, %236 : vector<1x32xf32>
    %238 = math.exp %237 : vector<1x32xf32>
    %239 = arith.subf %213, %236 : vector<1x32xf32>
    %240 = math.exp %239 : vector<1x32xf32>
    %241 = arith.mulf %238, %209 : vector<1x32xf32>
    %242 = arith.mulf %240, %215 : vector<1x32xf32>
    %243 = arith.addf %241, %242 : vector<1x32xf32>
    %244 = arith.mulf %238, %211 : vector<1x32xf32>
    %245 = arith.addf %244, %240 : vector<1x32xf32>
    %c0_95 = arith.constant 0 : index
    %c5 = arith.constant 5 : index
    %c0_96 = arith.constant 0 : index
    %246 = vector.load %arg15[%c0_95, %c5, %c0_96] : memref<1x8x32xf32, #tpu.memory_space<vmem>>, vector<1x1x32xf32>
    %247 = vector.shape_cast %246 : vector<1x1x32xf32> to vector<1x32xf32>
    %c0_97 = arith.constant 0 : index
    %c5_98 = arith.constant 5 : index
    %c0_99 = arith.constant 0 : index
    %248 = vector.load %arg16[%c0_97, %c5_98, %c0_99] : memref<1x8x32xf32, #tpu.memory_space<vmem>>, vector<1x1x32xf32>
    %249 = vector.shape_cast %248 : vector<1x1x32xf32> to vector<1x32xf32>
    %250 = arith.addf %72, %247 : vector<1x32xf32>
    %251 = arith.maximumf %236, %250 : vector<1x32xf32>
    %252 = arith.subf %236, %251 : vector<1x32xf32>
    %253 = math.exp %252 : vector<1x32xf32>
    %254 = arith.subf %250, %251 : vector<1x32xf32>
    %255 = math.exp %254 : vector<1x32xf32>
    %c0_100 = arith.constant 0 : index
    %c5_101 = arith.constant 5 : index
    %c0_102 = arith.constant 0 : index
    %256 = vector.load %arg17[%c0_100, %c5_101, %c0_102] : memref<1x8x32xf32, #tpu.memory_space<vmem>>, vector<1x1x32xf32>
    %257 = vector.shape_cast %256 : vector<1x1x32xf32> to vector<1x32xf32>
    %258 = arith.mulf %253, %243 : vector<1x32xf32>
    %259 = arith.mulf %255, %249 : vector<1x32xf32>
    %260 = arith.addf %258, %259 : vector<1x32xf32>
    %261 = arith.mulf %257, %260 : vector<1x32xf32>
    %262 = arith.mulf %253, %245 : vector<1x32xf32>
    %263 = arith.addf %262, %255 : vector<1x32xf32>
    %264 = tpu.reciprocal %263 {approx = true} : vector<1x32xf32> -> vector<1x32xf32>
    %265 = arith.mulf %261, %264 : vector<1x32xf32>
    %c0_103 = arith.constant 0 : index
    %c5_104 = arith.constant 5 : index
    %c0_105 = arith.constant 0 : index
    %266 = vector.load %arg18[%c0_103, %c5_104, %c0_105] : memref<1x8x32xf32, #tpu.memory_space<vmem>>, vector<1x1x32xf32>
    %267 = vector.shape_cast %266 : vector<1x1x32xf32> to vector<1x32xf32>
    %268 = vector.shape_cast %265 : vector<1x32xf32> to vector<1x1x32xf32>
    tpu.vector_store %arg18[%c0_103, %c5_104, %c0_105], %268 {strides = array<i32>} : memref<1x8x32xf32, #tpu.memory_space<vmem>>, vector<1x1x32xf32>,
    %269 = arith.addf %236, %71 : vector<1x32xf32>
    %270 = arith.maximumf %269, %247 : vector<1x32xf32>
    %271 = arith.subf %269, %270 : vector<1x32xf32>
    %272 = math.exp %271 : vector<1x32xf32>
    %273 = arith.subf %247, %270 : vector<1x32xf32>
    %274 = math.exp %273 : vector<1x32xf32>
    %275 = arith.mulf %272, %243 : vector<1x32xf32>
    %276 = arith.mulf %274, %249 : vector<1x32xf32>
    %277 = arith.addf %275, %276 : vector<1x32xf32>
    %278 = arith.mulf %272, %245 : vector<1x32xf32>
    %279 = arith.addf %278, %274 : vector<1x32xf32>
    %c0_106 = arith.constant 0 : index
    %c6 = arith.constant 6 : index
    %c0_107 = arith.constant 0 : index
    %280 = vector.load %arg15[%c0_106, %c6, %c0_107] : memref<1x8x32xf32, #tpu.memory_space<vmem>>, vector<1x1x32xf32>
    %281 = vector.shape_cast %280 : vector<1x1x32xf32> to vector<1x32xf32>
    %c0_108 = arith.constant 0 : index
    %c6_109 = arith.constant 6 : index
    %c0_110 = arith.constant 0 : index
    %282 = vector.load %arg16[%c0_108, %c6_109, %c0_110] : memref<1x8x32xf32, #tpu.memory_space<vmem>>, vector<1x1x32xf32>
    %283 = vector.shape_cast %282 : vector<1x1x32xf32> to vector<1x32xf32>
    %284 = arith.addf %72, %281 : vector<1x32xf32>
    %285 = arith.maximumf %270, %284 : vector<1x32xf32>
    %286 = arith.subf %270, %285 : vector<1x32xf32>
    %287 = math.exp %286 : vector<1x32xf32>
    %288 = arith.subf %284, %285 : vector<1x32xf32>
    %289 = math.exp %288 : vector<1x32xf32>
    %c0_111 = arith.constant 0 : index
    %c6_112 = arith.constant 6 : index
    %c0_113 = arith.constant 0 : index
    %290 = vector.load %arg17[%c0_111, %c6_112, %c0_113] : memref<1x8x32xf32, #tpu.memory_space<vmem>>, vector<1x1x32xf32>
    %291 = vector.shape_cast %290 : vector<1x1x32xf32> to vector<1x32xf32>
    %292 = arith.mulf %287, %277 : vector<1x32xf32>
    %293 = arith.mulf %289, %283 : vector<1x32xf32>
    %294 = arith.addf %292, %293 : vector<1x32xf32>
    %295 = arith.mulf %291, %294 : vector<1x32xf32>
    %296 = arith.mulf %287, %279 : vector<1x32xf32>
    %297 = arith.addf %296, %289 : vector<1x32xf32>
    %298 = tpu.reciprocal %297 {approx = true} : vector<1x32xf32> -> vector<1x32xf32>
    %299 = arith.mulf %295, %298 : vector<1x32xf32>
    %c0_114 = arith.constant 0 : index
    %c6_115 = arith.constant 6 : index
    %c0_116 = arith.constant 0 : index
    %300 = vector.load %arg18[%c0_114, %c6_115, %c0_116] : memref<1x8x32xf32, #tpu.memory_space<vmem>>, vector<1x1x32xf32>
    %301 = vector.shape_cast %300 : vector<1x1x32xf32> to vector<1x32xf32>
    %302 = vector.shape_cast %299 : vector<1x32xf32> to vector<1x1x32xf32>
    tpu.vector_store %arg18[%c0_114, %c6_115, %c0_116], %302 {strides = array<i32>} : memref<1x8x32xf32, #tpu.memory_space<vmem>>, vector<1x1x32xf32>,
    %303 = arith.addf %270, %71 : vector<1x32xf32>
    %304 = arith.maximumf %303, %281 : vector<1x32xf32>
    %305 = arith.subf %303, %304 : vector<1x32xf32>
    %306 = math.exp %305 : vector<1x32xf32>
    %307 = arith.subf %281, %304 : vector<1x32xf32>
    %308 = math.exp %307 : vector<1x32xf32>
    %309 = arith.mulf %306, %277 : vector<1x32xf32>
    %310 = arith.mulf %308, %283 : vector<1x32xf32>
    %311 = arith.addf %309, %310 : vector<1x32xf32>
    %312 = arith.mulf %306, %279 : vector<1x32xf32>
    %313 = arith.addf %312, %308 : vector<1x32xf32>
    %c0_117 = arith.constant 0 : index
    %c7 = arith.constant 7 : index
    %c0_118 = arith.constant 0 : index
    %314 = vector.load %arg15[%c0_117, %c7, %c0_118] : memref<1x8x32xf32, #tpu.memory_space<vmem>>, vector<1x1x32xf32>
    %315 = vector.shape_cast %314 : vector<1x1x32xf32> to vector<1x32xf32>
    %c0_119 = arith.constant 0 : index
    %c7_120 = arith.constant 7 : index
    %c0_121 = arith.constant 0 : index
    %316 = vector.load %arg16[%c0_119, %c7_120, %c0_121] : memref<1x8x32xf32, #tpu.memory_space<vmem>>, vector<1x1x32xf32>
    %317 = vector.shape_cast %316 : vector<1x1x32xf32> to vector<1x32xf32>
    %318 = arith.addf %72, %315 : vector<1x32xf32>
    %319 = arith.maximumf %304, %318 : vector<1x32xf32>
    %320 = arith.subf %304, %319 : vector<1x32xf32>
    %321 = math.exp %320 : vector<1x32xf32>
    %322 = arith.subf %318, %319 : vector<1x32xf32>
    %323 = math.exp %322 : vector<1x32xf32>
    %c0_122 = arith.constant 0 : index
    %c7_123 = arith.constant 7 : index
    %c0_124 = arith.constant 0 : index
    %324 = vector.load %arg17[%c0_122, %c7_123, %c0_124] : memref<1x8x32xf32, #tpu.memory_space<vmem>>, vector<1x1x32xf32>
    %325 = vector.shape_cast %324 : vector<1x1x32xf32> to vector<1x32xf32>
    %326 = arith.mulf %321, %311 : vector<1x32xf32>
    %327 = arith.mulf %323, %317 : vector<1x32xf32>
    %328 = arith.addf %326, %327 : vector<1x32xf32>
    %329 = arith.mulf %325, %328 : vector<1x32xf32>
    %330 = arith.mulf %321, %313 : vector<1x32xf32>
    %331 = arith.addf %330, %323 : vector<1x32xf32>
    %332 = tpu.reciprocal %331 {approx = true} : vector<1x32xf32> -> vector<1x32xf32>
    %333 = arith.mulf %329, %332 : vector<1x32xf32>
    %c0_125 = arith.constant 0 : index
    %c7_126 = arith.constant 7 : index
    %c0_127 = arith.constant 0 : index
    %334 = vector.load %arg18[%c0_125, %c7_126, %c0_127] : memref<1x8x32xf32, #tpu.memory_space<vmem>>, vector<1x1x32xf32>
    %335 = vector.shape_cast %334 : vector<1x1x32xf32> to vector<1x32xf32>
    %336 = vector.shape_cast %333 : vector<1x32xf32> to vector<1x1x32xf32>
    tpu.vector_store %arg18[%c0_125, %c7_126, %c0_127], %336 {strides = array<i32>} : memref<1x8x32xf32, #tpu.memory_space<vmem>>, vector<1x1x32xf32>,
    %c0_128 = arith.constant 0 : index
    %c0_129 = arith.constant 0 : index
    %c0_130 = arith.constant 0 : index
    %337 = vector.load %arg18[%c0_128, %c0_129, %c0_130] : memref<1x8x32xf32, #tpu.memory_space<vmem>>, vector<1x8x32xf32>
    %338 = vector.shape_cast %337 : vector<1x8x32xf32> to vector<8x32xf32>
    %339 = arith.truncf %338 : vector<8x32xf32> to vector<8x32xbf16>
    %c0_131 = arith.constant 0 : index
    %c0_132 = arith.constant 0 : index
    %340 = vector.load %arg8[%c0_131, %c0_132] : memref<32x32xbf16, #tpu.memory_space<vmem>>, vector<32x32xbf16>
    %cst_133 = arith.constant dense<0.000000e+00> : vector<8x32xf32>
    %341 = tpu.matmul %339, %340, %cst_133 {dimension_numbers = #tpu.dot_dimension_numbers<[1], [0], [0], [1], [0, 0, 1, 1], [], []>} : vector<8x32xbf16>, vector<32x32xbf16>, vector<8x32xf32> -> vector<8x32xf32>
    %342 = arith.addf %1, %341 : vector<8x32xf32>
    %cst_134 = arith.constant dense<0.000000e+00> : vector<8xf32>
    %343 = vector.multi_reduction <add>, %342, %cst_134 [1] : vector<8x32xf32> to vector<8xf32>
    %344 = vector.shape_cast %343 : vector<8xf32> to vector<8x1xf32>
    %cst_135 = arith.constant 3.200000e+01 : f32
    %345 = vector.broadcast %cst_135 : f32 to vector<8x1xf32>
    %346 = arith.divf %344, %345 : vector<8x1xf32>
    %347 = vector.broadcast %346 : vector<8x1xf32> to vector<8x32xf32>
    %348 = arith.subf %342, %347 : vector<8x32xf32>
    %349 = arith.mulf %348, %348 : vector<8x32xf32>
    %cst_136 = arith.constant dense<0.000000e+00> : vector<8xf32>
    %350 = vector.multi_reduction <add>, %349, %cst_136 [1] : vector<8x32xf32> to vector<8xf32>
    %351 = vector.shape_cast %350 : vector<8xf32> to vector<8x1xf32>
    %cst_137 = arith.constant 3.200000e+01 : f32
    %352 = vector.broadcast %cst_137 : f32 to vector<8x1xf32>
    %353 = arith.divf %351, %352 : vector<8x1xf32>
    %354 = vector.broadcast %346 : vector<8x1xf32> to vector<8x32xf32>
    %355 = arith.subf %342, %354 : vector<8x32xf32>
    %cst_138 = arith.constant 9.99999996E-13 : f32
    %356 = vector.broadcast %cst_138 : f32 to vector<8x1xf32>
    %357 = arith.addf %353, %356 : vector<8x1xf32>
    %358 = math.rsqrt %357 : vector<8x1xf32>
    %359 = vector.broadcast %358 : vector<8x1xf32> to vector<8x32xf32>
    %360 = arith.mulf %355, %359 : vector<8x32xf32>
    %c0_139 = arith.constant 0 : index
    %c0_140 = arith.constant 0 : index
    %361 = vector.load %arg9[%c0_139, %c0_140] : memref<1x32xf32, #tpu.memory_space<vmem>>, vector<1x32xf32>
    %362 = vector.broadcast %361 : vector<1x32xf32> to vector<8x32xf32>
    %363 = arith.mulf %360, %362 : vector<8x32xf32>
    %c0_141 = arith.constant 0 : index
    %c0_142 = arith.constant 0 : index
    %364 = vector.load %arg10[%c0_141, %c0_142] : memref<1x32xf32, #tpu.memory_space<vmem>>, vector<1x32xf32>
    %365 = vector.broadcast %364 : vector<1x32xf32> to vector<8x32xf32>
    %366 = arith.addf %363, %365 : vector<8x32xf32>
    %c1_i32_143 = arith.constant 1 : i32
    %367 = tpu.dynamic_rotate %366 by %c1_i32_143 dim 0 : vector<8x32xf32>, i32 -> vector<8x32xf32>
    %cst_144 = arith.constant 0.000000e+00 : f32
    %368 = vector.shape_cast %20 : vector<8x1xi1> to vector<8x1xi1>
    %369 = vector.broadcast %368 : vector<8x1xi1> to vector<8x32xi1>
    %370 = vector.broadcast %cst_144 : f32 to vector<8x32xf32>
    %371 = arith.select %369, %367, %370 : vector<8x32xi1>, vector<8x32xf32>
    %372 = arith.truncf %366 : vector<8x32xf32> to vector<8x32xbf16>
    %c0_145 = arith.constant 0 : index
    %c0_146 = arith.constant 0 : index
    %373 = vector.load %arg11[%c0_145, %c0_146] : memref<32x96xbf16, #tpu.memory_space<vmem>>, vector<32x96xbf16>
    %cst_147 = arith.constant dense<0.000000e+00> : vector<8x96xf32>
    %374 = tpu.matmul %372, %373, %cst_147 {dimension_numbers = #tpu.dot_dimension_numbers<[1], [0], [0], [1], [0, 0, 1, 1], [], []>} : vector<8x32xbf16>, vector<32x96xbf16>, vector<8x96xf32> -> vector<8x96xf32>
    %375 = arith.truncf %371 : vector<8x32xf32> to vector<8x32xbf16>
    %c0_148 = arith.constant 0 : index
    %c0_149 = arith.constant 0 : index
    %376 = vector.load %arg12[%c0_148, %c0_149] : memref<32x96xbf16, #tpu.memory_space<vmem>>, vector<32x96xbf16>
    %cst_150 = arith.constant dense<0.000000e+00> : vector<8x96xf32>
    %377 = tpu.matmul %375, %376, %cst_150 {dimension_numbers = #tpu.dot_dimension_numbers<[1], [0], [0], [1], [0, 0, 1, 1], [], []>} : vector<8x32xbf16>, vector<32x96xbf16>, vector<8x96xf32> -> vector<8x96xf32>
    %378 = arith.addf %374, %377 : vector<8x96xf32>
    %379 = vector.extract_strided_slice %378 {offsets = [0, 0], sizes = [8, 64], strides = [1, 1]} : vector<8x96xf32> to vector<8x64xf32>
    %cst_151 = arith.constant 0.000000e+00 : f32
    %380 = vector.broadcast %cst_151 : f32 to vector<8x64xf32>
    %381 = arith.maximumf %379, %380 : vector<8x64xf32>
    %382 = arith.mulf %381, %381 : vector<8x64xf32>
    %383 = vector.extract_strided_slice %378 {offsets = [0, 64], sizes = [8, 32], strides = [1, 1]} : vector<8x96xf32> to vector<8x32xf32>
    %384 = arith.negf %383 : vector<8x32xf32>
    %385 = math.exp %384 : vector<8x32xf32>
    %cst_152 = arith.constant 1.000000e+00 : f32
    %386 = vector.broadcast %cst_152 : f32 to vector<8x32xf32>
    %387 = arith.addf %386, %385 : vector<8x32xf32>
    %388 = arith.divf %386, %387 : vector<8x32xf32>
    %389 = arith.truncf %382 : vector<8x64xf32> to vector<8x64xbf16>
    %c0_153 = arith.constant 0 : index
    %c0_154 = arith.constant 0 : index
    %390 = vector.load %arg13[%c0_153, %c0_154] : memref<64x32xbf16, #tpu.memory_space<vmem>>, vector<64x32xbf16>
    %cst_155 = arith.constant dense<0.000000e+00> : vector<8x32xf32>
    %391 = tpu.matmul %389, %390, %cst_155 {dimension_numbers = #tpu.dot_dimension_numbers<[1], [0], [0], [1], [0, 0, 1, 1], [], []>} : vector<8x64xbf16>, vector<64x32xbf16>, vector<8x32xf32> -> vector<8x32xf32>
    %392 = arith.mulf %388, %391 : vector<8x32xf32>
    %393 = arith.addf %342, %392 : vector<8x32xf32>
    %394 = vector.shape_cast %393 : vector<8x32xf32> to vector<1x8x32xf32>
    %c0_156 = arith.constant 0 : index
    %c0_157 = arith.constant 0 : index
    %c0_158 = arith.constant 0 : index
    %395 = vector.load %arg14[%c0_156, %c0_157, %c0_158] : memref<1x8x32xf32, #tpu.memory_space<vmem>>, vector<1x8x32xf32>
    tpu.vector_store %arg14[%c0_156, %c0_157, %c0_158], %394 {strides = array<i32>} : memref<1x8x32xf32, #tpu.memory_space<vmem>>, vector<1x8x32xf32>,
    return
  }
  func.func @transform_0(%arg0: i32) -> (i32, i32, i32) {
    %c0_i32 = arith.constant 0 : i32
    %c0_i32_0 = arith.constant 0 : i32
    %c0_i32_1 = arith.constant 0 : i32
    return %arg0, %c0_i32, %c0_i32_0 : i32, i32, i32
  }
  func.func @transform_1(%arg0: i32) -> (i32, i32) {
    %c0_i32 = arith.constant 0 : i32
    %c0_i32_0 = arith.constant 0 : i32
    %c0_i32_1 = arith.constant 0 : i32
    return %c0_i32, %c0_i32_0 : i32, i32
  }
  func.func @transform_2(%arg0: i32) -> (i32, i32) {
    %c0_i32 = arith.constant 0 : i32
    %c0_i32_0 = arith.constant 0 : i32
    %c0_i32_1 = arith.constant 0 : i32
    return %c0_i32, %c0_i32_0 : i32, i32
  }
  func.func @transform_3(%arg0: i32) -> (i32, i32) {
    %c0_i32 = arith.constant 0 : i32
    %c0_i32_0 = arith.constant 0 : i32
    %c0_i32_1 = arith.constant 0 : i32
    return %c0_i32, %c0_i32_0 : i32, i32
  }
  func.func @transform_4(%arg0: i32) -> (i32, i32) {
    %c0_i32 = arith.constant 0 : i32
    %c0_i32_0 = arith.constant 0 : i32
    %c0_i32_1 = arith.constant 0 : i32
    return %c0_i32, %c0_i32_0 : i32, i32
  }
  func.func @transform_5(%arg0: i32) -> (i32, i32) {
    %c0_i32 = arith.constant 0 : i32
    %c0_i32_0 = arith.constant 0 : i32
    %c0_i32_1 = arith.constant 0 : i32
    return %c0_i32, %c0_i32_0 : i32, i32
  }
  func.func @transform_6(%arg0: i32) -> (i32, i32) {
    %c0_i32 = arith.constant 0 : i32
    %c0_i32_0 = arith.constant 0 : i32
    %c0_i32_1 = arith.constant 0 : i32
    return %c0_i32, %c0_i32_0 : i32, i32
  }
  func.func @transform_7(%arg0: i32) -> (i32, i32) {
    %c0_i32 = arith.constant 0 : i32
    %c0_i32_0 = arith.constant 0 : i32
    %c0_i32_1 = arith.constant 0 : i32
    return %c0_i32, %c0_i32_0 : i32, i32
  }
  func.func @transform_8(%arg0: i32) -> (i32, i32) {
    %c0_i32 = arith.constant 0 : i32
    %c0_i32_0 = arith.constant 0 : i32
    %c0_i32_1 = arith.constant 0 : i32
    return %c0_i32, %c0_i32_0 : i32, i32
  }
  func.func @transform_9(%arg0: i32) -> (i32, i32) {
    %c0_i32 = arith.constant 0 : i32
    %c0_i32_0 = arith.constant 0 : i32
    %c0_i32_1 = arith.constant 0 : i32
    return %c0_i32, %c0_i32_0 : i32, i32
  }
  func.func @transform_10(%arg0: i32) -> (i32, i32) {
    %c0_i32 = arith.constant 0 : i32
    %c0_i32_0 = arith.constant 0 : i32
    %c0_i32_1 = arith.constant 0 : i32
    return %c0_i32, %c0_i32_0 : i32, i32
  }
  func.func @transform_11(%arg0: i32) -> (i32, i32) {
    %c0_i32 = arith.constant 0 : i32
    %c0_i32_0 = arith.constant 0 : i32
    %c0_i32_1 = arith.constant 0 : i32
    return %c0_i32, %c0_i32_0 : i32, i32
  }
  func.func @transform_12(%arg0: i32) -> (i32, i32) {
    %c0_i32 = arith.constant 0 : i32
    %c0_i32_0 = arith.constant 0 : i32
    %c0_i32_1 = arith.constant 0 : i32
    return %c0_i32, %c0_i32_0 : i32, i32
  }
  func.func @transform_13(%arg0: i32) -> (i32, i32, i32) {
    %c0_i32 = arith.constant 0 : i32
    %c0_i32_0 = arith.constant 0 : i32
    %c0_i32_1 = arith.constant 0 : i32
    return %arg0, %c0_i32, %c0_i32_0 : i32, i32, i32
  }
}

module attributes {stable_mosaic.version = 11 : i64} {
  func.func @rwkv_block_kernel(%arg0: i32, %arg1: memref<1x8x32xf32, #tpu.memory_space<vmem>>, %arg2: memref<1x32xf32, #tpu.memory_space<vmem>>, %arg3: memref<1x32xf32, #tpu.memory_space<vmem>>, %arg4: memref<1x32xf32, #tpu.memory_space<vmem>>, %arg5: memref<1x32xf32, #tpu.memory_space<vmem>>, %arg6: memref<32x96xbf16, #tpu.memory_space<vmem>>, %arg7: memref<32x96xbf16, #tpu.memory_space<vmem>>, %arg8: memref<32x32xbf16, #tpu.memory_space<vmem>>, %arg9: memref<1x32xf32, #tpu.memory_space<vmem>>, %arg10: memref<1x32xf32, #tpu.memory_space<vmem>>, %arg11: memref<32x96xbf16, #tpu.memory_space<vmem>>, %arg12: memref<32x96xbf16, #tpu.memory_space<vmem>>, %arg13: memref<64x32xbf16, #tpu.memory_space<vmem>>, %arg14: memref<1x8x32xf32, #tpu.memory_space<vmem>>, %arg15: memref<1x8x32xf32, #tpu.memory_space<vmem>>, %arg16: memref<1x8x32xf32, #tpu.memory_space<vmem>>, %arg17: memref<1x8x32xf32, #tpu.memory_space<vmem>>, %arg18: memref<1x8x32xf32, #tpu.memory_space<vmem>>) attributes {dimension_semantics = [#tpu.dimension_semantics<parallel>], iteration_bounds = array<i64: 2>, scalar_prefetch = 0 : i64, scratch_operands = 4 : i64, tpu.core_type = #tpu.core_type<tc>, window_params = [{transform_indices = @transform_0, window_bounds = array<i64: 1, 8, 32>}, {pipeline_mode = #tpu.pipeline_mode<synchronous>, transform_indices = @transform_1, window_bounds = array<i64: 1, 32>}, {pipeline_mode = #tpu.pipeline_mode<synchronous>, transform_indices = @transform_2, window_bounds = array<i64: 1, 32>}, {pipeline_mode = #tpu.pipeline_mode<synchronous>, transform_indices = @transform_3, window_bounds = array<i64: 1, 32>}, {pipeline_mode = #tpu.pipeline_mode<synchronous>, transform_indices = @transform_4, window_bounds = array<i64: 1, 32>}, {pipeline_mode = #tpu.pipeline_mode<synchronous>, transform_indices = @transform_5, window_bounds = array<i64: 32, 96>}, {pipeline_mode = #tpu.pipeline_mode<synchronous>, transform_indices = @transform_6, window_bounds = array<i64: 32, 96>}, {pipeline_mode = #tpu.pipeline_mode<synchronous>, transform_indices = @transform_7, window_bounds = array<i64: 32, 32>}, {pipeline_mode = #tpu.pipeline_mode<synchronous>, transform_indices = @transform_8, window_bounds = array<i64: 1, 32>}, {pipeline_mode = #tpu.pipeline_mode<synchronous>, transform_indices = @transform_9, window_bounds = array<i64: 1, 32>}, {pipeline_mode = #tpu.pipeline_mode<synchronous>, transform_indices = @transform_10, window_bounds = array<i64: 32, 96>}, {pipeline_mode = #tpu.pipeline_mode<synchronous>, transform_indices = @transform_11, window_bounds = array<i64: 32, 96>}, {pipeline_mode = #tpu.pipeline_mode<synchronous>, transform_indices = @transform_12, window_bounds = array<i64: 64, 32>}, {transform_indices = @transform_13, window_bounds = array<i64: 1, 8, 32>}]} {
    %c0 = arith.constant 0 : index
    %c0_0 = arith.constant 0 : index
    %c0_1 = arith.constant 0 : index
    %0 = vector.load %arg1[%c0, %c0_0, %c0_1] : memref<1x8x32xf32, #tpu.memory_space<vmem>>, vector<1x8x32xf32>
    %1 = vector.shape_cast %0 : vector<1x8x32xf32> to vector<8x32xf32>
    %2 = tpu.iota {dimensions = array<i32: 0>} : vector<8x1xi32>
    %c8_i32 = arith.constant 8 : i32
    %c0_i32 = arith.constant 0 : i32
    %3 = arith.cmpi eq, %c8_i32, %c0_i32 : i32
    %c1_i32 = arith.constant 1 : i32
    %4 = arith.select %3, %c1_i32, %c8_i32 : i32
    %5 = vector.broadcast %4 : i32 to vector<8x1xi32>
    %6 = arith.remsi %2, %5 : vector<8x1xi32>
    %c0_i32_2 = arith.constant 0 : i32
    %7 = vector.broadcast %c0_i32_2 : i32 to vector<8x1xi32>
    %8 = arith.cmpi ne, %6, %7 : vector<8x1xi32>
    %c0_i32_3 = arith.constant 0 : i32
    %9 = vector.broadcast %c0_i32_3 : i32 to vector<8x1xi32>
    %10 = arith.cmpi slt, %6, %9 : vector<8x1xi32>
    %c0_i32_4 = arith.constant 0 : i32
    %11 = arith.cmpi slt, %4, %c0_i32_4 : i32
    %12 = vector.broadcast %11 : i1 to vector<8x1xi1>
    %13 = vector.broadcast %12 : vector<8x1xi1> to vector<8x1xi1>
    %14 = arith.xori %10, %13 : vector<8x1xi1>
    %15 = arith.andi %14, %8 : vector<8x1xi1>
    %16 = vector.broadcast %4 : i32 to vector<8x1xi32>
    %17 = arith.addi %6, %16 : vector<8x1xi32>
    %18 = arith.select %15, %17, %6 : vector<8x1xi1>, vector<8x1xi32>
    %c0_i32_5 = arith.constant 0 : i32
    %19 = vector.broadcast %c0_i32_5 : i32 to vector<8x1xi32>
    %20 = arith.cmpi ne, %18, %19 : vector<8x1xi32>
    %cst = arith.constant dense<0.000000e+00> : vector<8xf32>
    %21 = vector.multi_reduction <add>, %1, %cst [1] : vector<8x32xf32> to vector<8xf32>
    %22 = vector.shape_cast %21 : vector<8xf32> to vector<8x1xf32>
    %cst_6 = arith.constant 3.200000e+01 : f32
    %23 = vector.broadcast %cst_6 : f32 to vector<8x1xf32>
    %24 = arith.divf %22, %23 : vector<8x1xf32>
    %25 = vector.broadcast %24 : vector<8x1xf32> to vector<8x32xf32>
    %26 = arith.subf %1, %25 : vector<8x32xf32>
    %27 = arith.mulf %26, %26 : vector<8x32xf32>
    %cst_7 = arith.constant dense<0.000000e+00> : vector<8xf32>
    %28 = vector.multi_reduction <add>, %27, %cst_7 [1] : vector<8x32xf32> to vector<8xf32>
    %29 = vector.shape_cast %28 : vector<8xf32> to vector<8x1xf32>
    %cst_8 = arith.constant 3.200000e+01 : f32
    %30 = vector.broadcast %cst_8 : f32 to vector<8x1xf32>
    %31 = arith.divf %29, %30 : vector<8x1xf32>
    %32 = vector.broadcast %24 : vector<8x1xf32> to vector<8x32xf32>
    %33 = arith.subf %1, %32 : vector<8x32xf32>
    %cst_9 = arith.constant 9.99999996E-13 : f32
    %34 = vector.broadcast %cst_9 : f32 to vector<8x1xf32>
    %35 = arith.addf %31, %34 : vector<8x1xf32>
    %36 = math.rsqrt %35 : vector<8x1xf32>
    %37 = vector.broadcast %36 : vector<8x1xf32> to vector<8x32xf32>
    %38 = arith.mulf %33, %37 : vector<8x32xf32>
    %c0_10 = arith.constant 0 : index
    %c0_11 = arith.constant 0 : index
    %39 = vector.load %arg2[%c0_10, %c0_11] : memref<1x32xf32, #tpu.memory_space<vmem>>, vector<1x32xf32>
    %40 = vector.broadcast %39 : vector<1x32xf32> to vector<8x32xf32>
    %41 = arith.mulf %38, %40 : vector<8x32xf32>
    %c0_12 = arith.constant 0 : index
    %c0_13 = arith.constant 0 : index
    %42 = vector.load %arg3[%c0_12, %c0_13] : memref<1x32xf32, #tpu.memory_space<vmem>>, vector<1x32xf32>
    %43 = vector.broadcast %42 : vector<1x32xf32> to vector<8x32xf32>
    %44 = arith.addf %41, %43 : vector<8x32xf32>
    %c1_i32_14 = arith.constant 1 : i32
    %45 = tpu.dynamic_rotate %44 by %c1_i32_14 dim 0 : vector<8x32xf32>, i32 -> vector<8x32xf32>
    %cst_15 = arith.constant 0.000000e+00 : f32
    %46 = vector.shape_cast %20 : vector<8x1xi1> to vector<8x1xi1>
    %47 = vector.broadcast %46 : vector<8x1xi1> to vector<8x32xi1>
    %48 = vector.broadcast %cst_15 : f32 to vector<8x32xf32>
    %49 = arith.select %47, %45, %48 : vector<8x32xi1>, vector<8x32xf32>
    %50 = arith.truncf %44 : vector<8x32xf32> to vector<8x32xbf16>
    %c0_16 = arith.constant 0 : index
    %c0_17 = arith.constant 0 : index
    %51 = vector.load %arg6[%c0_16, %c0_17] : memref<32x96xbf16, #tpu.memory_space<vmem>>, vector<32x96xbf16>
    %cst_18 = arith.constant dense<0.000000e+00> : vector<8x96xf32>
    %52 = tpu.matmul %50, %51, %cst_18 {dimension_numbers = #tpu.dot_dimension_numbers<[1], [0], [0], [1], [0, 0, 1, 1], [], []>} : vector<8x32xbf16>, vector<32x96xbf16>, vector<8x96xf32> -> vector<8x96xf32>
    %53 = arith.truncf %49 : vector<8x32xf32> to vector<8x32xbf16>
    %c0_19 = arith.constant 0 : index
    %c0_20 = arith.constant 0 : index
    %54 = vector.load %arg7[%c0_19, %c0_20] : memref<32x96xbf16, #tpu.memory_space<vmem>>, vector<32x96xbf16>
    %cst_21 = arith.constant dense<0.000000e+00> : vector<8x96xf32>
    %55 = tpu.matmul %53, %54, %cst_21 {dimension_numbers = #tpu.dot_dimension_numbers<[1], [0], [0], [1], [0, 0, 1, 1], [], []>} : vector<8x32xbf16>, vector<32x96xbf16>, vector<8x96xf32> -> vector<8x96xf32>
    %56 = arith.addf %52, %55 : vector<8x96xf32>
    %57 = vector.extract_strided_slice %56 {offsets = [0, 0], sizes = [8, 32], strides = [1, 1]} : vector<8x96xf32> to vector<8x32xf32>
    %58 = vector.shape_cast %57 : vector<8x32xf32> to vector<1x8x32xf32>
    %c0_22 = arith.constant 0 : index
    %c0_23 = arith.constant 0 : index
    %c0_24 = arith.constant 0 : index
    %59 = vector.load %arg15[%c0_22, %c0_23, %c0_24] : memref<1x8x32xf32, #tpu.memory_space<vmem>>, vector<1x8x32xf32>
    tpu.vector_store %arg15[%c0_22, %c0_23, %c0_24], %58 {strides = array<i32>} : memref<1x8x32xf32, #tpu.memory_space<vmem>>, vector<1x8x32xf32>,
    %60 = vector.extract_strided_slice %56 {offsets = [0, 32], sizes = [8, 32], strides = [1, 1]} : vector<8x96xf32> to vector<8x32xf32>
    %61 = vector.shape_cast %60 : vector<8x32xf32> to vector<1x8x32xf32>
    %c0_25 = arith.constant 0 : index
    %c0_26 = arith.constant 0 : index
    %c0_27 = arith.constant 0 : index
    %62 = vector.load %arg16[%c0_25, %c0_26, %c0_27] : memref<1x8x32xf32, #tpu.memory_space<vmem>>, vector<1x8x32xf32>
    tpu.vector_store %arg16[%c0_25, %c0_26, %c0_27], %61 {strides = array<i32>} : memref<1x8x32xf32, #tpu.memory_space<vmem>>, vector<1x8x32xf32>,
    %63 = vector.extract_strided_slice %56 {offsets = [0, 64], sizes = [8, 32], strides = [1, 1]} : vector<8x96xf32> to vector<8x32xf32>
    %64 = vector.shape_cast %63 : vector<8x32xf32> to vector<1x8x32xf32>
    %65 = arith.negf %64 : vector<1x8x32xf32>
    %66 = math.exp %65 : vector<1x8x32xf32>
    %cst_28 = arith.constant 1.000000e+00 : f32
    %67 = vector.broadcast %cst_28 : f32 to vector<1x8x32xf32>
    %68 = arith.addf %67, %66 : vector<1x8x32xf32>
    %69 = arith.divf %67, %68 : vector<1x8x32xf32>
    %c0_29 = arith.constant 0 : index
    %c0_30 = arith.constant 0 : index
    %c0_31 = arith.constant 0 : index
    %70 = vector.load %arg17[%c0_29, %c0_30, %c0_31] : memref<1x8x32xf32, #tpu.memory_space<vmem>>, vector<1x8x32xf32>
    tpu.vector_store %arg17[%c0_29, %c0_30, %c0_31], %69 {strides = array<i32>} : memref<1x8x32xf32, #tpu.memory_space<vmem>>, vector<1x8x32xf32>,
    %c0_32 = arith.constant 0 : index
    %c0_33 = arith.constant 0 : index
    %71 = vector.load %arg4[%c0_32, %c0_33] : memref<1x32xf32, #tpu.memory_space<vmem>>, vector<1x32xf32>
    %c0_34 = arith.constant 0 : index
    %c0_35 = arith.constant 0 : index
    %72 = vector.load %arg5[%c0_34, %c0_35] : memref<1x32xf32, #tpu.memory_space<vmem>>, vector<1x32xf32>
    %cst_36 = arith.constant 0.000000e+00 : f32
    %73 = vector.broadcast %cst_36 : f32 to vector<1x32xf32>
    %cst_37 = arith.constant 0.000000e+00 : f32
    %74 = vector.broadcast %cst_37 : f32 to vector<1x32xf32>
    %cst_38 = arith.constant -9.99999968E+37 : f32
    %75 = vector.broadcast %cst_38 : f32 to vector<1x32xf32>
    %c0_39 = arith.constant 0 : index
    %c0_40 = arith.constant 0 : index
    %c0_41 = arith.constant 0 : index
    %76 = vector.load %arg15[%c0_39, %c0_40, %c0_41] : memref<1x8x32xf32, #tpu.memory_space<vmem>>, vector<1x1x32xf32>
    %77 = vector.shape_cast %76 : vector<1x1x32xf32> to vector<1x32xf32>
    %c0_42 = arith.constant 0 : index
    %c0_43 = arith.constant 0 : index
    %c0_44 = arith.constant 0 : index
    %78 = vector.load %arg16[%c0_42, %c0_43, %c0_44] : memref<1x8x32xf32, #tpu.memory_space<vmem>>, vector<1x1x32xf32>
    %79 = vector.shape_cast %78 : vector<1x1x32xf32> to vector<1x32xf32>
    %80 = arith.addf %72, %77 : vector<1x32xf32>
    %81 = arith.maximumf %75, %80 : vector<1x32xf32>
    %82 = arith.subf %75, %81 : vector<1x32xf32>
    %83 = math.exp %82 : vector<1x32xf32>
    %84 = arith.subf %80, %81 : vector<1x32xf32>
    %85 = math.exp %84 : vector<1x32xf32>
    %c0_45 = arith.constant 0 : index
    %c0_46 = arith.constant 0 : index
    %c0_47 = arith.constant 0 : index
    %86 = vector.load %arg17[%c0_45, %c0_46, %c0_47] : memref<1x8x32xf32, #tpu.memory_space<vmem>>, vector<1x1x32xf32>
    %87 = vector.shape_cast %86 : vector<1x1x32xf32> to vector<1x32xf32>
    %88 = arith.mulf %83, %73 : vector<1x32xf32>
    %89 = arith.mulf %85, %79 : vector<1x32xf32>
    %90 = arith.addf %88, %89 : vector<1x32xf32>
    %91 = arith.mulf %87, %90 : vector<1x32xf32>
    %92 = arith.mulf %83, %74 : vector<1x32xf32>
    %93 = arith.addf %92, %85 : vector<1x32xf32>
    %94 = tpu.reciprocal %93 {approx = true} : vector<1x32xf32> -> vector<1x32xf32>
    %95 = arith.mulf %91, %94 : vector<1x32xf32>
    %c0_48 = arith.constant 0 : index
    %c0_49 = arith.constant 0 : index
    %c0_50 = arith.constant 0 : index
    %96 = vector.load %arg18[%c0_48, %c0_49, %c0_50] : memref<1x8x32xf32, #tpu.memory_space<vmem>>, vector<1x1x32xf32>
    %97 = vector.shape_cast %96 : vector<1x1x32xf32> to vector<1x32xf32>
    %98 = vector.shape_cast %95 : vector<1x32xf32> to vector<1x1x32xf32>
    tpu.vector_store %arg18[%c0_48, %c0_49, %c0_50], %98 {strides = array<i32>} : memref<1x8x32xf32, #tpu.memory_space<vmem>>, vector<1x1x32xf32>,
    %99 = arith.addf %75, %71 : vector<1x32xf32>
    %100 = arith.maximumf %99, %77 : vector<1x32xf32>
    %101 = arith.subf %99, %100 : vector<1x32xf32>
    %102 = math.exp %101 : vector<1x32xf32>
    %103 = arith.subf %77, %100 : vector<1x32xf32>
    %104 = math.exp %103 : vector<1x32xf32>
    %105 = arith.mulf %102, %73 : vector<1x32xf32>
    %106 = arith.mulf %104, %79 : vector<1x32xf32>
    %107 = arith.addf %105, %106 : vector<1x32xf32>
    %108 = arith.mulf %102, %74 : vector<1x32xf32>
    %109 = arith.addf %108, %104 : vector<1x32xf32>
    %c0_51 = arith.constant 0 : index
    %c1 = arith.constant 1 : index
    %c0_52 = arith.constant 0 : index
    %110 = vector.load %arg15[%c0_51, %c1, %c0_52] : memref<1x8x32xf32, #tpu.memory_space<vmem>>, vector<1x1x32xf32>
    %111 = vector.shape_cast %110 : vector<1x1x32xf32> to vector<1x32xf32>
    %c0_53 = arith.constant 0 : index
    %c1_54 = arith.constant 1 : index
    %c0_55 = arith.constant 0 : index
    %112 = vector.load %arg16[%c0_53, %c1_54, %c0_55] : memref<1x8x32xf32, #tpu.memory_space<vmem>>, vector<1x1x32xf32>
    %113 = vector.shape_cast %112 : vector<1x1x32xf32> to vector<1x32xf32>
    %114 = arith.addf %72, %111 : vector<1x32xf32>
    %115 = arith.maximumf %100, %114 : vector<1x32xf32>
    %116 = arith.subf %100, %115 : vector<1x32xf32>
    %117 = math.exp %116 : vector<1x32xf32>
    %118 = arith.subf %114, %115 : vector<1x32xf32>
    %119 = math.exp %118 : vector<1x32xf32>
    %c0_56 = arith.constant 0 : index
    %c1_57 = arith.constant 1 : index
    %c0_58 = arith.constant 0 : index
    %120 = vector.load %arg17[%c0_56, %c1_57, %c0_58] : memref<1x8x32xf32, #tpu.memory_space<vmem>>, vector<1x1x32xf32>
    %121 = vector.shape_cast %120 : vector<1x1x32xf32> to vector<1x32xf32>
    %122 = arith.mulf %117, %107 : vector<1x32xf32>
    %123 = arith.mulf %119, %113 : vector<1x32xf32>
    %124 = arith.addf %122, %123 : vector<1x32xf32>
    %125 = arith.mulf %121, %124 : vector<1x32xf32>
    %126 = arith.mulf %117, %109 : vector<1x32xf32>
    %127 = arith.addf %126, %119 : vector<1x32xf32>
    %128 = tpu.reciprocal %127 {approx = true} : vector<1x32xf32> -> vector<1x32xf32>
    %129 = arith.mulf %125, %128 : vector<1x32xf32>
    %c0_59 = arith.constant 0 : index
    %c1_60 = arith.constant 1 : index
    %c0_61 = arith.constant 0 : index
    %130 = vector.load %arg18[%c0_59, %c1_60, %c0_61] : memref<1x8x32xf32, #tpu.memory_space<vmem>>, vector<1x1x32xf32>
    %131 = vector.shape_cast %130 : vector<1x1x32xf32> to vector<1x32xf32>
    %132 = vector.shape_cast %129 : vector<1x32xf32> to vector<1x1x32xf32>
    tpu.vector_store %arg18[%c0_59, %c1_60, %c0_61], %132 {strides = array<i32>} : memref<1x8x32xf32, #tpu.memory_space<vmem>>, vector<1x1x32xf32>,
    %133 = arith.addf %100, %71 : vector<1x32xf32>
    %134 = arith.maximumf %133, %111 : vector<1x32xf32>
    %135 = arith.subf %133, %134 : vector<1x32xf32>
    %136 = math.exp %135 : vector<1x32xf32>
    %137 = arith.subf %111, %134 : vector<1x32xf32>
    %138 = math.exp %137 : vector<1x32xf32>
    %139 = arith.mulf %136, %107 : vector<1x32xf32>
    %140 = arith.mulf %138, %113 : vector<1x32xf32>
    %141 = arith.addf %139, %140 : vector<1x32xf32>
    %142 = arith.mulf %136, %109 : vector<1x32xf32>
    %143 = arith.addf %142, %138 : vector<1x32xf32>
    %c0_62 = arith.constant 0 : index
    %c2 = arith.constant 2 : index
    %c0_63 = arith.constant 0 : index
    %144 = vector.load %arg15[%c0_62, %c2, %c0_63] : memref<1x8x32xf32, #tpu.memory_space<vmem>>, vector<1x1x32xf32>
    %145 = vector.shape_cast %144 : vector<1x1x32xf32> to vector<1x32xf32>
    %c0_64 = arith.constant 0 : index
    %c2_65 = arith.constant 2 : index
    %c0_66 = arith.constant 0 : index
    %146 = vector.load %arg16[%c0_64, %c2_65, %c0_66] : memref<1x8x32xf32, #tpu.memory_space<vmem>>, vector<1x1x32xf32>
    %147 = vector.shape_cast %146 : vector<1x1x32xf32> to vector<1x32xf32>
    %148 = arith.addf %72, %145 : vector<1x32xf32>
    %149 = arith.maximumf %134, %148 : vector<1x32xf32>
    %150 = arith.subf %134, %149 : vector<1x32xf32>
    %151 = math.exp %150 : vector<1x32xf32>
    %152 = arith.subf %148, %149 : vector<1x32xf32>
    %153 = math.exp %152 : vector<1x32xf32>
    %c0_67 = arith.constant 0 : index
    %c2_68 = arith.constant 2 : index
    %c0_69 = arith.constant 0 : index
    %154 = vector.load %arg17[%c0_67, %c2_68, %c0_69] : memref<1x8x32xf32, #tpu.memory_space<vmem>>, vector<1x1x32xf32>
    %155 = vector.shape_cast %154 : vector<1x1x32xf32> to vector<1x32xf32>
    %156 = arith.mulf %151, %141 : vector<1x32xf32>
    %157 = arith.mulf %153, %147 : vector<1x32xf32>
    %158 = arith.addf %156, %157 : vector<1x32xf32>
    %159 = arith.mulf %155, %158 : vector<1x32xf32>
    %160 = arith.mulf %151, %143 : vector<1x32xf32>
    %161 = arith.addf %160, %153 : vector<1x32xf32>
    %162 = tpu.reciprocal %161 {approx = true} : vector<1x32xf32> -> vector<1x32xf32>
    %163 = arith.mulf %159, %162 : vector<1x32xf32>
    %c0_70 = arith.constant 0 : index
    %c2_71 = arith.constant 2 : index
    %c0_72 = arith.constant 0 : index
    %164 = vector.load %arg18[%c0_70, %c2_71, %c0_72] : memref<1x8x32xf32, #tpu.memory_space<vmem>>, vector<1x1x32xf32>
    %165 = vector.shape_cast %164 : vector<1x1x32xf32> to vector<1x32xf32>
    %166 = vector.shape_cast %163 : vector<1x32xf32> to vector<1x1x32xf32>
    tpu.vector_store %arg18[%c0_70, %c2_71, %c0_72], %166 {strides = array<i32>} : memref<1x8x32xf32, #tpu.memory_space<vmem>>, vector<1x1x32xf32>,
    %167 = arith.addf %134, %71 : vector<1x32xf32>
    %168 = arith.maximumf %167, %145 : vector<1x32xf32>
    %169 = arith.subf %167, %168 : vector<1x32xf32>
    %170 = math.exp %169 : vector<1x32xf32>
    %171 = arith.subf %145, %168 : vector<1x32xf32>
    %172 = math.exp %171 : vector<1x32xf32>
    %173 = arith.mulf %170, %141 : vector<1x32xf32>
    %174 = arith.mulf %172, %147 : vector<1x32xf32>
    %175 = arith.addf %173, %174 : vector<1x32xf32>
    %176 = arith.mulf %170, %143 : vector<1x32xf32>
    %177 = arith.addf %176, %172 : vector<1x32xf32>
    %c0_73 = arith.constant 0 : index
    %c3 = arith.constant 3 : index
    %c0_74 = arith.constant 0 : index
    %178 = vector.load %arg15[%c0_73, %c3, %c0_74] : memref<1x8x32xf32, #tpu.memory_space<vmem>>, vector<1x1x32xf32>
    %179 = vector.shape_cast %178 : vector<1x1x32xf32> to vector<1x32xf32>
    %c0_75 = arith.constant 0 : index
    %c3_76 = arith.constant 3 : index
    %c0_77 = arith.constant 0 : index
    %180 = vector.load %arg16[%c0_75, %c3_76, %c0_77] : memref<1x8x32xf32, #tpu.memory_space<vmem>>, vector<1x1x32xf32>
    %181 = vector.shape_cast %180 : vector<1x1x32xf32> to vector<1x32xf32>
    %182 = arith.addf %72, %179 : vector<1x32xf32>
    %183 = arith.maximumf %168, %182 : vector<1x32xf32>
    %184 = arith.subf %168, %183 : vector<1x32xf32>
    %185 = math.exp %184 : vector<1x32xf32>
    %186 = arith.subf %182, %183 : vector<1x32xf32>
    %187 = math.exp %186 : vector<1x32xf32>
    %c0_78 = arith.constant 0 : index
    %c3_79 = arith.constant 3 : index
    %c0_80 = arith.constant 0 : index
    %188 = vector.load %arg17[%c0_78, %c3_79, %c0_80] : memref<1x8x32xf32, #tpu.memory_space<vmem>>, vector<1x1x32xf32>
    %189 = vector.shape_cast %188 : vector<1x1x32xf32> to vector<1x32xf32>
    %190 = arith.mulf %185, %175 : vector<1x32xf32>
    %191 = arith.mulf %187, %181 : vector<1x32xf32>
    %192 = arith.addf %190, %191 : vector<1x32xf32>
    %193 = arith.mulf %189, %192 : vector<1x32xf32>
    %194 = arith.mulf %185, %177 : vector<1x32xf32>
    %195 = arith.addf %194, %187 : vector<1x32xf32>
    %196 = tpu.reciprocal %195 {approx = true} : vector<1x32xf32> -> vector<1x32xf32>
    %197 = arith.mulf %193, %196 : vector<1x32xf32>
    %c0_81 = arith.constant 0 : index
    %c3_82 = arith.constant 3 : index
    %c0_83 = arith.constant 0 : index
    %198 = vector.load %arg18[%c0_81, %c3_82, %c0_83] : memref<1x8x32xf32, #tpu.memory_space<vmem>>, vector<1x1x32xf32>
    %199 = vector.shape_cast %198 : vector<1x1x32xf32> to vector<1x32xf32>
    %200 = vector.shape_cast %197 : vector<1x32xf32> to vector<1x1x32xf32>
    tpu.vector_store %arg18[%c0_81, %c3_82, %c0_83], %200 {strides = array<i32>} : memref<1x8x32xf32, #tpu.memory_space<vmem>>, vector<1x1x32xf32>,
    %201 = arith.addf %168, %71 : vector<1x32xf32>
    %202 = arith.maximumf %201, %179 : vector<1x32xf32>
    %203 = arith.subf %201, %202 : vector<1x32xf32>
    %204 = math.exp %203 : vector<1x32xf32>
    %205 = arith.subf %179, %202 : vector<1x32xf32>
    %206 = math.exp %205 : vector<1x32xf32>
    %207 = arith.mulf %204, %175 : vector<1x32xf32>
    %208 = arith.mulf %206, %181 : vector<1x32xf32>
    %209 = arith.addf %207, %208 : vector<1x32xf32>
    %210 = arith.mulf %204, %177 : vector<1x32xf32>
    %211 = arith.addf %210, %206 : vector<1x32xf32>
    %c0_84 = arith.constant 0 : index
    %c4 = arith.constant 4 : index
    %c0_85 = arith.constant 0 : index
    %212 = vector.load %arg15[%c0_84, %c4, %c0_85] : memref<1x8x32xf32, #tpu.memory_space<vmem>>, vector<1x1x32xf32>
    %213 = vector.shape_cast %212 : vector<1x1x32xf32> to vector<1x32xf32>
    %c0_86 = arith.constant 0 : index
    %c4_87 = arith.constant 4 : index
    %c0_88 = arith.constant 0 : index
    %214 = vector.load %arg16[%c0_86, %c4_87, %c0_88] : memref<1x8x32xf32, #tpu.memory_space<vmem>>, vector<1x1x32xf32>
    %215 = vector.shape_cast %214 : vector<1x1x32xf32> to vector<1x32xf32>
    %216 = arith.addf %72, %213 : vector<1x32xf32>
    %217 = arith.maximumf %202, %216 : vector<1x32xf32>
    %218 = arith.subf %202, %217 : vector<1x32xf32>
    %219 = math.exp %218 : vector<1x32xf32>
    %220 = arith.subf %216, %217 : vector<1x32xf32>
    %221 = math.exp %220 : vector<1x32xf32>
    %c0_89 = arith.constant 0 : index
    %c4_90 = arith.constant 4 : index
    %c0_91 = arith.constant 0 : index
    %222 = vector.load %arg17[%c0_89, %c4_90, %c0_91] : memref<1x8x32xf32, #tpu.memory_space<vmem>>, vector<1x1x32xf32>
    %223 = vector.shape_cast %222 : vector<1x1x32xf32> to vector<1x32xf32>
    %224 = arith.mulf %219, %209 : vector<1x32xf32>
    %225 = arith.mulf %221, %215 : vector<1x32xf32>
    %226 = arith.addf %224, %225 : vector<1x32xf32>
    %227 = arith.mulf %223, %226 : vector<1x32xf32>
    %228 = arith.mulf %219, %211 : vector<1x32xf32>
    %229 = arith.addf %228, %221 : vector<1x32xf32>
    %230 = tpu.reciprocal %229 {approx = true} : vector<1x32xf32> -> vector<1x32xf32>
    %231 = arith.mulf %227, %230 : vector<1x32xf32>
    %c0_92 = arith.constant 0 : index
    %c4_93 = arith.constant 4 : index
    %c0_94 = arith.constant 0 : index
    %232 = vector.load %arg18[%c0_92, %c4_93, %c0_94] : memref<1x8x32xf32, #tpu.memory_space<vmem>>, vector<1x1x32xf32>
    %233 = vector.shape_cast %232 : vector<1x1x32xf32> to vector<1x32xf32>
    %234 = vector.shape_cast %231 : vector<1x32xf32> to vector<1x1x32xf32>
    tpu.vector_store %arg18[%c0_92, %c4_93, %c0_94], %234 {strides = array<i32>} : memref<1x8x32xf32, #tpu.memory_space<vmem>>, vector<1x1x32xf32>,
    %235 = arith.addf %202, %71 : vector<1x32xf32>
    %236 = arith.maximumf %235, %213 : vector<1x32xf32>
    %237 = arith.subf %235, %236 : vector<1x32xf32>
    %238 = math.exp %237 : vector<1x32xf32>
    %239 = arith.subf %213, %236 : vector<1x32xf32>
    %240 = math.exp %239 : vector<1x32xf32>
    %241 = arith.mulf %238, %209 : vector<1x32xf32>
    %242 = arith.mulf %240, %215 : vector<1x32xf32>
    %243 = arith.addf %241, %242 : vector<1x32xf32>
    %244 = arith.mulf %238, %211 : vector<1x32xf32>
    %245 = arith.addf %244, %240 : vector<1x32xf32>
    %c0_95 = arith.constant 0 : index
    %c5 = arith.constant 5 : index
    %c0_96 = arith.constant 0 : index
    %246 = vector.load %arg15[%c0_95, %c5, %c0_96] : memref<1x8x32xf32, #tpu.memory_space<vmem>>, vector<1x1x32xf32>
    %247 = vector.shape_cast %246 : vector<1x1x32xf32> to vector<1x32xf32>
    %c0_97 = arith.constant 0 : index
    %c5_98 = arith.constant 5 : index
    %c0_99 = arith.constant 0 : index
    %248 = vector.load %arg16[%c0_97, %c5_98, %c0_99] : memref<1x8x32xf32, #tpu.memory_space<vmem>>, vector<1x1x32xf32>
    %249 = vector.shape_cast %248 : vector<1x1x32xf32> to vector<1x32xf32>
    %250 = arith.addf %72, %247 : vector<1x32xf32>
    %251 = arith.maximumf %236, %250 : vector<1x32xf32>
    %252 = arith.subf %236, %251 : vector<1x32xf32>
    %253 = math.exp %252 : vector<1x32xf32>
    %254 = arith.subf %250, %251 : vector<1x32xf32>
    %255 = math.exp %254 : vector<1x32xf32>
    %c0_100 = arith.constant 0 : index
    %c5_101 = arith.constant 5 : index
    %c0_102 = arith.constant 0 : index
    %256 = vector.load %arg17[%c0_100, %c5_101, %c0_102] : memref<1x8x32xf32, #tpu.memory_space<vmem>>, vector<1x1x32xf32>
    %257 = vector.shape_cast %256 : vector<1x1x32xf32> to vector<1x32xf32>
    %258 = arith.mulf %253, %243 : vector<1x32xf32>
    %259 = arith.mulf %255, %249 : vector<1x32xf32>
    %260 = arith.addf %258, %259 : vector<1x32xf32>
    %261 = arith.mulf %257, %260 : vector<1x32xf32>
    %262 = arith.mulf %253, %245 : vector<1x32xf32>
    %263 = arith.addf %262, %255 : vector<1x32xf32>
    %264 = tpu.reciprocal %263 {approx = true} : vector<1x32xf32> -> vector<1x32xf32>
    %265 = arith.mulf %261, %264 : vector<1x32xf32>
    %c0_103 = arith.constant 0 : index
    %c5_104 = arith.constant 5 : index
    %c0_105 = arith.constant 0 : index
    %266 = vector.load %arg18[%c0_103, %c5_104, %c0_105] : memref<1x8x32xf32, #tpu.memory_space<vmem>>, vector<1x1x32xf32>
    %267 = vector.shape_cast %266 : vector<1x1x32xf32> to vector<1x32xf32>
    %268 = vector.shape_cast %265 : vector<1x32xf32> to vector<1x1x32xf32>
    tpu.vector_store %arg18[%c0_103, %c5_104, %c0_105], %268 {strides = array<i32>} : memref<1x8x32xf32, #tpu.memory_space<vmem>>, vector<1x1x32xf32>,
    %269 = arith.addf %236, %71 : vector<1x32xf32>
    %270 = arith.maximumf %269, %247 : vector<1x32xf32>
    %271 = arith.subf %269, %270 : vector<1x32xf32>
    %272 = math.exp %271 : vector<1x32xf32>
    %273 = arith.subf %247, %270 : vector<1x32xf32>
    %274 = math.exp %273 : vector<1x32xf32>
    %275 = arith.mulf %272, %243 : vector<1x32xf32>
    %276 = arith.mulf %274, %249 : vector<1x32xf32>
    %277 = arith.addf %275, %276 : vector<1x32xf32>
    %278 = arith.mulf %272, %245 : vector<1x32xf32>
    %279 = arith.addf %278, %274 : vector<1x32xf32>
    %c0_106 = arith.constant 0 : index
    %c6 = arith.constant 6 : index
    %c0_107 = arith.constant 0 : index
    %280 = vector.load %arg15[%c0_106, %c6, %c0_107] : memref<1x8x32xf32, #tpu.memory_space<vmem>>, vector<1x1x32xf32>
    %281 = vector.shape_cast %280 : vector<1x1x32xf32> to vector<1x32xf32>
    %c0_108 = arith.constant 0 : index
    %c6_109 = arith.constant 6 : index
    %c0_110 = arith.constant 0 : index
    %282 = vector.load %arg16[%c0_108, %c6_109, %c0_110] : memref<1x8x32xf32, #tpu.memory_space<vmem>>, vector<1x1x32xf32>
    %283 = vector.shape_cast %282 : vector<1x1x32xf32> to vector<1x32xf32>
    %284 = arith.addf %72, %281 : vector<1x32xf32>
    %285 = arith.maximumf %270, %284 : vector<1x32xf32>
    %286 = arith.subf %270, %285 : vector<1x32xf32>
    %287 = math.exp %286 : vector<1x32xf32>
    %288 = arith.subf %284, %285 : vector<1x32xf32>
    %289 = math.exp %288 : vector<1x32xf32>
    %c0_111 = arith.constant 0 : index
    %c6_112 = arith.constant 6 : index
    %c0_113 = arith.constant 0 : index
    %290 = vector.load %arg17[%c0_111, %c6_112, %c0_113] : memref<1x8x32xf32, #tpu.memory_space<vmem>>, vector<1x1x32xf32>
    %291 = vector.shape_cast %290 : vector<1x1x32xf32> to vector<1x32xf32>
    %292 = arith.mulf %287, %277 : vector<1x32xf32>
    %293 = arith.mulf %289, %283 : vector<1x32xf32>
    %294 = arith.addf %292, %293 : vector<1x32xf32>
    %295 = arith.mulf %291, %294 : vector<1x32xf32>
    %296 = arith.mulf %287, %279 : vector<1x32xf32>
    %297 = arith.addf %296, %289 : vector<1x32xf32>
    %298 = tpu.reciprocal %297 {approx = true} : vector<1x32xf32> -> vector<1x32xf32>
    %299 = arith.mulf %295, %298 : vector<1x32xf32>
    %c0_114 = arith.constant 0 : index
    %c6_115 = arith.constant 6 : index
    %c0_116 = arith.constant 0 : index
    %300 = vector.load %arg18[%c0_114, %c6_115, %c0_116] : memref<1x8x32xf32, #tpu.memory_space<vmem>>, vector<1x1x32xf32>
    %301 = vector.shape_cast %300 : vector<1x1x32xf32> to vector<1x32xf32>
    %302 = vector.shape_cast %299 : vector<1x32xf32> to vector<1x1x32xf32>
    tpu.vector_store %arg18[%c0_114, %c6_115, %c0_116], %302 {strides = array<i32>} : memref<1x8x32xf32, #tpu.memory_space<vmem>>, vector<1x1x32xf32>,
    %303 = arith.addf %270, %71 : vector<1x32xf32>
    %304 = arith.maximumf %303, %281 : vector<1x32xf32>
    %305 = arith.subf %303, %304 : vector<1x32xf32>
    %306 = math.exp %305 : vector<1x32xf32>
    %307 = arith.subf %281, %304 : vector<1x32xf32>
    %308 = math.exp %307 : vector<1x32xf32>
    %309 = arith.mulf %306, %277 : vector<1x32xf32>
    %310 = arith.mulf %308, %283 : vector<1x32xf32>
    %311 = arith.addf %309, %310 : vector<1x32xf32>
    %312 = arith.mulf %306, %279 : vector<1x32xf32>
    %313 = arith.addf %312, %308 : vector<1x32xf32>
    %c0_117 = arith.constant 0 : index
    %c7 = arith.constant 7 : index
    %c0_118 = arith.constant 0 : index
    %314 = vector.load %arg15[%c0_117, %c7, %c0_118] : memref<1x8x32xf32, #tpu.memory_space<vmem>>, vector<1x1x32xf32>
    %315 = vector.shape_cast %314 : vector<1x1x32xf32> to vector<1x32xf32>
    %c0_119 = arith.constant 0 : index
    %c7_120 = arith.constant 7 : index
    %c0_121 = arith.constant 0 : index
    %316 = vector.load %arg16[%c0_119, %c7_120, %c0_121] : memref<1x8x32xf32, #tpu.memory_space<vmem>>, vector<1x1x32xf32>
    %317 = vector.shape_cast %316 : vector<1x1x32xf32> to vector<1x32xf32>
    %318 = arith.addf %72, %315 : vector<1x32xf32>
    %319 = arith.maximumf %304, %318 : vector<1x32xf32>
    %320 = arith.subf %304, %319 : vector<1x32xf32>
    %321 = math.exp %320 : vector<1x32xf32>
    %322 = arith.subf %318, %319 : vector<1x32xf32>
    %323 = math.exp %322 : vector<1x32xf32>
    %c0_122 = arith.constant 0 : index
    %c7_123 = arith.constant 7 : index
    %c0_124 = arith.constant 0 : index
    %324 = vector.load %arg17[%c0_122, %c7_123, %c0_124] : memref<1x8x32xf32, #tpu.memory_space<vmem>>, vector<1x1x32xf32>
    %325 = vector.shape_cast %324 : vector<1x1x32xf32> to vector<1x32xf32>
    %326 = arith.mulf %321, %311 : vector<1x32xf32>
    %327 = arith.mulf %323, %317 : vector<1x32xf32>
    %328 = arith.addf %326, %327 : vector<1x32xf32>
    %329 = arith.mulf %325, %328 : vector<1x32xf32>
    %330 = arith.mulf %321, %313 : vector<1x32xf32>
    %331 = arith.addf %330, %323 : vector<1x32xf32>
    %332 = tpu.reciprocal %331 {approx = true} : vector<1x32xf32> -> vector<1x32xf32>
    %333 = arith.mulf %329, %332 : vector<1x32xf32>
    %c0_125 = arith.constant 0 : index
    %c7_126 = arith.constant 7 : index
    %c0_127 = arith.constant 0 : index
    %334 = vector.load %arg18[%c0_125, %c7_126, %c0_127] : memref<1x8x32xf32, #tpu.memory_space<vmem>>, vector<1x1x32xf32>
    %335 = vector.shape_cast %334 : vector<1x1x32xf32> to vector<1x32xf32>
    %336 = vector.shape_cast %333 : vector<1x32xf32> to vector<1x1x32xf32>
    tpu.vector_store %arg18[%c0_125, %c7_126, %c0_127], %336 {strides = array<i32>} : memref<1x8x32xf32, #tpu.memory_space<vmem>>, vector<1x1x32xf32>,
    %c0_128 = arith.constant 0 : index
    %c0_129 = arith.constant 0 : index
    %c0_130 = arith.constant 0 : index
    %337 = vector.load %arg18[%c0_128, %c0_129, %c0_130] : memref<1x8x32xf32, #tpu.memory_space<vmem>>, vector<1x8x32xf32>
    %338 = vector.shape_cast %337 : vector<1x8x32xf32> to vector<8x32xf32>
    %339 = arith.truncf %338 : vector<8x32xf32> to vector<8x32xbf16>
    %c0_131 = arith.constant 0 : index
    %c0_132 = arith.constant 0 : index
    %340 = vector.load %arg8[%c0_131, %c0_132] : memref<32x32xbf16, #tpu.memory_space<vmem>>, vector<32x32xbf16>
    %cst_133 = arith.constant dense<0.000000e+00> : vector<8x32xf32>
    %341 = tpu.matmul %339, %340, %cst_133 {dimension_numbers = #tpu.dot_dimension_numbers<[1], [0], [0], [1], [0, 0, 1, 1], [], []>} : vector<8x32xbf16>, vector<32x32xbf16>, vector<8x32xf32> -> vector<8x32xf32>
    %342 = arith.addf %1, %341 : vector<8x32xf32>
    %cst_134 = arith.constant dense<0.000000e+00> : vector<8xf32>
    %343 = vector.multi_reduction <add>, %342, %cst_134 [1] : vector<8x32xf32> to vector<8xf32>
    %344 = vector.shape_cast %343 : vector<8xf32> to vector<8x1xf32>
    %cst_135 = arith.constant 3.200000e+01 : f32
    %345 = vector.broadcast %cst_135 : f32 to vector<8x1xf32>
    %346 = arith.divf %344, %345 : vector<8x1xf32>
    %347 = vector.broadcast %346 : vector<8x1xf32> to vector<8x32xf32>
    %348 = arith.subf %342, %347 : vector<8x32xf32>
    %349 = arith.mulf %348, %348 : vector<8x32xf32>
    %cst_136 = arith.constant dense<0.000000e+00> : vector<8xf32>
    %350 = vector.multi_reduction <add>, %349, %cst_136 [1] : vector<8x32xf32> to vector<8xf32>
    %351 = vector.shape_cast %350 : vector<8xf32> to vector<8x1xf32>
    %cst_137 = arith.constant 3.200000e+01 : f32
    %352 = vector.broadcast %cst_137 : f32 to vector<8x1xf32>
    %353 = arith.divf %351, %352 : vector<8x1xf32>
    %354 = vector.broadcast %346 : vector<8x1xf32> to vector<8x32xf32>
    %355 = arith.subf %342, %354 : vector<8x32xf32>
    %cst_138 = arith.constant 9.99999996E-13 : f32
    %356 = vector.broadcast %cst_138 : f32 to vector<8x1xf32>
    %357 = arith.addf %353, %356 : vector<8x1xf32>
    %358 = math.rsqrt %357 : vector<8x1xf32>
    %359 = vector.broadcast %358 : vector<8x1xf32> to vector<8x32xf32>
    %360 = arith.mulf %355, %359 : vector<8x32xf32>
    %c0_139 = arith.constant 0 : index
    %c0_140 = arith.constant 0 : index
    %361 = vector.load %arg9[%c0_139, %c0_140] : memref<1x32xf32, #tpu.memory_space<vmem>>, vector<1x32xf32>
    %362 = vector.broadcast %361 : vector<1x32xf32> to vector<8x32xf32>
    %363 = arith.mulf %360, %362 : vector<8x32xf32>
    %c0_141 = arith.constant 0 : index
    %c0_142 = arith.constant 0 : index
    %364 = vector.load %arg10[%c0_141, %c0_142] : memref<1x32xf32, #tpu.memory_space<vmem>>, vector<1x32xf32>
    %365 = vector.broadcast %364 : vector<1x32xf32> to vector<8x32xf32>
    %366 = arith.addf %363, %365 : vector<8x32xf32>
    %c1_i32_143 = arith.constant 1 : i32
    %367 = tpu.dynamic_rotate %366 by %c1_i32_143 dim 0 : vector<8x32xf32>, i32 -> vector<8x32xf32>
    %cst_144 = arith.constant 0.000000e+00 : f32
    %368 = vector.shape_cast %20 : vector<8x1xi1> to vector<8x1xi1>
    %369 = vector.broadcast %368 : vector<8x1xi1> to vector<8x32xi1>
    %370 = vector.broadcast %cst_144 : f32 to vector<8x32xf32>
    %371 = arith.select %369, %367, %370 : vector<8x32xi1>, vector<8x32xf32>
    %372 = arith.truncf %366 : vector<8x32xf32> to vector<8x32xbf16>
    %c0_145 = arith.constant 0 : index
    %c0_146 = arith.constant 0 : index
    %373 = vector.load %arg11[%c0_145, %c0_146] : memref<32x96xbf16, #tpu.memory_space<vmem>>, vector<32x96xbf16>
    %cst_147 = arith.constant dense<0.000000e+00> : vector<8x96xf32>
    %374 = tpu.matmul %372, %373, %cst_147 {dimension_numbers = #tpu.dot_dimension_numbers<[1], [0], [0], [1], [0, 0, 1, 1], [], []>} : vector<8x32xbf16>, vector<32x96xbf16>, vector<8x96xf32> -> vector<8x96xf32>
    %375 = arith.truncf %371 : vector<8x32xf32> to vector<8x32xbf16>
    %c0_148 = arith.constant 0 : index
    %c0_149 = arith.constant 0 : index
    %376 = vector.load %arg12[%c0_148, %c0_149] : memref<32x96xbf16, #tpu.memory_space<vmem>>, vector<32x96xbf16>
    %cst_150 = arith.constant dense<0.000000e+00> : vector<8x96xf32>
    %377 = tpu.matmul %375, %376, %cst_150 {dimension_numbers = #tpu.dot_dimension_numbers<[1], [0], [0], [1], [0, 0, 1, 1], [], []>} : vector<8x32xbf16>, vector<32x96xbf16>, vector<8x96xf32> -> vector<8x96xf32>
    %378 = arith.addf %374, %377 : vector<8x96xf32>
    %379 = vector.extract_strided_slice %378 {offsets = [0, 0], sizes = [8, 64], strides = [1, 1]} : vector<8x96xf32> to vector<8x64xf32>
    %cst_151 = arith.constant 0.000000e+00 : f32
    %380 = vector.broadcast %cst_151 : f32 to vector<8x64xf32>
    %381 = arith.maximumf %379, %380 : vector<8x64xf32>
    %382 = arith.mulf %381, %381 : vector<8x64xf32>
    %383 = vector.extract_strided_slice %378 {offsets = [0, 64], sizes = [8, 32], strides = [1, 1]} : vector<8x96xf32> to vector<8x32xf32>
    %384 = arith.negf %383 : vector<8x32xf32>
    %385 = math.exp %384 : vector<8x32xf32>
    %cst_152 = arith.constant 1.000000e+00 : f32
    %386 = vector.broadcast %cst_152 : f32 to vector<8x32xf32>
    %387 = arith.addf %386, %385 : vector<8x32xf32>
    %388 = arith.divf %386, %387 : vector<8x32xf32>
    %389 = arith.truncf %382 : vector<8x64xf32> to vector<8x64xbf16>
    %c0_153 = arith.constant 0 : index
    %c0_154 = arith.constant 0 : index
    %390 = vector.load %arg13[%c0_153, %c0_154] : memref<64x32xbf16, #tpu.memory_space<vmem>>, vector<64x32xbf16>
    %cst_155 = arith.constant dense<0.000000e+00> : vector<8x32xf32>
    %391 = tpu.matmul %389, %390, %cst_155 {dimension_numbers = #tpu.dot_dimension_numbers<[1], [0], [0], [1], [0, 0, 1, 1], [], []>} : vector<8x64xbf16>, vector<64x32xbf16>, vector<8x32xf32> -> vector<8x32xf32>
    %392 = arith.mulf %388, %391 : vector<8x32xf32>
    %393 = arith.addf %342, %392 : vector<8x32xf32>
    %394 = vector.shape_cast %393 : vector<8x32xf32> to vector<1x8x32xf32>
    %c0_156 = arith.constant 0 : index
    %c0_157 = arith.constant 0 : index
    %c0_158 = arith.constant 0 : index
    %395 = vector.load %arg14[%c0_156, %c0_157, %c0_158] : memref<1x8x32xf32, #tpu.memory_space<vmem>>, vector<1x8x32xf32>
    tpu.vector_store %arg14[%c0_156, %c0_157, %c0_158], %394 {strides = array<i32>} : memref<1x8x32xf32, #tpu.memory_space<vmem>>, vector<1x8x32xf32>,
    return
  }
  func.func @transform_0(%arg0: i32) -> (i32, i32, i32) {
    %c0_i32 = arith.constant 0 : i32
    %c0_i32_0 = arith.constant 0 : i32
    %c0_i32_1 = arith.constant 0 : i32
    return %arg0, %c0_i32, %c0_i32_0 : i32, i32, i32
  }
  func.func @transform_1(%arg0: i32) -> (i32, i32) {
    %c0_i32 = arith.constant 0 : i32
    %c0_i32_0 = arith.constant 0 : i32
    %c0_i32_1 = arith.constant 0 : i32
    return %c0_i32, %c0_i32_0 : i32, i32
  }
  func.func @transform_2(%arg0: i32) -> (i32, i32) {
    %c0_i32 = arith.constant 0 : i32
    %c0_i32_0 = arith.constant 0 : i32
    %c0_i32_1 = arith.constant 0 : i32
    return %c0_i32, %c0_i32_0 : i32, i32
  }
  func.func @transform_3(%arg0: i32) -> (i32, i32) {
    %c0_i32 = arith.constant 0 : i32
    %c0_i32_0 = arith.constant 0 : i32
    %c0_i32_1 = arith.constant 0 : i32
    return %c0_i32, %c0_i32_0 : i32, i32
  }
  func.func @transform_4(%arg0: i32) -> (i32, i32) {
    %c0_i32 = arith.constant 0 : i32
    %c0_i32_0 = arith.constant 0 : i32
    %c0_i32_1 = arith.constant 0 : i32
    return %c0_i32, %c0_i32_0 : i32, i32
  }
  func.func @transform_5(%arg0: i32) -> (i32, i32) {
    %c0_i32 = arith.constant 0 : i32
    %c0_i32_0 = arith.constant 0 : i32
    %c0_i32_1 = arith.constant 0 : i32
    return %c0_i32, %c0_i32_0 : i32, i32
  }
  func.func @transform_6(%arg0: i32) -> (i32, i32) {
    %c0_i32 = arith.constant 0 : i32
    %c0_i32_0 = arith.constant 0 : i32
    %c0_i32_1 = arith.constant 0 : i32
    return %c0_i32, %c0_i32_0 : i32, i32
  }
  func.func @transform_7(%arg0: i32) -> (i32, i32) {
    %c0_i32 = arith.constant 0 : i32
    %c0_i32_0 = arith.constant 0 : i32
    %c0_i32_1 = arith.constant 0 : i32
    return %c0_i32, %c0_i32_0 : i32, i32
  }
  func.func @transform_8(%arg0: i32) -> (i32, i32) {
    %c0_i32 = arith.constant 0 : i32
    %c0_i32_0 = arith.constant 0 : i32
    %c0_i32_1 = arith.constant 0 : i32
    return %c0_i32, %c0_i32_0 : i32, i32
  }
  func.func @transform_9(%arg0: i32) -> (i32, i32) {
    %c0_i32 = arith.constant 0 : i32
    %c0_i32_0 = arith.constant 0 : i32
    %c0_i32_1 = arith.constant 0 : i32
    return %c0_i32, %c0_i32_0 : i32, i32
  }
  func.func @transform_10(%arg0: i32) -> (i32, i32) {
    %c0_i32 = arith.constant 0 : i32
    %c0_i32_0 = arith.constant 0 : i32
    %c0_i32_1 = arith.constant 0 : i32
    return %c0_i32, %c0_i32_0 : i32, i32
  }
  func.func @transform_11(%arg0: i32) -> (i32, i32) {
    %c0_i32 = arith.constant 0 : i32
    %c0_i32_0 = arith.constant 0 : i32
    %c0_i32_1 = arith.constant 0 : i32
    return %c0_i32, %c0_i32_0 : i32, i32
  }
  func.func @transform_12(%arg0: i32) -> (i32, i32) {
    %c0_i32 = arith.constant 0 : i32
    %c0_i32_0 = arith.constant 0 : i32
    %c0_i32_1 = arith.constant 0 : i32
    return %c0_i32, %c0_i32_0 : i32, i32
  }
  func.func @transform_13(%arg0: i32) -> (i32, i32, i32) {
    %c0_i32 = arith.constant 0 : i32
    %c0_i32_0 = arith.constant 0 : i32
    %c0_i32_1 = arith.constant 0 : i32
    return %arg0, %c0_i32, %c0_i32_0 : i32, i32, i32
  }
}

</mosaic_0001>

<llo_original>
// kernel: tpu_custom_call.1
$region0: #{tpu_custom_call.1}
  #allocation0 [shape = 'u32[]', space=smem, size = 0x4, offset = 0x4, fixed_abs, tag = 'smem constant byte address 0x4 - core index']
  #allocation1 [shape = 'u32[144,128]{1,0:T(1,128)}', space=vmem, size = 0x12000, scoped, tag = 'internal scratch']
  #allocation2 [shape = 'f32[1,8,32]{2,1,0:T(8,128)}', space=vmem, size = 0x1000, scoped, tag = 'scratch operand']
  #allocation3 [shape = 'f32[1,8,32]{2,1,0:T(8,128)}', space=vmem, size = 0x1000, scoped, tag = 'scratch operand']
  #allocation4 [shape = 'f32[1,8,32]{2,1,0:T(8,128)}', space=vmem, size = 0x1000, scoped, tag = 'scratch operand']
  #allocation5 [shape = 'f32[1,8,32]{2,1,0:T(8,128)}', space=vmem, size = 0x1000, scoped, tag = 'scratch operand']
  %s0 = inlined_call_operand.vmem [shape: f32[2,8,32], index: 0, kind: input, shape index: {}]
  %s1 = inlined_call_operand.hbm [shape: f32[1,32], index: 1, kind: input, shape index: {}]
  %s2 = inlined_call_operand.hbm [shape: f32[1,32], index: 2, kind: input, shape index: {}]
  %s3 = inlined_call_operand.hbm [shape: f32[1,32], index: 3, kind: input, shape index: {}]
  %s4 = inlined_call_operand.hbm [shape: f32[1,32], index: 4, kind: input, shape index: {}]
  %s5 = inlined_call_operand.vmem [shape: bf16[32,96], index: 5, kind: input, shape index: {}]
  %s6 = inlined_call_operand.vmem [shape: bf16[32,96], index: 6, kind: input, shape index: {}]
  %s7 = inlined_call_operand.hbm [shape: bf16[32,32], index: 7, kind: input, shape index: {}]
  %s8 = inlined_call_operand.hbm [shape: f32[1,32], index: 8, kind: input, shape index: {}]
  %s9 = inlined_call_operand.hbm [shape: f32[1,32], index: 9, kind: input, shape index: {}]
  %s10 = inlined_call_operand.vmem [shape: bf16[32,96], index: 10, kind: input, shape index: {}]
  %s11 = inlined_call_operand.hbm [shape: bf16[32,96], index: 11, kind: input, shape index: {}]
  %s12 = inlined_call_operand.vmem [shape: bf16[64,32], index: 12, kind: input, shape index: {}]
  %s13 = inlined_call_operand.hbm [shape: f32[2,8,32], index: 13, kind: output, shape index: {}]
  %s14 = sld [smem:[#allocation0]]
  $region117: #{tpu_custom_call.1} parent=0
    _
  %s16 = ssub.s32 1, %s14
  %s17 = scalar_select 0, %s16, %s14
  $region1: #{tpu_custom_call.1} parent=0
    #allocation6 [shape = 'u8[512]{0}', space=vmem, size = 0x400, scoped, tag = 'input window, operand 1, single buffered']
    #allocation7 [shape = 's32[2]{0}', space=sflag, size = 0x8, scoped, tag = 'scoped memory for tpu_custom_call.1']
    #allocation8 [shape = 's32[2]{0}', space=sflag, size = 0x8, scoped, tag = 'scoped memory for tpu_custom_call.1']
    #allocation9 [shape = 'u8[512]{0}', space=vmem, size = 0x400, scoped, tag = 'input window, operand 2, single buffered']
    #allocation10 [shape = 's32[1]{0}', space=sflag, size = 0x4, scoped, tag = 'scoped memory for tpu_custom_call.1']
    #allocation11 [shape = 'u8[512]{0}', space=vmem, size = 0x400, scoped, tag = 'input window, operand 3, single buffered']
    #allocation12 [shape = 'u8[512]{0}', space=vmem, size = 0x400, scoped, tag = 'input window, operand 4, single buffered']
    #allocation13 [shape = 's32[1]{0}', space=sflag, size = 0x4, scoped, tag = 'scoped memory for tpu_custom_call.1']
    #allocation14 [shape = 'u8[8192]{0}', space=vmem, size = 0x2000, scoped, tag = 'input window, operand 7, single buffered']
    #allocation15 [shape = 'u8[512]{0}', space=vmem, size = 0x400, scoped, tag = 'input window, operand 8, single buffered']
    #allocation16 [shape = 's32[1]{0}', space=sflag, size = 0x4, scoped, tag = 'scoped memory for tpu_custom_call.1']
    #allocation17 [shape = 'u8[512]{0}', space=vmem, size = 0x400, scoped, tag = 'input window, operand 9, single buffered']
    #allocation18 [shape = 'u8[8192]{0}', space=vmem, size = 0x2000, scoped, tag = 'input window, operand 11, single buffered']
    #allocation19 [shape = 's32[1]{0}', space=sflag, size = 0x4, scoped, tag = 'scoped memory for tpu_custom_call.1']
    #allocation20 [shape = 'u8[8192]{0}', space=vmem, size = 0x2000, scoped, tag = 'output window, operand 0']
    %18 = vsyncpa [#allocation7], 0
    %19 = vsyncpa [#allocation10], 0
    %20 = vsyncpa [#allocation13], 0
    %21 = vsyncpa [#allocation16], 0
    %22 = vsyncpa [#allocation19], 0
    %23 = vsyncpa [#allocation8], 0
    %s24 = scalar_lea.sflag [#allocation8], 1
    %25 = vsyncpa %s24, 0
    loop: start=0, step=1, limit=4
    $region2: #{tpu_custom_call.1} parent=1 // loop_pre_header
      _
    $region3: #{tpu_custom_call.1} parent=1 // loop_header
      %s27 = sphi 0, %s31
      %p28 = scmp.ge.s32.totalorder %s27, 4
      %s37 = sphi 0, %s39
      %s40 = sphi 0, %s37
      %s41 = sphi 0, %s40
      %s57 = sphi 0, %s41
      %s61 = sphi 0, %s61
      %s63 = sphi 0, %s61
      %s64 = sphi 0, %s63
      %s78 = sphi 0, %s64
      %s82 = sphi 0, %s82
      %s84 = sphi 0, %s82
      %s85 = sphi 0, %s84
      %s99 = sphi 0, %s85
      %s103 = sphi 0, %s103
      %s105 = sphi 0, %s103
      %s106 = sphi 0, %s105
      %s120 = sphi 0, %s106
      %s124 = sphi 0, %s124
      %s126 = sphi 0, %s124
      %s127 = sphi 0, %s126
      %s141 = sphi 0, %s127
      %s145 = sphi 0, %s145
      %s147 = sphi 0, %s145
      %s148 = sphi 0, %s147
      %s162 = sphi 0, %s148
      %s166 = sphi 0, %s166
      %s168 = sphi 0, %s166
      %s169 = sphi 0, %s168
      %s183 = sphi 0, %s169
      %s187 = sphi 0, %s187
      %s189 = sphi 0, %s187
      %s190 = sphi 0, %s189
      %s204 = sphi 0, %s190
      %s208 = sphi 0, %s208
      %s210 = sphi 0, %s208
      %s211 = sphi 0, %s210
      %s225 = sphi 0, %s211
      %s229 = sphi 0, %s229
      %s231 = sphi 0, %s229
      %s232 = sphi 0, %s231
      %s246 = sphi 0, %s232
      %s250 = sphi 0, %s250
      %s252 = sphi 0, %s250
      %s253 = sphi 0, %s252
      %s267 = sphi 0, %s253
      %s271 = sphi 0, %s271
      %s273 = sphi 0, %s271
      %s274 = sphi 0, %s273
      %s288 = sphi 0, %s274
      %s292 = sphi 0, %s292
      %s294 = sphi 0, %s292
      %s295 = sphi 0, %s294
      %s309 = sphi 0, %s295
      %s315 = sphi 0, %s317
      %s318 = sphi 0, %s315
      %s319 = sphi 0, %s318
      %s335 = sphi 0, %s319
    $region4: #{tpu_custom_call.1} parent=1 // loop_header_branch
      %30 = sbr.rel (%p28) target = $region8
    $region5: #{tpu_custom_call.1} parent=1 // loop_body
      %s32 = ssub.s32 %s27, 1
      %s33 = ssub.s32 %s27, 2
      %s34 = sadd.s32 %s27, 1
      %s35 = ssub.s32 %s27, %s34
      %p36 = scmp.eq.s32.totalorder %s35, 0
      %s38 = sadd.s32 %s37, 1
      %s39 = scalar_select %p36, %s37, %s38
      %p42 = pneg %p36
      %p43 = scmp.eq.s32.totalorder %s27, 1
      %p44 = por %p42, %p43
      %p45 = scmp.ne.s32.totalorder %s37, %s40
      %p46 = scmp.eq.s32.totalorder %s27, 0
      %p47 = por %p45, %p46
      %p48 = scmp.ne.s32.totalorder %s37, %s40
      %p49 = scmp.eq.s32.totalorder %s32, 1
      %p50 = por %p48, %p49
      %p51 = scmp.ne.s32.totalorder %s40, %s41
      %p52 = scmp.eq.s32.totalorder %s32, 0
      %p53 = por %p51, %p52
      %p54 = scmp.ne.s32.totalorder %s40, %s41
      %p55 = scmp.eq.s32.totalorder %s33, 1
      %p56 = por %p54, %p55
      %p58 = scmp.ne.s32.totalorder %s41, %s57
      %p59 = scmp.eq.s32.totalorder %s33, 0
      %p60 = por %p58, %p59
      %s62 = sadd.s32 %s61, 1
      %p65 = scmp.eq.s32.totalorder %s27, 1
      %p66 = scmp.ne.s32.totalorder %s61, %s63
      %p67 = scmp.eq.s32.totalorder %s27, 0
      %p68 = por %p66, %p67
      %p69 = scmp.ne.s32.totalorder %s61, %s63
      %p70 = scmp.eq.s32.totalorder %s32, 1
      %p71 = por %p69, %p70
      %p72 = scmp.ne.s32.totalorder %s63, %s64
      %p73 = scmp.eq.s32.totalorder %s32, 0
      %p74 = por %p72, %p73
      %p75 = scmp.ne.s32.totalorder %s63, %s64
      %p76 = scmp.eq.s32.totalorder %s33, 1
      %p77 = por %p75, %p76
      %p79 = scmp.ne.s32.totalorder %s64, %s78
      %p80 = scmp.eq.s32.totalorder %s33, 0
      %p81 = por %p79, %p80
      %s83 = sadd.s32 %s82, 1
      %p86 = scmp.eq.s32.totalorder %s27, 1
      %p87 = scmp.ne.s32.totalorder %s82, %s84
      %p88 = scmp.eq.s32.totalorder %s27, 0
      %p89 = por %p87, %p88
      %p90 = scmp.ne.s32.totalorder %s82, %s84
      %p91 = scmp.eq.s32.totalorder %s32, 1
      %p92 = por %p90, %p91
      %p93 = scmp.ne.s32.totalorder %s84, %s85
      %p94 = scmp.eq.s32.totalorder %s32, 0
      %p95 = por %p93, %p94
      %p96 = scmp.ne.s32.totalorder %s84, %s85
      %p97 = scmp.eq.s32.totalorder %s33, 1
      %p98 = por %p96, %p97
      %p100 = scmp.ne.s32.totalorder %s85, %s99
      %p101 = scmp.eq.s32.totalorder %s33, 0
      %p102 = por %p100, %p101
      %s104 = sadd.s32 %s103, 1
      %p107 = scmp.eq.s32.totalorder %s27, 1
      %p108 = scmp.ne.s32.totalorder %s103, %s105
      %p109 = scmp.eq.s32.totalorder %s27, 0
      %p110 = por %p108, %p109
      %p111 = scmp.ne.s32.totalorder %s103, %s105
      %p112 = scmp.eq.s32.totalorder %s32, 1
      %p113 = por %p111, %p112
      %p114 = scmp.ne.s32.totalorder %s105, %s106
      %p115 = scmp.eq.s32.totalorder %s32, 0
      %p116 = por %p114, %p115
      %p117 = scmp.ne.s32.totalorder %s105, %s106
      %p118 = scmp.eq.s32.totalorder %s33, 1
      %p119 = por %p117, %p118
      %p121 = scmp.ne.s32.totalorder %s106, %s120
      %p122 = scmp.eq.s32.totalorder %s33, 0
      %p123 = por %p121, %p122
      %s125 = sadd.s32 %s124, 1
      %p128 = scmp.eq.s32.totalorder %s27, 1
      %p129 = scmp.ne.s32.totalorder %s124, %s126
      %p130 = scmp.eq.s32.totalorder %s27, 0
      %p131 = por %p129, %p130
      %p132 = scmp.ne.s32.totalorder %s124, %s126
      %p133 = scmp.eq.s32.totalorder %s32, 1
      %p134 = por %p132, %p133
      %p135 = scmp.ne.s32.totalorder %s126, %s127
      %p136 = scmp.eq.s32.totalorder %s32, 0
      %p137 = por %p135, %p136
      %p138 = scmp.ne.s32.totalorder %s126, %s127
      %p139 = scmp.eq.s32.totalorder %s33, 1
      %p140 = por %p138, %p139
      %p142 = scmp.ne.s32.totalorder %s127, %s141
      %p143 = scmp.eq.s32.totalorder %s33, 0
      %p144 = por %p142, %p143
      %s146 = sadd.s32 %s145, 1
      %p149 = scmp.eq.s32.totalorder %s27, 1
      %p150 = scmp.ne.s32.totalorder %s145, %s147
      %p151 = scmp.eq.s32.totalorder %s27, 0
      %p152 = por %p150, %p151
      %p153 = scmp.ne.s32.totalorder %s145, %s147
      %p154 = scmp.eq.s32.totalorder %s32, 1
      %p155 = por %p153, %p154
      %p156 = scmp.ne.s32.totalorder %s147, %s148
      %p157 = scmp.eq.s32.totalorder %s32, 0
      %p158 = por %p156, %p157
      %p159 = scmp.ne.s32.totalorder %s147, %s148
      %p160 = scmp.eq.s32.totalorder %s33, 1
      %p161 = por %p159, %p160
      %p163 = scmp.ne.s32.totalorder %s148, %s162
      %p164 = scmp.eq.s32.totalorder %s33, 0
      %p165 = por %p163, %p164
      %s167 = sadd.s32 %s166, 1
      %p170 = scmp.eq.s32.totalorder %s27, 1
      %p171 = scmp.ne.s32.totalorder %s166, %s168
      %p172 = scmp.eq.s32.totalorder %s27, 0
      %p173 = por %p171, %p172
      %p174 = scmp.ne.s32.totalorder %s166, %s168
      %p175 = scmp.eq.s32.totalorder %s32, 1
      %p176 = por %p174, %p175
      %p177 = scmp.ne.s32.totalorder %s168, %s169
      %p178 = scmp.eq.s32.totalorder %s32, 0
      %p179 = por %p177, %p178
      %p180 = scmp.ne.s32.totalorder %s168, %s169
      %p181 = scmp.eq.s32.totalorder %s33, 1
      %p182 = por %p180, %p181
      %p184 = scmp.ne.s32.totalorder %s169, %s183
      %p185 = scmp.eq.s32.totalorder %s33, 0
      %p186 = por %p184, %p185
      %s188 = sadd.s32 %s187, 1
      %p191 = scmp.eq.s32.totalorder %s27, 1
      %p192 = scmp.ne.s32.totalorder %s187, %s189
      %p193 = scmp.eq.s32.totalorder %s27, 0
      %p194 = por %p192, %p193
      %p195 = scmp.ne.s32.totalorder %s187, %s189
      %p196 = scmp.eq.s32.totalorder %s32, 1
      %p197 = por %p195, %p196
      %p198 = scmp.ne.s32.totalorder %s189, %s190
      %p199 = scmp.eq.s32.totalorder %s32, 0
      %p200 = por %p198, %p199
      %p201 = scmp.ne.s32.totalorder %s189, %s190
      %p202 = scmp.eq.s32.totalorder %s33, 1
      %p203 = por %p201, %p202
      %p205 = scmp.ne.s32.totalorder %s190, %s204
      %p206 = scmp.eq.s32.totalorder %s33, 0
      %p207 = por %p205, %p206
      %s209 = sadd.s32 %s208, 1
      %p212 = scmp.eq.s32.totalorder %s27, 1
      %p213 = scmp.ne.s32.totalorder %s208, %s210
      %p214 = scmp.eq.s32.totalorder %s27, 0
      %p215 = por %p213, %p214
      %p216 = scmp.ne.s32.totalorder %s208, %s210
      %p217 = scmp.eq.s32.totalorder %s32, 1
      %p218 = por %p216, %p217
      %p219 = scmp.ne.s32.totalorder %s210, %s211
      %p220 = scmp.eq.s32.totalorder %s32, 0
      %p221 = por %p219, %p220
      %p222 = scmp.ne.s32.totalorder %s210, %s211
      %p223 = scmp.eq.s32.totalorder %s33, 1
      %p224 = por %p222, %p223
      %p226 = scmp.ne.s32.totalorder %s211, %s225
      %p227 = scmp.eq.s32.totalorder %s33, 0
      %p228 = por %p226, %p227
      %s230 = sadd.s32 %s229, 1
      %p233 = scmp.eq.s32.totalorder %s27, 1
      %p234 = scmp.ne.s32.totalorder %s229, %s231
      %p235 = scmp.eq.s32.totalorder %s27, 0
      %p236 = por %p234, %p235
      %p237 = scmp.ne.s32.totalorder %s229, %s231
      %p238 = scmp.eq.s32.totalorder %s32, 1
      %p239 = por %p237, %p238
      %p240 = scmp.ne.s32.totalorder %s231, %s232
      %p241 = scmp.eq.s32.totalorder %s32, 0
      %p242 = por %p240, %p241
      %p243 = scmp.ne.s32.totalorder %s231, %s232
      %p244 = scmp.eq.s32.totalorder %s33, 1
      %p245 = por %p243, %p244
      %p247 = scmp.ne.s32.totalorder %s232, %s246
      %p248 = scmp.eq.s32.totalorder %s33, 0
      %p249 = por %p247, %p248
      %s251 = sadd.s32 %s250, 1
      %p254 = scmp.eq.s32.totalorder %s27, 1
      %p255 = scmp.ne.s32.totalorder %s250, %s252
      %p256 = scmp.eq.s32.totalorder %s27, 0
      %p257 = por %p255, %p256
      %p258 = scmp.ne.s32.totalorder %s250, %s252
      %p259 = scmp.eq.s32.totalorder %s32, 1
      %p260 = por %p258, %p259
      %p261 = scmp.ne.s32.totalorder %s252, %s253
      %p262 = scmp.eq.s32.totalorder %s32, 0
      %p263 = por %p261, %p262
      %p264 = scmp.ne.s32.totalorder %s252, %s253
      %p265 = scmp.eq.s32.totalorder %s33, 1
      %p266 = por %p264, %p265
      %p268 = scmp.ne.s32.totalorder %s253, %s267
      %p269 = scmp.eq.s32.totalorder %s33, 0
      %p270 = por %p268, %p269
      %s272 = sadd.s32 %s271, 1
      %p275 = scmp.eq.s32.totalorder %s27, 1
      %p276 = scmp.ne.s32.totalorder %s271, %s273
      %p277 = scmp.eq.s32.totalorder %s27, 0
      %p278 = por %p276, %p277
      %p279 = scmp.ne.s32.totalorder %s271, %s273
      %p280 = scmp.eq.s32.totalorder %s32, 1
      %p281 = por %p279, %p280
      %p282 = scmp.ne.s32.totalorder %s273, %s274
      %p283 = scmp.eq.s32.totalorder %s32, 0
      %p284 = por %p282, %p283
      %p285 = scmp.ne.s32.totalorder %s273, %s274
      %p286 = scmp.eq.s32.totalorder %s33, 1
      %p287 = por %p285, %p286
      %p289 = scmp.ne.s32.totalorder %s274, %s288
      %p290 = scmp.eq.s32.totalorder %s33, 0
      %p291 = por %p289, %p290
      %s293 = sadd.s32 %s292, 1
      %p296 = scmp.eq.s32.totalorder %s27, 1
      %p297 = scmp.ne.s32.totalorder %s292, %s294
      %p298 = scmp.eq.s32.totalorder %s27, 0
      %p299 = por %p297, %p298
      %p300 = scmp.ne.s32.totalorder %s292, %s294
      %p301 = scmp.eq.s32.totalorder %s32, 1
      %p302 = por %p300, %p301
      %p303 = scmp.ne.s32.totalorder %s294, %s295
      %p304 = scmp.eq.s32.totalorder %s32, 0
      %p305 = por %p303, %p304
      %p306 = scmp.ne.s32.totalorder %s294, %s295
      %p307 = scmp.eq.s32.totalorder %s33, 1
      %p308 = por %p306, %p307
      %p310 = scmp.ne.s32.totalorder %s295, %s309
      %p311 = scmp.eq.s32.totalorder %s33, 0
      %p312 = por %p310, %p311
      %s313 = ssub.s32 %s27, %s34
      %p314 = scmp.eq.s32.totalorder %s313, 0
      %s316 = sadd.s32 %s315, 1
      %s317 = scalar_select %p314, %s315, %s316
      %p320 = pneg %p314
      %p321 = scmp.eq.s32.totalorder %s27, 1
      %p322 = por %p320, %p321
      %p323 = scmp.ne.s32.totalorder %s315, %s318
      %p324 = scmp.eq.s32.totalorder %s27, 0
      %p325 = por %p323, %p324
      %p326 = scmp.ne.s32.totalorder %s315, %s318
      %p327 = scmp.eq.s32.totalorder %s32, 1
      %p328 = por %p326, %p327
      %p329 = scmp.ne.s32.totalorder %s318, %s319
      %p330 = scmp.eq.s32.totalorder %s32, 0
      %p331 = por %p329, %p330
      %p332 = scmp.ne.s32.totalorder %s318, %s319
      %p333 = scmp.eq.s32.totalorder %s33, 1
      %p334 = por %p332, %p333
      %p336 = scmp.ne.s32.totalorder %s319, %s335
      %p337 = scmp.eq.s32.totalorder %s33, 0
      %p338 = por %p336, %p337
      %p339 = scmp.le.s32.totalorder 1, %s27
      %p340 = scmp.lt.s32.totalorder %s27, 3
      %p341 = pnand %p339, %p340
      %p342 = pneg %p341
      // Predicated region
      $region9: #{tpu_custom_call.1} parent=5 // pred_check
        _
      $region10: #{tpu_custom_call.1} parent=5 // pred_check_branch
        %344 = sbr.rel (%p341) target = $region12
      $region11: #{tpu_custom_call.1} parent=5 // pred_region
        %s345 = ssub.s32 %s27, 1
        // Predicated region
        $region13: #{tpu_custom_call.1} parent=11 // pred_check
          %p346 = pneg %p74
        $region14: #{tpu_custom_call.1} parent=11 // pred_check_branch
          %348 = sbr.rel (%p346) target = $region16
        $region15: #{tpu_custom_call.1} parent=11 // pred_region
          %s350 = ssub.s32 16, 16
          %351 = vsyncadd [#allocation7], %s350
          %s353 = sshll.u32 [#allocation6], 4
          %s354 = int_to_ptr.vmem [resolvable:$true] %s353
          %356 = dma.hbm_to_vmem [thread:$0]  %s1, 16, %s354, [#allocation7]
        $region16: #{tpu_custom_call.1} parent=11 // pred_fallthru
          _
        // Predicated region
        $region17: #{tpu_custom_call.1} parent=11 // pred_check
          %p357 = pneg %p95
        $region18: #{tpu_custom_call.1} parent=11 // pred_check_branch
          %359 = sbr.rel (%p357) target = $region20
        $region19: #{tpu_custom_call.1} parent=11 // pred_region
          %s361 = ssub.s32 16, 16
          %362 = vsyncadd [#allocation10], %s361
          %s364 = sshll.u32 [#allocation9], 4
          %s365 = int_to_ptr.vmem [resolvable:$true] %s364
          %367 = dma.hbm_to_vmem [thread:$0]  %s2, 16, %s365, [#allocation10]
        $region20: #{tpu_custom_call.1} parent=11 // pred_fallthru
          _
        // Predicated region
        $region21: #{tpu_custom_call.1} parent=11 // pred_check
          %p368 = pneg %p116
        $region22: #{tpu_custom_call.1} parent=11 // pred_check_branch
          %370 = sbr.rel (%p368) target = $region24
        $region23: #{tpu_custom_call.1} parent=11 // pred_region
          %s372 = ssub.s32 16, 16
          %373 = vsyncadd [#allocation10], %s372
          %s375 = sshll.u32 [#allocation11], 4
          %s376 = int_to_ptr.vmem [resolvable:$true] %s375
          %378 = dma.hbm_to_vmem [thread:$0]  %s3, 16, %s376, [#allocation10]
        $region24: #{tpu_custom_call.1} parent=11 // pred_fallthru
          _
        // Predicated region
        $region25: #{tpu_custom_call.1} parent=11 // pred_check
          %p379 = pneg %p137
        $region26: #{tpu_custom_call.1} parent=11 // pred_check_branch
          %381 = sbr.rel (%p379) target = $region28
        $region27: #{tpu_custom_call.1} parent=11 // pred_region
          %s383 = ssub.s32 16, 16
          %384 = vsyncadd [#allocation13], %s383
          %s386 = sshll.u32 [#allocation12], 4
          %s387 = int_to_ptr.vmem [resolvable:$true] %s386
          %389 = dma.hbm_to_vmem [thread:$0]  %s4, 16, %s387, [#allocation13]
        $region28: #{tpu_custom_call.1} parent=11 // pred_fallthru
          _
        // Predicated region
        $region29: #{tpu_custom_call.1} parent=11 // pred_check
          %p390 = pneg %p158
        $region30: #{tpu_custom_call.1} parent=11 // pred_check_branch
          %392 = sbr.rel (%p390) target = $region32
        $region31: #{tpu_custom_call.1} parent=11 // pred_region
          _
        $region32: #{tpu_custom_call.1} parent=11 // pred_fallthru
          _
        // Predicated region
        $region33: #{tpu_custom_call.1} parent=11 // pred_check
          %p393 = pneg %p179
        $region34: #{tpu_custom_call.1} parent=11 // pred_check_branch
          %395 = sbr.rel (%p393) target = $region36
        $region35: #{tpu_custom_call.1} parent=11 // pred_region
          _
        $region36: #{tpu_custom_call.1} parent=11 // pred_fallthru
          _
        // Predicated region
        $region37: #{tpu_custom_call.1} parent=11 // pred_check
          %p396 = pneg %p200
        $region38: #{tpu_custom_call.1} parent=11 // pred_check_branch
          %398 = sbr.rel (%p396) target = $region40
        $region39: #{tpu_custom_call.1} parent=11 // pred_region
          %s400 = ssub.s32 256, 256
          %401 = vsyncadd [#allocation13], %s400
          %s402 = sshll.u32 [#allocation14], 4
          %s403 = int_to_ptr.vmem [resolvable:$true] %s402
          %408 = dma.hbm_to_vmem [thread:$0]  %s7, 256, %s403, [#allocation13], 64, 64, 4
        $region40: #{tpu_custom_call.1} parent=11 // pred_fallthru
          _
        // Predicated region
        $region41: #{tpu_custom_call.1} parent=11 // pred_check
          %p409 = pneg %p221
        $region42: #{tpu_custom_call.1} parent=11 // pred_check_branch
          %411 = sbr.rel (%p409) target = $region44
        $region43: #{tpu_custom_call.1} parent=11 // pred_region
          %s413 = ssub.s32 16, 16
          %414 = vsyncadd [#allocation16], %s413
          %s416 = sshll.u32 [#allocation15], 4
          %s417 = int_to_ptr.vmem [resolvable:$true] %s416
          %419 = dma.hbm_to_vmem [thread:$0]  %s8, 16, %s417, [#allocation16]
        $region44: #{tpu_custom_call.1} parent=11 // pred_fallthru
          _
        // Predicated region
        $region45: #{tpu_custom_call.1} parent=11 // pred_check
          %p420 = pneg %p242
        $region46: #{tpu_custom_call.1} parent=11 // pred_check_branch
          %422 = sbr.rel (%p420) target = $region48
        $region47: #{tpu_custom_call.1} parent=11 // pred_region
          %s424 = ssub.s32 16, 16
          %425 = vsyncadd [#allocation16], %s424
          %s427 = sshll.u32 [#allocation17], 4
          %s428 = int_to_ptr.vmem [resolvable:$true] %s427
          %430 = dma.hbm_to_vmem [thread:$0]  %s9, 16, %s428, [#allocation16]
        $region48: #{tpu_custom_call.1} parent=11 // pred_fallthru
          _
        // Predicated region
        $region49: #{tpu_custom_call.1} parent=11 // pred_check
          %p431 = pneg %p263
        $region50: #{tpu_custom_call.1} parent=11 // pred_check_branch
          %433 = sbr.rel (%p431) target = $region52
        $region51: #{tpu_custom_call.1} parent=11 // pred_region
          _
        $region52: #{tpu_custom_call.1} parent=11 // pred_fallthru
          _
        // Predicated region
        $region53: #{tpu_custom_call.1} parent=11 // pred_check
          %p434 = pneg %p284
        $region54: #{tpu_custom_call.1} parent=11 // pred_check_branch
          %436 = sbr.rel (%p434) target = $region56
        $region55: #{tpu_custom_call.1} parent=11 // pred_region
          %s438 = ssub.s32 256, 256
          %439 = vsyncadd [#allocation19], %s438
          %s440 = sshll.u32 [#allocation18], 4
          %s441 = int_to_ptr.vmem [resolvable:$true] %s440
          %446 = dma.hbm_to_vmem [thread:$0]  %s11, 256, %s441, [#allocation19], 64, 64, 4
        $region56: #{tpu_custom_call.1} parent=11 // pred_fallthru
          _
        // Predicated region
        $region57: #{tpu_custom_call.1} parent=11 // pred_check
          %p447 = pneg %p305
        $region58: #{tpu_custom_call.1} parent=11 // pred_check_branch
          %449 = sbr.rel (%p447) target = $region60
        $region59: #{tpu_custom_call.1} parent=11 // pred_region
          _
        $region60: #{tpu_custom_call.1} parent=11 // pred_fallthru
          _
      $region12: #{tpu_custom_call.1} parent=5 // pred_fallthru
        _
      %p450 = scmp.lt.s32.totalorder %s27, 2
      // Predicated region
      $region61: #{tpu_custom_call.1} parent=5 // pred_check
        %p451 = pneg %p450
      $region62: #{tpu_custom_call.1} parent=5 // pred_check_branch
        %453 = sbr.rel (%p451) target = $region64
      $region63: #{tpu_custom_call.1} parent=5 // pred_region
        // Predicated region
        $region65: #{tpu_custom_call.1} parent=63 // pred_check
          %p454 = pneg %p47
        $region66: #{tpu_custom_call.1} parent=63 // pred_check_branch
          %456 = sbr.rel (%p454) target = $region68
        $region67: #{tpu_custom_call.1} parent=63 // pred_region
          %p457 = scmp.lt.s32.totalorder %s27, 1
          %s458 = scalar_select %p457, %s27, 1
          %s459 = smul.addr %s458, 8
          %s460 = scalar_lea.vmem %s0, %s459
        $region68: #{tpu_custom_call.1} parent=63 // pred_fallthru
          _
      $region64: #{tpu_custom_call.1} parent=5 // pred_fallthru
        _
      %p461 = scmp.le.s32.totalorder 1, %s27
      %p462 = scmp.lt.s32.totalorder %s27, 3
      %p463 = pnand %p461, %p462
      %p464 = pneg %p463
      // Predicated region
      $region69: #{tpu_custom_call.1} parent=5 // pred_check
        _
      $region70: #{tpu_custom_call.1} parent=5 // pred_check_branch
        %466 = sbr.rel (%p463) target = $region72
      $region71: #{tpu_custom_call.1} parent=5 // pred_region
        %s467 = ssub.s32 %s27, 1
        // Predicated region
        $region73: #{tpu_custom_call.1} parent=71 // pred_check
          %p468 = pneg %p74
        $region74: #{tpu_custom_call.1} parent=71 // pred_check_branch
          %470 = sbr.rel (%p468) target = $region76
        $region75: #{tpu_custom_call.1} parent=71 // pred_region
          %471 = dma.done [#allocation7], 16
        $region76: #{tpu_custom_call.1} parent=71 // pred_fallthru
          _
        // Predicated region
        $region77: #{tpu_custom_call.1} parent=71 // pred_check
          %p472 = pneg %p95
        $region78: #{tpu_custom_call.1} parent=71 // pred_check_branch
          %474 = sbr.rel (%p472) target = $region80
        $region79: #{tpu_custom_call.1} parent=71 // pred_region
          %475 = dma.done [#allocation10], 16
        $region80: #{tpu_custom_call.1} parent=71 // pred_fallthru
          _
        // Predicated region
        $region81: #{tpu_custom_call.1} parent=71 // pred_check
          %p476 = pneg %p116
        $region82: #{tpu_custom_call.1} parent=71 // pred_check_branch
          %478 = sbr.rel (%p476) target = $region84
        $region83: #{tpu_custom_call.1} parent=71 // pred_region
          %479 = dma.done [#allocation10], 16
        $region84: #{tpu_custom_call.1} parent=71 // pred_fallthru
          _
        // Predicated region
        $region85: #{tpu_custom_call.1} parent=71 // pred_check
          %p480 = pneg %p137
        $region86: #{tpu_custom_call.1} parent=71 // pred_check_branch
          %482 = sbr.rel (%p480) target = $region88
        $region87: #{tpu_custom_call.1} parent=71 // pred_region
          %483 = dma.done [#allocation13], 16
        $region88: #{tpu_custom_call.1} parent=71 // pred_fallthru
          _
        // Predicated region
        $region89: #{tpu_custom_call.1} parent=71 // pred_check
          %p484 = pneg %p200
        $region90: #{tpu_custom_call.1} parent=71 // pred_check_branch
          %486 = sbr.rel (%p484) target = $region92
        $region91: #{tpu_custom_call.1} parent=71 // pred_region
          %487 = dma.done [#allocation13], 256
        $region92: #{tpu_custom_call.1} parent=71 // pred_fallthru
          _
        // Predicated region
        $region93: #{tpu_custom_call.1} parent=71 // pred_check
          %p488 = pneg %p221
        $region94: #{tpu_custom_call.1} parent=71 // pred_check_branch
          %490 = sbr.rel (%p488) target = $region96
        $region95: #{tpu_custom_call.1} parent=71 // pred_region
          %491 = dma.done [#allocation16], 16
        $region96: #{tpu_custom_call.1} parent=71 // pred_fallthru
          _
        // Predicated region
        $region97: #{tpu_custom_call.1} parent=71 // pred_check
          %p492 = pneg %p242
        $region98: #{tpu_custom_call.1} parent=71 // pred_check_branch
          %494 = sbr.rel (%p492) target = $region100
        $region99: #{tpu_custom_call.1} parent=71 // pred_region
          %495 = dma.done [#allocation16], 16
        $region100: #{tpu_custom_call.1} parent=71 // pred_fallthru
          _
        // Predicated region
        $region101: #{tpu_custom_call.1} parent=71 // pred_check
          %p496 = pneg %p284
        $region102: #{tpu_custom_call.1} parent=71 // pred_check_branch
          %498 = sbr.rel (%p496) target = $region104
        $region103: #{tpu_custom_call.1} parent=71 // pred_region
          %499 = dma.done [#allocation19], 256
        $region104: #{tpu_custom_call.1} parent=71 // pred_fallthru
          _
        %p500 = scmp.lt.s32.totalorder %s32, 1
        %s501 = scalar_select %p500, %s32, 1
        %s502 = smul.addr %s501, 8
        %s503 = scalar_lea.vmem %s0, %s502
        %p504 = pneg %p53
        %p505 = pneg %p50
        %p506 = pneg %p74
        %p507 = pneg %p71
        %p508 = pneg %p95
        %p509 = pneg %p92
        %p510 = pneg %p116
        %p511 = pneg %p113
        %p512 = pneg %p137
        %p513 = pneg %p134
        %p514 = pneg %p158
        %p515 = pneg %p155
        %p516 = pneg %p179
        %p517 = pneg %p176
        %p518 = pneg %p200
        %p519 = pneg %p197
        %p520 = pneg %p221
        %p521 = pneg %p218
        %p522 = pneg %p242
        %p523 = pneg %p239
        %p524 = pneg %p263
        %p525 = pneg %p260
        %p526 = pneg %p284
        %p527 = pneg %p281
        %p528 = pneg %p305
        %p529 = pneg %p302
        %p530 = pneg %p331
        %p531 = pneg %p328
        %s532 = sand.u32 %s318, 1
        %s533 = scalar_lea.sflag [#allocation8], %s532
        %s534 = sand.u32 %s318, 1
        %s535 = smul.addr %s534, 8
        %s536 = scalar_lea.vmem [#allocation20], %s535
        %p537 = scmp.lt.s32.totalorder %s32, 1
        %s538 = scalar_select %p537, %s32, 1
        %s539 = smul.addr %s538, 8
        %s540 = scalar_lea.vmem %s0, %s539
        %v542 = vld [vmem:[%s540] sm:$0xff]
        %v543 = vlaneseq
        %v544 = vshrl.u32 %v543, 7
        %vm545 = vcmp.lt.s32.totalorder %v544, 0
        %v546 = vsub.s32 0, %v544
        %v547 = vsel %vm545, %v546, %v544
        %v548 = vshrl.u32 %v547, 3
        %v549 = vand.u32 %v547, 7
        %v550 = vsub.s32 0, %v549
        %v551 = vsel %vm545, %v550, %v549
        %vm552 = vcmp.ne.s32.totalorder %v551, 0
        %vm553 = vcmp.lt.s32.totalorder %v551, 0
        %vm554 = vmand %vm553, %vm552
        %v555 = vadd.s32 %v551, 8
        %v556 = vsel %vm554, %v555, %v551
        %vm557 = vcmp.ne.s32.totalorder %v556, 0
        %vm558 = vcmask 261120
        %v559 = vsel %vm558, %v542, 0.0
        %560 = vadd.xlane.f32.xlu0 %v559
        %v561 = vpop.xlane.xlu0 %560
        %v562 = vrcp.pop 32.0
        %v563 = vmul.f32 %v561, %v562
        %v564 = vsub.f32 %v542, %v563
        %v565 = vmul.f32 %v564, %v564
        %v566 = vsel %vm558, %v565, 0.0
        %567 = vadd.xlane.f32.xlu0 %v566
        %v568 = vpop.xlane.xlu0 %567
        %v569 = vmul.f32 %v568, %v562
        %v570 = vadd.f32 %v569, 1e-12
        %v571 = vrsqrt.pop %v570
        %v572 = vmul.f32 %v564, %v571
        %v573 = vld [vmem:[#allocation6] sm:$0x1]
        %v575 = vlaneseq
        %v576 = vshrl.u32 %v575, 7
        %v577 = vsub.s32 0, %v576
        %v578 = vrot.slane %v573, %v577
        %v580 = vmul.f32 %v572, %v578
        %v581 = vld [vmem:[#allocation9] sm:$0x1]
        %v583 = vlaneseq
        %v584 = vshrl.u32 %v583, 7
        %v585 = vsub.s32 0, %v584
        %v586 = vrot.slane %v581, %v585
        %v588 = vadd.f32 %v580, %v586
        %v589 = vrot.slane %v588, 7
        %v590 = vsel %vm557, 1, 0
        %vm591 = vcmp.eq.s32.totalorder %v590, 1
        %v592 = vsel %vm591, %v589, 0.0
        %v593 = vpack.c.bf16 %v588, %v588
        %v594 = vld [vmem:[%s5] sm:$0xf]
        %v595 = vld [vmem:[%s5 + $0x4] sm:$0xf]
        %v596 = vld [vmem:[%s5 + $0x8] sm:$0xf]
        %v597 = vld [vmem:[%s5 + $0xc] sm:$0xf]
        %v598 = vpack.c.bf16 %v592, %v592
        %v599 = vld [vmem:[%s6] sm:$0xf]
        %v600 = vld [vmem:[%s6 + $0x4] sm:$0xf]
        %v601 = vld [vmem:[%s6 + $0x8] sm:$0xf]
        %v602 = vld [vmem:[%s6 + $0xc] sm:$0xf]
        %v607 = vunpack.c.l.b16 %v599
        %v608 = vunpack.c.l.b16 %v600
        %v609 = vunpack.c.l.b16 %v601
        %v610 = vunpack.c.l.b16 %v602
        %v611 = vpack.c.b16 %v608, %v607
        %v612 = vpack.c.b16 %v610, %v609
        %v616 = vsel %vm558, %v598, 0
        %618 = vmatprep.subr.bf16.mxu0 0
        %619 = vmatpush1.bf16.msra.mxu0 0
        %620 = vmatprep.subr.bf16.mxu0 0
        %621 = vmatpush1.bf16.msra.mxu0 0
        %622 = vmatprep.subr.bf16.mxu0 0
        %623 = vmatpush1.bf16.msra.mxu0 0
        %624 = vmatprep.subr.bf16.mxu0 0
        %625 = vmatpush1.bf16.msra.mxu0 0
        %626 = vmatprep.subr.bf16.mxu0 0
        %627 = vmatpush1.bf16.msra.mxu0 0
        %628 = vmatprep.subr.bf16.mxu0 0
        %629 = vmatpush1.bf16.msra.mxu0 0
        %630 = vmatprep.subr.bf16.mxu0 0
        %631 = vmatpush1.bf16.msra.mxu0 %v612
        %632 = vmatprep.subr.bf16.mxu0 0
        %633 = vmatpush1.bf16.msra.mxu0 %v611
        %634 = vmatprep.subr.bf16.mxu0 0
        %635 = vmatpush2.bf16.msra.mxu0 0
        %636 = vmatprep.subr.bf16.mxu0 0
        %637 = vmatpush2.bf16.msra.mxu0 0
        %638 = vmatprep.subr.bf16.mxu0 0
        %639 = vmatpush2.bf16.msra.mxu0 0
        %640 = vmatprep.subr.bf16.mxu0 0
        %641 = vmatpush2.bf16.msra.mxu0 0
        %642 = vmatprep.subr.bf16.mxu0 0
        %643 = vmatpush2.bf16.msra.mxu0 0
        %644 = vmatprep.subr.bf16.mxu0 0
        %645 = vmatpush2.bf16.msra.mxu0 0
        %646 = vmatprep.subr.bf16.mxu0 0
        %647 = vmatpush2.bf16.msra.mxu0 0
        %648 = vmatprep.subr.bf16.mxu0 0
        %649 = vmatpush2.bf16.msra.mxu0 0
        %650 = vmatprep.mubr.bf16.mxu0 0
        %651 = vmatmul.mubr.bf16.gmra.mxu0 %v616
        %v652 = vpop.f32.mrf.mxu0
        %v653 = vadd.f32 0.0, %v652
        %v654 = vpop.f32.mrf.mxu0
        %v655 = vpop.f32.mrf.mxu0
        %v656 = vpop.f32.mrf.mxu0
        %657 = vdwg.mxu0
        %v662 = vunpack.c.l.b16 %v594
        %v663 = vunpack.c.l.b16 %v595
        %v664 = vunpack.c.l.b16 %v596
        %v665 = vunpack.c.l.b16 %v597
        %v666 = vpack.c.b16 %v663, %v662
        %v667 = vpack.c.b16 %v665, %v664
        %v671 = vsel %vm558, %v593, 0
        %673 = vmatprep.subr.bf16.mxu0 0
        %674 = vmatpush1.bf16.msra.mxu0 0
        %675 = vmatprep.subr.bf16.mxu0 0
        %676 = vmatpush1.bf16.msra.mxu0 0
        %677 = vmatprep.subr.bf16.mxu0 0
        %678 = vmatpush1.bf16.msra.mxu0 0
        %679 = vmatprep.subr.bf16.mxu0 0
        %680 = vmatpush1.bf16.msra.mxu0 0
        %681 = vmatprep.subr.bf16.mxu0 0
        %682 = vmatpush1.bf16.msra.mxu0 0
        %683 = vmatprep.subr.bf16.mxu0 0
        %684 = vmatpush1.bf16.msra.mxu0 0
        %685 = vmatprep.subr.bf16.mxu0 0
        %686 = vmatpush1.bf16.msra.mxu0 %v667
        %687 = vmatprep.subr.bf16.mxu0 0
        %688 = vmatpush1.bf16.msra.mxu0 %v666
        %689 = vmatprep.subr.bf16.mxu0 0
        %690 = vmatpush2.bf16.msra.mxu0 0
        %691 = vmatprep.subr.bf16.mxu0 0
        %692 = vmatpush2.bf16.msra.mxu0 0
        %693 = vmatprep.subr.bf16.mxu0 0
        %694 = vmatpush2.bf16.msra.mxu0 0
        %695 = vmatprep.subr.bf16.mxu0 0
        %696 = vmatpush2.bf16.msra.mxu0 0
        %697 = vmatprep.subr.bf16.mxu0 0
        %698 = vmatpush2.bf16.msra.mxu0 0
        %699 = vmatprep.subr.bf16.mxu0 0
        %700 = vmatpush2.bf16.msra.mxu0 0
        %701 = vmatprep.subr.bf16.mxu0 0
        %702 = vmatpush2.bf16.msra.mxu0 0
        %703 = vmatprep.subr.bf16.mxu0 0
        %704 = vmatpush2.bf16.msra.mxu0 0
        %705 = vmatprep.mubr.bf16.mxu0 0
        %706 = vmatmul.mubr.bf16.gmra.mxu0 %v671
        %v707 = vpop.f32.mrf.mxu0
        %v708 = vadd.f32 %v653, %v707
        %v709 = vpop.f32.mrf.mxu0
        %v710 = vpop.f32.mrf.mxu0
        %v711 = vpop.f32.mrf.mxu0
        %712 = vdwg.mxu0
        %713 = vst.msk [vmem:[#allocation2] sm:$0xff] %vm558, %v708
        %715 = vrot.lane.b32.xlu0 %v708, 96
        %v716 = vpop.permute.xlu0 %715
        %718 = vst.msk [vmem:[#allocation3] sm:$0xff] %vm558, %v716
        %v719 = vxor.u32 %v708, 2147483648
        %v720 = vmul.f32 %v719, 1.442695
        %v721 = vpow.pop %v720
        %v722 = vadd.f32 %v721, 1.0
        %v723 = vrcp.pop %v722
        %v724 = vmul.f32 1.0, %v723
        %726 = vrot.lane.b32.xlu0 %v724, 64
        %v727 = vpop.permute.xlu0 %726
        %729 = vst.msk [vmem:[#allocation4] sm:$0xff] %vm558, %v727
        %v730 = vld [vmem:[#allocation11] sm:$0x1]
        %v731 = vld [vmem:[#allocation12] sm:$0x1]
        %v732 = vld [vmem:[#allocation2] sm:$0x1]
        %v733 = vld [vmem:[#allocation3] sm:$0x1]
        %v734 = vadd.f32 %v731, %v732
        %v735 = vmax.f32 %v734, -1e+38
        %v736 = vsub.f32 -1e+38, %v735
        %v737 = vmul.f32 %v736, 1.442695
        %v738 = vpow.pop %v737
        %v739 = vsub.f32 %v734, %v735
        %v740 = vmul.f32 %v739, 1.442695
        %v741 = vpow.pop %v740
        %v742 = vld [vmem:[#allocation4] sm:$0x1]
        %v743 = vmul.f32 %v738, 0.0
        %v744 = vmul.f32 %v741, %v733
        %v745 = vadd.f32 %v743, %v744
        %v746 = vmul.f32 %v742, %v745
        %v747 = vadd.f32 %v743, %v741
        %v748 = vrcp.pop %v747
        %v749 = vmul.f32 %v746, %v748
        %vm750 = vcmask 253952
        %751 = vst.msk [vmem:[#allocation5] sm:$0x1] %vm750, %v749
        %v752 = vadd.f32 %v730, -1e+38
        %v753 = vmax.f32 %v752, %v732
        %v754 = vsub.f32 %v752, %v753
        %v755 = vmul.f32 %v754, 1.442695
        %v756 = vpow.pop %v755
        %v757 = vsub.f32 %v732, %v753
        %v758 = vmul.f32 %v757, 1.442695
        %v759 = vpow.pop %v758
        %v760 = vmul.f32 %v756, 0.0
        %v761 = vmul.f32 %v759, %v733
        %v762 = vadd.f32 %v760, %v761
        %v763 = vadd.f32 %v760, %v759
        %v764 = vld [vmem:[#allocation2 + $0x1] sm:$0x1]
        %v765 = vld [vmem:[#allocation3 + $0x1] sm:$0x1]
        %v766 = vadd.f32 %v731, %v764
        %v767 = vmax.f32 %v753, %v766
        %v768 = vsub.f32 %v753, %v767
        %v769 = vmul.f32 %v768, 1.442695
        %v770 = vpow.pop %v769
        %v771 = vsub.f32 %v766, %v767
        %v772 = vmul.f32 %v771, 1.442695
        %v773 = vpow.pop %v772
        %v774 = vld [vmem:[#allocation4 + $0x1] sm:$0x1]
        %v775 = vmul.f32 %v770, %v762
        %v776 = vmul.f32 %v773, %v765
        %v777 = vadd.f32 %v775, %v776
        %v778 = vmul.f32 %v774, %v777
        %v779 = vmul.f32 %v770, %v763
        %v780 = vadd.f32 %v779, %v773
        %v781 = vrcp.pop %v780
        %v782 = vmul.f32 %v778, %v781
        %783 = vst.msk [vmem:[#allocation5 + $0x1] sm:$0x1] %vm750, %v782
        %v784 = vadd.f32 %v753, %v730
        %v785 = vmax.f32 %v784, %v764
        %v786 = vsub.f32 %v784, %v785
        %v787 = vmul.f32 %v786, 1.442695
        %v788 = vpow.pop %v787
        %v789 = vsub.f32 %v764, %v785
        %v790 = vmul.f32 %v789, 1.442695
        %v791 = vpow.pop %v790
        %v792 = vmul.f32 %v788, %v762
        %v793 = vmul.f32 %v791, %v765
        %v794 = vadd.f32 %v792, %v793
        %v795 = vmul.f32 %v788, %v763
        %v796 = vadd.f32 %v795, %v791
        %v797 = vld [vmem:[#allocation2 + $0x2] sm:$0x1]
        %v798 = vld [vmem:[#allocation3 + $0x2] sm:$0x1]
        %v799 = vadd.f32 %v731, %v797
        %v800 = vmax.f32 %v785, %v799
        %v801 = vsub.f32 %v785, %v800
        %v802 = vmul.f32 %v801, 1.442695
        %v803 = vpow.pop %v802
        %v804 = vsub.f32 %v799, %v800
        %v805 = vmul.f32 %v804, 1.442695
        %v806 = vpow.pop %v805
        %v807 = vld [vmem:[#allocation4 + $0x2] sm:$0x1]
        %v808 = vmul.f32 %v803, %v794
        %v809 = vmul.f32 %v806, %v798
        %v810 = vadd.f32 %v808, %v809
        %v811 = vmul.f32 %v807, %v810
        %v812 = vmul.f32 %v803, %v796
        %v813 = vadd.f32 %v812, %v806
        %v814 = vrcp.pop %v813
        %v815 = vmul.f32 %v811, %v814
        %816 = vst.msk [vmem:[#allocation5 + $0x2] sm:$0x1] %vm750, %v815
        %v817 = vadd.f32 %v785, %v730
        %v818 = vmax.f32 %v817, %v797
        %v819 = vsub.f32 %v817, %v818
        %v820 = vmul.f32 %v819, 1.442695
        %v821 = vpow.pop %v820
        %v822 = vsub.f32 %v797, %v818
        %v823 = vmul.f32 %v822, 1.442695
        %v824 = vpow.pop %v823
        %v825 = vmul.f32 %v821, %v794
        %v826 = vmul.f32 %v824, %v798
        %v827 = vadd.f32 %v825, %v826
        %v828 = vmul.f32 %v821, %v796
        %v829 = vadd.f32 %v828, %v824
        %v830 = vld [vmem:[#allocation2 + $0x3] sm:$0x1]
        %v831 = vld [vmem:[#allocation3 + $0x3] sm:$0x1]
        %v832 = vadd.f32 %v731, %v830
        %v833 = vmax.f32 %v818, %v832
        %v834 = vsub.f32 %v818, %v833
        %v835 = vmul.f32 %v834, 1.442695
        %v836 = vpow.pop %v835
        %v837 = vsub.f32 %v832, %v833
        %v838 = vmul.f32 %v837, 1.442695
        %v839 = vpow.pop %v838
        %v840 = vld [vmem:[#allocation4 + $0x3] sm:$0x1]
        %v841 = vmul.f32 %v836, %v827
        %v842 = vmul.f32 %v839, %v831
        %v843 = vadd.f32 %v841, %v842
        %v844 = vmul.f32 %v840, %v843
        %v845 = vmul.f32 %v836, %v829
        %v846 = vadd.f32 %v845, %v839
        %v847 = vrcp.pop %v846
        %v848 = vmul.f32 %v844, %v847
        %849 = vst.msk [vmem:[#allocation5 + $0x3] sm:$0x1] %vm750, %v848
        %v850 = vadd.f32 %v818, %v730
        %v851 = vmax.f32 %v850, %v830
        %v852 = vsub.f32 %v850, %v851
        %v853 = vmul.f32 %v852, 1.442695
        %v854 = vpow.pop %v853
        %v855 = vsub.f32 %v830, %v851
        %v856 = vmul.f32 %v855, 1.442695
        %v857 = vpow.pop %v856
        %v858 = vmul.f32 %v854, %v827
        %v859 = vmul.f32 %v857, %v831
        %v860 = vadd.f32 %v858, %v859
        %v861 = vmul.f32 %v854, %v829
        %v862 = vadd.f32 %v861, %v857
        %v863 = vld [vmem:[#allocation2 + $0x4] sm:$0x1]
        %v864 = vld [vmem:[#allocation3 + $0x4] sm:$0x1]
        %v865 = vadd.f32 %v731, %v863
        %v866 = vmax.f32 %v851, %v865
        %v867 = vsub.f32 %v851, %v866
        %v868 = vmul.f32 %v867, 1.442695
        %v869 = vpow.pop %v868
        %v870 = vsub.f32 %v865, %v866
        %v871 = vmul.f32 %v870, 1.442695
        %v872 = vpow.pop %v871
        %v873 = vld [vmem:[#allocation4 + $0x4] sm:$0x1]
        %v874 = vmul.f32 %v869, %v860
        %v875 = vmul.f32 %v872, %v864
        %v876 = vadd.f32 %v874, %v875
        %v877 = vmul.f32 %v873, %v876
        %v878 = vmul.f32 %v869, %v862
        %v879 = vadd.f32 %v878, %v872
        %v880 = vrcp.pop %v879
        %v881 = vmul.f32 %v877, %v880
        %882 = vst.msk [vmem:[#allocation5 + $0x4] sm:$0x1] %vm750, %v881
        %v883 = vadd.f32 %v851, %v730
        %v884 = vmax.f32 %v883, %v863
        %v885 = vsub.f32 %v883, %v884
        %v886 = vmul.f32 %v885, 1.442695
        %v887 = vpow.pop %v886
        %v888 = vsub.f32 %v863, %v884
        %v889 = vmul.f32 %v888, 1.442695
        %v890 = vpow.pop %v889
        %v891 = vmul.f32 %v887, %v860
        %v892 = vmul.f32 %v890, %v864
        %v893 = vadd.f32 %v891, %v892
        %v894 = vmul.f32 %v887, %v862
        %v895 = vadd.f32 %v894, %v890
        %v896 = vld [vmem:[#allocation2 + $0x5] sm:$0x1]
        %v897 = vld [vmem:[#allocation3 + $0x5] sm:$0x1]
        %v898 = vadd.f32 %v731, %v896
        %v899 = vmax.f32 %v884, %v898
        %v900 = vsub.f32 %v884, %v899
        %v901 = vmul.f32 %v900, 1.442695
        %v902 = vpow.pop %v901
        %v903 = vsub.f32 %v898, %v899
        %v904 = vmul.f32 %v903, 1.442695
        %v905 = vpow.pop %v904
        %v906 = vld [vmem:[#allocation4 + $0x5] sm:$0x1]
        %v907 = vmul.f32 %v902, %v893
        %v908 = vmul.f32 %v905, %v897
        %v909 = vadd.f32 %v907, %v908
        %v910 = vmul.f32 %v906, %v909
        %v911 = vmul.f32 %v902, %v895
        %v912 = vadd.f32 %v911, %v905
        %v913 = vrcp.pop %v912
        %v914 = vmul.f32 %v910, %v913
        %915 = vst.msk [vmem:[#allocation5 + $0x5] sm:$0x1] %vm750, %v914
        %v916 = vadd.f32 %v884, %v730
        %v917 = vmax.f32 %v916, %v896
        %v918 = vsub.f32 %v916, %v917
        %v919 = vmul.f32 %v918, 1.442695
        %v920 = vpow.pop %v919
        %v921 = vsub.f32 %v896, %v917
        %v922 = vmul.f32 %v921, 1.442695
        %v923 = vpow.pop %v922
        %v924 = vmul.f32 %v920, %v893
        %v925 = vmul.f32 %v923, %v897
        %v926 = vadd.f32 %v924, %v925
        %v927 = vmul.f32 %v920, %v895
        %v928 = vadd.f32 %v927, %v923
        %v929 = vld [vmem:[#allocation2 + $0x6] sm:$0x1]
        %v930 = vld [vmem:[#allocation3 + $0x6] sm:$0x1]
        %v931 = vadd.f32 %v731, %v929
        %v932 = vmax.f32 %v917, %v931
        %v933 = vsub.f32 %v917, %v932
        %v934 = vmul.f32 %v933, 1.442695
        %v935 = vpow.pop %v934
        %v936 = vsub.f32 %v931, %v932
        %v937 = vmul.f32 %v936, 1.442695
        %v938 = vpow.pop %v937
        %v939 = vld [vmem:[#allocation4 + $0x6] sm:$0x1]
        %v940 = vmul.f32 %v935, %v926
        %v941 = vmul.f32 %v938, %v930
        %v942 = vadd.f32 %v940, %v941
        %v943 = vmul.f32 %v939, %v942
        %v944 = vmul.f32 %v935, %v928
        %v945 = vadd.f32 %v944, %v938
        %v946 = vrcp.pop %v945
        %v947 = vmul.f32 %v943, %v946
        %948 = vst.msk [vmem:[#allocation5 + $0x6] sm:$0x1] %vm750, %v947
        %v949 = vadd.f32 %v917, %v730
        %v950 = vmax.f32 %v949, %v929
        %v951 = vsub.f32 %v949, %v950
        %v952 = vmul.f32 %v951, 1.442695
        %v953 = vpow.pop %v952
        %v954 = vsub.f32 %v929, %v950
        %v955 = vmul.f32 %v954, 1.442695
        %v956 = vpow.pop %v955
        %v957 = vmul.f32 %v953, %v926
        %v958 = vmul.f32 %v956, %v930
        %v959 = vadd.f32 %v957, %v958
        %v960 = vmul.f32 %v953, %v928
        %v961 = vadd.f32 %v960, %v956
        %v962 = vld [vmem:[#allocation2 + $0x7] sm:$0x1]
        %v963 = vld [vmem:[#allocation3 + $0x7] sm:$0x1]
        %v964 = vadd.f32 %v731, %v962
        %v965 = vmax.f32 %v950, %v964
        %v966 = vsub.f32 %v950, %v965
        %v967 = vmul.f32 %v966, 1.442695
        %v968 = vpow.pop %v967
        %v969 = vsub.f32 %v964, %v965
        %v970 = vmul.f32 %v969, 1.442695
        %v971 = vpow.pop %v970
        %v972 = vld [vmem:[#allocation4 + $0x7] sm:$0x1]
        %v973 = vmul.f32 %v968, %v959
        %v974 = vmul.f32 %v971, %v963
        %v975 = vadd.f32 %v973, %v974
        %v976 = vmul.f32 %v972, %v975
        %v977 = vmul.f32 %v968, %v961
        %v978 = vadd.f32 %v977, %v971
        %v979 = vrcp.pop %v978
        %v980 = vmul.f32 %v976, %v979
        %981 = vst.msk [vmem:[#allocation5 + $0x7] sm:$0x1] %vm750, %v980
        %v982 = vld [vmem:[#allocation5] sm:$0xff]
        %v983 = vpack.c.bf16 %v982, %v982
        %v984 = vld [vmem:[#allocation14] sm:$0xf]
        %v985 = vld [vmem:[#allocation14 + $0x4] sm:$0xf]
        %v986 = vld [vmem:[#allocation14 + $0x8] sm:$0xf]
        %v987 = vld [vmem:[#allocation14 + $0xc] sm:$0xf]
        %v992 = vunpack.c.l.b16 %v984
        %v993 = vunpack.c.l.b16 %v985
        %v994 = vunpack.c.l.b16 %v986
        %v995 = vunpack.c.l.b16 %v987
        %v996 = vpack.c.b16 %v993, %v992
        %v997 = vpack.c.b16 %v995, %v994
        %v1001 = vsel %vm558, %v983, 0
        %1003 = vmatprep.subr.bf16.mxu0 0
        %1004 = vmatpush1.bf16.msra.mxu0 0
        %1005 = vmatprep.subr.bf16.mxu0 0
        %1006 = vmatpush1.bf16.msra.mxu0 0
        %1007 = vmatprep.subr.bf16.mxu0 0
        %1008 = vmatpush1.bf16.msra.mxu0 0
        %1009 = vmatprep.subr.bf16.mxu0 0
        %1010 = vmatpush1.bf16.msra.mxu0 0
        %1011 = vmatprep.subr.bf16.mxu0 0
        %1012 = vmatpush1.bf16.msra.mxu0 0
        %1013 = vmatprep.subr.bf16.mxu0 0
        %1014 = vmatpush1.bf16.msra.mxu0 0
        %1015 = vmatprep.subr.bf16.mxu0 0
        %1016 = vmatpush1.bf16.msra.mxu0 %v997
        %1017 = vmatprep.subr.bf16.mxu0 0
        %1018 = vmatpush1.bf16.msra.mxu0 %v996
        %1019 = vmatprep.subr.bf16.mxu0 0
        %1020 = vmatpush2.bf16.msra.mxu0 0
        %1021 = vmatprep.subr.bf16.mxu0 0
        %1022 = vmatpush2.bf16.msra.mxu0 0
        %1023 = vmatprep.subr.bf16.mxu0 0
        %1024 = vmatpush2.bf16.msra.mxu0 0
        %1025 = vmatprep.subr.bf16.mxu0 0
        %1026 = vmatpush2.bf16.msra.mxu0 0
        %1027 = vmatprep.subr.bf16.mxu0 0
        %1028 = vmatpush2.bf16.msra.mxu0 0
        %1029 = vmatprep.subr.bf16.mxu0 0
        %1030 = vmatpush2.bf16.msra.mxu0 0
        %1031 = vmatprep.subr.bf16.mxu0 0
        %1032 = vmatpush2.bf16.msra.mxu0 0
        %1033 = vmatprep.subr.bf16.mxu0 0
        %1034 = vmatpush2.bf16.msra.mxu0 0
        %1035 = vmatprep.mubr.bf16.mxu0 0
        %1036 = vmatmul.mubr.bf16.gmra.mxu0 %v1001
        %v1037 = vpop.f32.mrf.mxu0
        %v1038 = vadd.f32 0.0, %v1037
        %v1039 = vpop.f32.mrf.mxu0
        %v1040 = vpop.f32.mrf.mxu0
        %v1041 = vpop.f32.mrf.mxu0
        %1042 = vdwg.mxu0
        %v1043 = vadd.f32 %v542, %v1038
        %v1044 = vsel %vm558, %v1043, 0.0
        %1045 = vadd.xlane.f32.xlu0 %v1044
        %v1046 = vpop.xlane.xlu0 %1045
        %v1047 = vmul.f32 %v1046, %v562
        %v1048 = vsub.f32 %v1043, %v1047
        %v1049 = vmul.f32 %v1048, %v1048
        %v1050 = vsel %vm558, %v1049, 0.0
        %1051 = vadd.xlane.f32.xlu0 %v1050
        %v1052 = vpop.xlane.xlu0 %1051
        %v1053 = vmul.f32 %v1052, %v562
        %v1054 = vadd.f32 %v1053, 1e-12
        %v1055 = vrsqrt.pop %v1054
        %v1056 = vmul.f32 %v1048, %v1055
        %v1057 = vld [vmem:[#allocation15] sm:$0x1]
        %v1059 = vlaneseq
        %v1060 = vshrl.u32 %v1059, 7
        %v1061 = vsub.s32 0, %v1060
        %v1062 = vrot.slane %v1057, %v1061
        %v1064 = vmul.f32 %v1056, %v1062
        %v1065 = vld [vmem:[#allocation17] sm:$0x1]
        %v1067 = vlaneseq
        %v1068 = vshrl.u32 %v1067, 7
        %v1069 = vsub.s32 0, %v1068
        %v1070 = vrot.slane %v1065, %v1069
        %v1072 = vadd.f32 %v1064, %v1070
        %v1073 = vrot.slane %v1072, 7
        %v1074 = vsel %vm591, %v1073, 0.0
        %v1075 = vpack.c.bf16 %v1072, %v1072
        %v1076 = vld [vmem:[%s10] sm:$0xf]
        %v1077 = vld [vmem:[%s10 + $0x4] sm:$0xf]
        %v1078 = vld [vmem:[%s10 + $0x8] sm:$0xf]
        %v1079 = vld [vmem:[%s10 + $0xc] sm:$0xf]
        %v1080 = vpack.c.bf16 %v1074, %v1074
        %v1081 = vld [vmem:[#allocation18] sm:$0xf]
        %v1082 = vld [vmem:[#allocation18 + $0x4] sm:$0xf]
        %v1083 = vld [vmem:[#allocation18 + $0x8] sm:$0xf]
        %v1084 = vld [vmem:[#allocation18 + $0xc] sm:$0xf]
        %v1089 = vunpack.c.l.b16 %v1081
        %v1090 = vunpack.c.l.b16 %v1082
        %v1091 = vunpack.c.l.b16 %v1083
        %v1092 = vunpack.c.l.b16 %v1084
        %v1093 = vpack.c.b16 %v1090, %v1089
        %v1094 = vpack.c.b16 %v1092, %v1091
        %v1098 = vsel %vm558, %v1080, 0
        %1100 = vmatprep.subr.bf16.mxu0 0
        %1101 = vmatpush1.bf16.msra.mxu0 0
        %1102 = vmatprep.subr.bf16.mxu0 0
        %1103 = vmatpush1.bf16.msra.mxu0 0
        %1104 = vmatprep.subr.bf16.mxu0 0
        %1105 = vmatpush1.bf16.msra.mxu0 0
        %1106 = vmatprep.subr.bf16.mxu0 0
        %1107 = vmatpush1.bf16.msra.mxu0 0
        %1108 = vmatprep.subr.bf16.mxu0 0
        %1109 = vmatpush1.bf16.msra.mxu0 0
        %1110 = vmatprep.subr.bf16.mxu0 0
        %1111 = vmatpush1.bf16.msra.mxu0 0
        %1112 = vmatprep.subr.bf16.mxu0 0
        %1113 = vmatpush1.bf16.msra.mxu0 %v1094
        %1114 = vmatprep.subr.bf16.mxu0 0
        %1115 = vmatpush1.bf16.msra.mxu0 %v1093
        %1116 = vmatprep.subr.bf16.mxu0 0
        %1117 = vmatpush2.bf16.msra.mxu0 0
        %1118 = vmatprep.subr.bf16.mxu0 0
        %1119 = vmatpush2.bf16.msra.mxu0 0
        %1120 = vmatprep.subr.bf16.mxu0 0
        %1121 = vmatpush2.bf16.msra.mxu0 0
        %1122 = vmatprep.subr.bf16.mxu0 0
        %1123 = vmatpush2.bf16.msra.mxu0 0
        %1124 = vmatprep.subr.bf16.mxu0 0
        %1125 = vmatpush2.bf16.msra.mxu0 0
        %1126 = vmatprep.subr.bf16.mxu0 0
        %1127 = vmatpush2.bf16.msra.mxu0 0
        %1128 = vmatprep.subr.bf16.mxu0 0
        %1129 = vmatpush2.bf16.msra.mxu0 0
        %1130 = vmatprep.subr.bf16.mxu0 0
        %1131 = vmatpush2.bf16.msra.mxu0 0
        %1132 = vmatprep.mubr.bf16.mxu0 0
        %1133 = vmatmul.mubr.bf16.gmra.mxu0 %v1098
        %v1134 = vpop.f32.mrf.mxu0
        %v1135 = vadd.f32 0.0, %v1134
        %v1136 = vpop.f32.mrf.mxu0
        %v1137 = vpop.f32.mrf.mxu0
        %v1138 = vpop.f32.mrf.mxu0
        %1139 = vdwg.mxu0
        %v1144 = vunpack.c.l.b16 %v1076
        %v1145 = vunpack.c.l.b16 %v1077
        %v1146 = vunpack.c.l.b16 %v1078
        %v1147 = vunpack.c.l.b16 %v1079
        %v1148 = vpack.c.b16 %v1145, %v1144
        %v1149 = vpack.c.b16 %v1147, %v1146
        %v1153 = vsel %vm558, %v1075, 0
        %1155 = vmatprep.subr.bf16.mxu0 0
        %1156 = vmatpush1.bf16.msra.mxu0 0
        %1157 = vmatprep.subr.bf16.mxu0 0
        %1158 = vmatpush1.bf16.msra.mxu0 0
        %1159 = vmatprep.subr.bf16.mxu0 0
        %1160 = vmatpush1.bf16.msra.mxu0 0
        %1161 = vmatprep.subr.bf16.mxu0 0
        %1162 = vmatpush1.bf16.msra.mxu0 0
        %1163 = vmatprep.subr.bf16.mxu0 0
        %1164 = vmatpush1.bf16.msra.mxu0 0
        %1165 = vmatprep.subr.bf16.mxu0 0
        %1166 = vmatpush1.bf16.msra.mxu0 0
        %1167 = vmatprep.subr.bf16.mxu0 0
        %1168 = vmatpush1.bf16.msra.mxu0 %v1149
        %1169 = vmatprep.subr.bf16.mxu0 0
        %1170 = vmatpush1.bf16.msra.mxu0 %v1148
        %1171 = vmatprep.subr.bf16.mxu0 0
        %1172 = vmatpush2.bf16.msra.mxu0 0
        %1173 = vmatprep.subr.bf16.mxu0 0
        %1174 = vmatpush2.bf16.msra.mxu0 0
        %1175 = vmatprep.subr.bf16.mxu0 0
        %1176 = vmatpush2.bf16.msra.mxu0 0
        %1177 = vmatprep.subr.bf16.mxu0 0
        %1178 = vmatpush2.bf16.msra.mxu0 0
        %1179 = vmatprep.subr.bf16.mxu0 0
        %1180 = vmatpush2.bf16.msra.mxu0 0
        %1181 = vmatprep.subr.bf16.mxu0 0
        %1182 = vmatpush2.bf16.msra.mxu0 0
        %1183 = vmatprep.subr.bf16.mxu0 0
        %1184 = vmatpush2.bf16.msra.mxu0 0
        %1185 = vmatprep.subr.bf16.mxu0 0
        %1186 = vmatpush2.bf16.msra.mxu0 0
        %1187 = vmatprep.mubr.bf16.mxu0 0
        %1188 = vmatmul.mubr.bf16.gmra.mxu0 %v1153
        %v1189 = vpop.f32.mrf.mxu0
        %v1190 = vadd.f32 %v1135, %v1189
        %v1191 = vpop.f32.mrf.mxu0
        %v1192 = vpop.f32.mrf.mxu0
        %v1193 = vpop.f32.mrf.mxu0
        %1194 = vdwg.mxu0
        %v1195 = vmax.f32 %v1190, 0.0
        %v1196 = vmul.f32 %v1195, %v1195
        %v1197 = vxor.u32 %v1190, 2147483648
        %v1198 = vmul.f32 %v1197, 1.442695
        %v1199 = vpow.pop %v1198
        %v1200 = vadd.f32 %v1199, 1.0
        %v1201 = vrcp.pop %v1200
        %v1202 = vmul.f32 1.0, %v1201
        %v1203 = vpack.c.bf16 %v1196, %v1196
        %v1204 = vld [vmem:[%s12] sm:$0xf]
        %v1205 = vld [vmem:[%s12 + $0x4] sm:$0xf]
        %v1206 = vld [vmem:[%s12 + $0x8] sm:$0xf]
        %v1207 = vld [vmem:[%s12 + $0xc] sm:$0xf]
        %v1208 = vld [vmem:[%s12 + $0x10] sm:$0xf]
        %v1209 = vld [vmem:[%s12 + $0x14] sm:$0xf]
        %v1210 = vld [vmem:[%s12 + $0x18] sm:$0xf]
        %v1211 = vld [vmem:[%s12 + $0x1c] sm:$0xf]
        %v1220 = vunpack.c.l.b16 %v1204
        %v1221 = vunpack.c.l.b16 %v1205
        %v1222 = vunpack.c.l.b16 %v1206
        %v1223 = vunpack.c.l.b16 %v1207
        %v1224 = vunpack.c.l.b16 %v1208
        %v1225 = vunpack.c.l.b16 %v1209
        %v1226 = vunpack.c.l.b16 %v1210
        %v1227 = vunpack.c.l.b16 %v1211
        %v1228 = vpack.c.b16 %v1221, %v1220
        %v1229 = vpack.c.b16 %v1223, %v1222
        %v1230 = vpack.c.b16 %v1225, %v1224
        %v1231 = vpack.c.b16 %v1227, %v1226
        %vm1236 = vcmask 523264
        %v1238 = vsel %vm1236, %v1203, 0
        %1240 = vmatprep.subr.bf16.mxu0 0
        %1241 = vmatpush1.bf16.msra.mxu0 0
        %1242 = vmatprep.subr.bf16.mxu0 0
        %1243 = vmatpush1.bf16.msra.mxu0 0
        %1244 = vmatprep.subr.bf16.mxu0 0
        %1245 = vmatpush1.bf16.msra.mxu0 0
        %1246 = vmatprep.subr.bf16.mxu0 0
        %1247 = vmatpush1.bf16.msra.mxu0 0
        %1248 = vmatprep.subr.bf16.mxu0 0
        %1249 = vmatpush1.bf16.msra.mxu0 %v1231
        %1250 = vmatprep.subr.bf16.mxu0 0
        %1251 = vmatpush1.bf16.msra.mxu0 %v1230
        %1252 = vmatprep.subr.bf16.mxu0 0
        %1253 = vmatpush1.bf16.msra.mxu0 %v1229
        %1254 = vmatprep.subr.bf16.mxu0 0
        %1255 = vmatpush1.bf16.msra.mxu0 %v1228
        %1256 = vmatprep.subr.bf16.mxu0 0
        %1257 = vmatpush2.bf16.msra.mxu0 0
        %1258 = vmatprep.subr.bf16.mxu0 0
        %1259 = vmatpush2.bf16.msra.mxu0 0
        %1260 = vmatprep.subr.bf16.mxu0 0
        %1261 = vmatpush2.bf16.msra.mxu0 0
        %1262 = vmatprep.subr.bf16.mxu0 0
        %1263 = vmatpush2.bf16.msra.mxu0 0
        %1264 = vmatprep.subr.bf16.mxu0 0
        %1265 = vmatpush2.bf16.msra.mxu0 0
        %1266 = vmatprep.subr.bf16.mxu0 0
        %1267 = vmatpush2.bf16.msra.mxu0 0
        %1268 = vmatprep.subr.bf16.mxu0 0
        %1269 = vmatpush2.bf16.msra.mxu0 0
        %1270 = vmatprep.subr.bf16.mxu0 0
        %1271 = vmatpush2.bf16.msra.mxu0 0
        %1272 = vmatprep.mubr.bf16.mxu0 0
        %1273 = vmatmul.mubr.bf16.gmra.mxu0 %v1238
        %v1274 = vpop.f32.mrf.mxu0
        %v1275 = vadd.f32 0.0, %v1274
        %v1276 = vpop.f32.mrf.mxu0
        %v1277 = vpop.f32.mrf.mxu0
        %v1278 = vpop.f32.mrf.mxu0
        %1279 = vdwg.mxu0
        %1281 = vrot.lane.b32.xlu0 %v1275, 64
        %v1282 = vpop.permute.xlu0 %1281
        %v1284 = vmul.f32 %v1202, %v1282
        %1286 = vrot.lane.b32.xlu0 %v1284, 64
        %v1287 = vpop.permute.xlu0 %1286
        %v1289 = vadd.f32 %v1043, %v1287
        %1290 = vst.msk [vmem:[%s536] sm:$0xff] %vm558, %v1289
        %s1291 = sand.u32 %s318, 1
        %s1292 = scalar_lea.sflag [#allocation8], %s1291
        %s1293 = sand.u32 %s318, 1
        %s1294 = smul.addr %s1293, 8
        %s1295 = scalar_lea.vmem [#allocation20], %s1294
        // Predicated region
        $region105: #{tpu_custom_call.1} parent=71 // pred_check
          %p1296 = pneg %p328
        $region106: #{tpu_custom_call.1} parent=71 // pred_check_branch
          %1298 = sbr.rel (%p1296) target = $region108
        $region107: #{tpu_custom_call.1} parent=71 // pred_region
          %s1300 = ssub.s32 128, 128
          %1301 = vsyncadd %s1292, %s1300
          %s1302 = smul.addr %s32, 128
          %s1303 = scalar_lea.hbm %s13, %s1302
          %s1305 = sshll.u32 %s1295, 4
          %s1306 = int_to_ptr.vmem [resolvable:$true] %s1305
          %1308 = dma.vmem_to_hbm [thread:$0]  %s1306, 128, %s1303, %s1292
        $region108: #{tpu_custom_call.1} parent=71 // pred_fallthru
          _
      $region72: #{tpu_custom_call.1} parent=5 // pred_fallthru
        _
      %p1309 = scmp.le.s32.totalorder 2, %s27
      // Predicated region
      $region109: #{tpu_custom_call.1} parent=5 // pred_check
        %p1310 = pneg %p1309
      $region110: #{tpu_custom_call.1} parent=5 // pred_check_branch
        %1312 = sbr.rel (%p1310) target = $region112
      $region111: #{tpu_custom_call.1} parent=5 // pred_region
        %s1313 = ssub.s32 %s27, 2
        // Predicated region
        $region113: #{tpu_custom_call.1} parent=111 // pred_check
          %p1314 = pneg %p334
        $region114: #{tpu_custom_call.1} parent=111 // pred_check_branch
          %1316 = sbr.rel (%p1314) target = $region116
        $region115: #{tpu_custom_call.1} parent=111 // pred_region
          %s1317 = sand.u32 %s319, 1
          %s1318 = scalar_lea.sflag [#allocation8], %s1317
          %s1319 = sand.u32 %s319, 1
          %s1320 = smul.addr %s1319, 8
          %s1321 = scalar_lea.vmem [#allocation20], %s1320
          %1322 = dma.done %s1318, 128
        $region116: #{tpu_custom_call.1} parent=111 // pred_fallthru
          _
      $region112: #{tpu_custom_call.1} parent=5 // pred_fallthru
        _
    $region6: #{tpu_custom_call.1} parent=1 // loop_footer
      %s31 = sadd.s32 1, %s27
    $region7: #{tpu_custom_call.1} parent=1 // loop_footer_branch
      %26 = sbr.rel target = $region3
    $region8: #{tpu_custom_call.1} parent=1 // loop_exit
      _
    %1323 = vsyncpa [#allocation7], 1
    %s1324 = scalar_lea.sflag [#allocation7], 1
    %1325 = vsyncpa %s1324, 1
    %1326 = vsyncpa [#allocation10], 1
    %1327 = vsyncpa [#allocation13], 1
    %1328 = vsyncpa [#allocation16], 1
    %1329 = vsyncpa [#allocation19], 1
    %1330 = vsyncpa [#allocation8], 1
    %s1331 = scalar_lea.sflag [#allocation8], 1
    %1332 = vsyncpa %s1331, 1

// kernel: tpu_custom_call.1
$region0: #{tpu_custom_call.1}
  #allocation0 [shape = 'u32[]', space=smem, size = 0x4, offset = 0x4, fixed_abs, tag = 'smem constant byte address 0x4 - core index']
  #allocation1 [shape = 'u32[144,128]{1,0:T(1,128)}', space=vmem, size = 0x12000, scoped, tag = 'internal scratch']
  #allocation2 [shape = 'f32[1,8,32]{2,1,0:T(8,128)}', space=vmem, size = 0x1000, scoped, tag = 'scratch operand']
  #allocation3 [shape = 'f32[1,8,32]{2,1,0:T(8,128)}', space=vmem, size = 0x1000, scoped, tag = 'scratch operand']
  #allocation4 [shape = 'f32[1,8,32]{2,1,0:T(8,128)}', space=vmem, size = 0x1000, scoped, tag = 'scratch operand']
  #allocation5 [shape = 'f32[1,8,32]{2,1,0:T(8,128)}', space=vmem, size = 0x1000, scoped, tag = 'scratch operand']
  %s0 = inlined_call_operand.vmem [shape: f32[2,8,32], index: 0, kind: input, shape index: {}]
  %s1 = inlined_call_operand.hbm [shape: f32[1,32], index: 1, kind: input, shape index: {}]
  %s2 = inlined_call_operand.hbm [shape: f32[1,32], index: 2, kind: input, shape index: {}]
  %s3 = inlined_call_operand.hbm [shape: f32[1,32], index: 3, kind: input, shape index: {}]
  %s4 = inlined_call_operand.hbm [shape: f32[1,32], index: 4, kind: input, shape index: {}]
  %s5 = inlined_call_operand.vmem [shape: bf16[32,96], index: 5, kind: input, shape index: {}]
  %s6 = inlined_call_operand.vmem [shape: bf16[32,96], index: 6, kind: input, shape index: {}]
  %s7 = inlined_call_operand.hbm [shape: bf16[32,32], index: 7, kind: input, shape index: {}]
  %s8 = inlined_call_operand.hbm [shape: f32[1,32], index: 8, kind: input, shape index: {}]
  %s9 = inlined_call_operand.hbm [shape: f32[1,32], index: 9, kind: input, shape index: {}]
  %s10 = inlined_call_operand.vmem [shape: bf16[32,96], index: 10, kind: input, shape index: {}]
  %s11 = inlined_call_operand.hbm [shape: bf16[32,96], index: 11, kind: input, shape index: {}]
  %s12 = inlined_call_operand.vmem [shape: bf16[64,32], index: 12, kind: input, shape index: {}]
  %s13 = inlined_call_operand.hbm [shape: f32[2,8,32], index: 13, kind: output, shape index: {}]
  %s14 = sld [smem:[#allocation0]]
  $region117: #{tpu_custom_call.1} parent=0
    _
  %s16 = ssub.s32 1, %s14
  %s17 = scalar_select 0, %s16, %s14
  $region1: #{tpu_custom_call.1} parent=0
    #allocation6 [shape = 'u8[512]{0}', space=vmem, size = 0x400, scoped, tag = 'input window, operand 1, single buffered']
    #allocation7 [shape = 's32[2]{0}', space=sflag, size = 0x8, scoped, tag = 'scoped memory for tpu_custom_call.1']
    #allocation8 [shape = 's32[2]{0}', space=sflag, size = 0x8, scoped, tag = 'scoped memory for tpu_custom_call.1']
    #allocation9 [shape = 'u8[512]{0}', space=vmem, size = 0x400, scoped, tag = 'input window, operand 2, single buffered']
    #allocation10 [shape = 's32[1]{0}', space=sflag, size = 0x4, scoped, tag = 'scoped memory for tpu_custom_call.1']
    #allocation11 [shape = 'u8[512]{0}', space=vmem, size = 0x400, scoped, tag = 'input window, operand 3, single buffered']
    #allocation12 [shape = 'u8[512]{0}', space=vmem, size = 0x400, scoped, tag = 'input window, operand 4, single buffered']
    #allocation13 [shape = 's32[1]{0}', space=sflag, size = 0x4, scoped, tag = 'scoped memory for tpu_custom_call.1']
    #allocation14 [shape = 'u8[8192]{0}', space=vmem, size = 0x2000, scoped, tag = 'input window, operand 7, single buffered']
    #allocation15 [shape = 'u8[512]{0}', space=vmem, size = 0x400, scoped, tag = 'input window, operand 8, single buffered']
    #allocation16 [shape = 's32[1]{0}', space=sflag, size = 0x4, scoped, tag = 'scoped memory for tpu_custom_call.1']
    #allocation17 [shape = 'u8[512]{0}', space=vmem, size = 0x400, scoped, tag = 'input window, operand 9, single buffered']
    #allocation18 [shape = 'u8[8192]{0}', space=vmem, size = 0x2000, scoped, tag = 'input window, operand 11, single buffered']
    #allocation19 [shape = 's32[1]{0}', space=sflag, size = 0x4, scoped, tag = 'scoped memory for tpu_custom_call.1']
    #allocation20 [shape = 'u8[8192]{0}', space=vmem, size = 0x2000, scoped, tag = 'output window, operand 0']
    %18 = vsyncpa [#allocation7], 0
    %19 = vsyncpa [#allocation10], 0
    %20 = vsyncpa [#allocation13], 0
    %21 = vsyncpa [#allocation16], 0
    %22 = vsyncpa [#allocation19], 0
    %23 = vsyncpa [#allocation8], 0
    %s24 = scalar_lea.sflag [#allocation8], 1
    %25 = vsyncpa %s24, 0
    loop: start=0, step=1, limit=4
    $region2: #{tpu_custom_call.1} parent=1 // loop_pre_header
      _
    $region3: #{tpu_custom_call.1} parent=1 // loop_header
      %s27 = sphi 0, %s31
      %p28 = scmp.ge.s32.totalorder %s27, 4
      %s37 = sphi 0, %s39
      %s40 = sphi 0, %s37
      %s41 = sphi 0, %s40
      %s57 = sphi 0, %s41
      %s61 = sphi 0, %s61
      %s63 = sphi 0, %s61
      %s64 = sphi 0, %s63
      %s78 = sphi 0, %s64
      %s82 = sphi 0, %s82
      %s84 = sphi 0, %s82
      %s85 = sphi 0, %s84
      %s99 = sphi 0, %s85
      %s103 = sphi 0, %s103
      %s105 = sphi 0, %s103
      %s106 = sphi 0, %s105
      %s120 = sphi 0, %s106
      %s124 = sphi 0, %s124
      %s126 = sphi 0, %s124
      %s127 = sphi 0, %s126
      %s141 = sphi 0, %s127
      %s145 = sphi 0, %s145
      %s147 = sphi 0, %s145
      %s148 = sphi 0, %s147
      %s162 = sphi 0, %s148
      %s166 = sphi 0, %s166
      %s168 = sphi 0, %s166
      %s169 = sphi 0, %s168
      %s183 = sphi 0, %s169
      %s187 = sphi 0, %s187
      %s189 = sphi 0, %s187
      %s190 = sphi 0, %s189
      %s204 = sphi 0, %s190
      %s208 = sphi 0, %s208
      %s210 = sphi 0, %s208
      %s211 = sphi 0, %s210
      %s225 = sphi 0, %s211
      %s229 = sphi 0, %s229
      %s231 = sphi 0, %s229
      %s232 = sphi 0, %s231
      %s246 = sphi 0, %s232
      %s250 = sphi 0, %s250
      %s252 = sphi 0, %s250
      %s253 = sphi 0, %s252
      %s267 = sphi 0, %s253
      %s271 = sphi 0, %s271
      %s273 = sphi 0, %s271
      %s274 = sphi 0, %s273
      %s288 = sphi 0, %s274
      %s292 = sphi 0, %s292
      %s294 = sphi 0, %s292
      %s295 = sphi 0, %s294
      %s309 = sphi 0, %s295
      %s315 = sphi 0, %s317
      %s318 = sphi 0, %s315
      %s319 = sphi 0, %s318
      %s335 = sphi 0, %s319
    $region4: #{tpu_custom_call.1} parent=1 // loop_header_branch
      %30 = sbr.rel (%p28) target = $region8
    $region5: #{tpu_custom_call.1} parent=1 // loop_body
      %s32 = ssub.s32 %s27, 1
      %s33 = ssub.s32 %s27, 2
      %s34 = sadd.s32 %s27, 1
      %s35 = ssub.s32 %s27, %s34
      %p36 = scmp.eq.s32.totalorder %s35, 0
      %s38 = sadd.s32 %s37, 1
      %s39 = scalar_select %p36, %s37, %s38
      %p42 = pneg %p36
      %p43 = scmp.eq.s32.totalorder %s27, 1
      %p44 = por %p42, %p43
      %p45 = scmp.ne.s32.totalorder %s37, %s40
      %p46 = scmp.eq.s32.totalorder %s27, 0
      %p47 = por %p45, %p46
      %p48 = scmp.ne.s32.totalorder %s37, %s40
      %p49 = scmp.eq.s32.totalorder %s32, 1
      %p50 = por %p48, %p49
      %p51 = scmp.ne.s32.totalorder %s40, %s41
      %p52 = scmp.eq.s32.totalorder %s32, 0
      %p53 = por %p51, %p52
      %p54 = scmp.ne.s32.totalorder %s40, %s41
      %p55 = scmp.eq.s32.totalorder %s33, 1
      %p56 = por %p54, %p55
      %p58 = scmp.ne.s32.totalorder %s41, %s57
      %p59 = scmp.eq.s32.totalorder %s33, 0
      %p60 = por %p58, %p59
      %s62 = sadd.s32 %s61, 1
      %p65 = scmp.eq.s32.totalorder %s27, 1
      %p66 = scmp.ne.s32.totalorder %s61, %s63
      %p67 = scmp.eq.s32.totalorder %s27, 0
      %p68 = por %p66, %p67
      %p69 = scmp.ne.s32.totalorder %s61, %s63
      %p70 = scmp.eq.s32.totalorder %s32, 1
      %p71 = por %p69, %p70
      %p72 = scmp.ne.s32.totalorder %s63, %s64
      %p73 = scmp.eq.s32.totalorder %s32, 0
      %p74 = por %p72, %p73
      %p75 = scmp.ne.s32.totalorder %s63, %s64
      %p76 = scmp.eq.s32.totalorder %s33, 1
      %p77 = por %p75, %p76
      %p79 = scmp.ne.s32.totalorder %s64, %s78
      %p80 = scmp.eq.s32.totalorder %s33, 0
      %p81 = por %p79, %p80
      %s83 = sadd.s32 %s82, 1
      %p86 = scmp.eq.s32.totalorder %s27, 1
      %p87 = scmp.ne.s32.totalorder %s82, %s84
      %p88 = scmp.eq.s32.totalorder %s27, 0
      %p89 = por %p87, %p88
      %p90 = scmp.ne.s32.totalorder %s82, %s84
      %p91 = scmp.eq.s32.totalorder %s32, 1
      %p92 = por %p90, %p91
      %p93 = scmp.ne.s32.totalorder %s84, %s85
      %p94 = scmp.eq.s32.totalorder %s32, 0
      %p95 = por %p93, %p94
      %p96 = scmp.ne.s32.totalorder %s84, %s85
      %p97 = scmp.eq.s32.totalorder %s33, 1
      %p98 = por %p96, %p97
      %p100 = scmp.ne.s32.totalorder %s85, %s99
      %p101 = scmp.eq.s32.totalorder %s33, 0
      %p102 = por %p100, %p101
      %s104 = sadd.s32 %s103, 1
      %p107 = scmp.eq.s32.totalorder %s27, 1
      %p108 = scmp.ne.s32.totalorder %s103, %s105
      %p109 = scmp.eq.s32.totalorder %s27, 0
      %p110 = por %p108, %p109
      %p111 = scmp.ne.s32.totalorder %s103, %s105
      %p112 = scmp.eq.s32.totalorder %s32, 1
      %p113 = por %p111, %p112
      %p114 = scmp.ne.s32.totalorder %s105, %s106
      %p115 = scmp.eq.s32.totalorder %s32, 0
      %p116 = por %p114, %p115
      %p117 = scmp.ne.s32.totalorder %s105, %s106
      %p118 = scmp.eq.s32.totalorder %s33, 1
      %p119 = por %p117, %p118
      %p121 = scmp.ne.s32.totalorder %s106, %s120
      %p122 = scmp.eq.s32.totalorder %s33, 0
      %p123 = por %p121, %p122
      %s125 = sadd.s32 %s124, 1
      %p128 = scmp.eq.s32.totalorder %s27, 1
      %p129 = scmp.ne.s32.totalorder %s124, %s126
      %p130 = scmp.eq.s32.totalorder %s27, 0
      %p131 = por %p129, %p130
      %p132 = scmp.ne.s32.totalorder %s124, %s126
      %p133 = scmp.eq.s32.totalorder %s32, 1
      %p134 = por %p132, %p133
      %p135 = scmp.ne.s32.totalorder %s126, %s127
      %p136 = scmp.eq.s32.totalorder %s32, 0
      %p137 = por %p135, %p136
      %p138 = scmp.ne.s32.totalorder %s126, %s127
      %p139 = scmp.eq.s32.totalorder %s33, 1
      %p140 = por %p138, %p139
      %p142 = scmp.ne.s32.totalorder %s127, %s141
      %p143 = scmp.eq.s32.totalorder %s33, 0
      %p144 = por %p142, %p143
      %s146 = sadd.s32 %s145, 1
      %p149 = scmp.eq.s32.totalorder %s27, 1
      %p150 = scmp.ne.s32.totalorder %s145, %s147
      %p151 = scmp.eq.s32.totalorder %s27, 0
      %p152 = por %p150, %p151
      %p153 = scmp.ne.s32.totalorder %s145, %s147
      %p154 = scmp.eq.s32.totalorder %s32, 1
      %p155 = por %p153, %p154
      %p156 = scmp.ne.s32.totalorder %s147, %s148
      %p157 = scmp.eq.s32.totalorder %s32, 0
      %p158 = por %p156, %p157
      %p159 = scmp.ne.s32.totalorder %s147, %s148
      %p160 = scmp.eq.s32.totalorder %s33, 1
      %p161 = por %p159, %p160
      %p163 = scmp.ne.s32.totalorder %s148, %s162
      %p164 = scmp.eq.s32.totalorder %s33, 0
      %p165 = por %p163, %p164
      %s167 = sadd.s32 %s166, 1
      %p170 = scmp.eq.s32.totalorder %s27, 1
      %p171 = scmp.ne.s32.totalorder %s166, %s168
      %p172 = scmp.eq.s32.totalorder %s27, 0
      %p173 = por %p171, %p172
      %p174 = scmp.ne.s32.totalorder %s166, %s168
      %p175 = scmp.eq.s32.totalorder %s32, 1
      %p176 = por %p174, %p175
      %p177 = scmp.ne.s32.totalorder %s168, %s169
      %p178 = scmp.eq.s32.totalorder %s32, 0
      %p179 = por %p177, %p178
      %p180 = scmp.ne.s32.totalorder %s168, %s169
      %p181 = scmp.eq.s32.totalorder %s33, 1
      %p182 = por %p180, %p181
      %p184 = scmp.ne.s32.totalorder %s169, %s183
      %p185 = scmp.eq.s32.totalorder %s33, 0
      %p186 = por %p184, %p185
      %s188 = sadd.s32 %s187, 1
      %p191 = scmp.eq.s32.totalorder %s27, 1
      %p192 = scmp.ne.s32.totalorder %s187, %s189
      %p193 = scmp.eq.s32.totalorder %s27, 0
      %p194 = por %p192, %p193
      %p195 = scmp.ne.s32.totalorder %s187, %s189
      %p196 = scmp.eq.s32.totalorder %s32, 1
      %p197 = por %p195, %p196
      %p198 = scmp.ne.s32.totalorder %s189, %s190
      %p199 = scmp.eq.s32.totalorder %s32, 0
      %p200 = por %p198, %p199
      %p201 = scmp.ne.s32.totalorder %s189, %s190
      %p202 = scmp.eq.s32.totalorder %s33, 1
      %p203 = por %p201, %p202
      %p205 = scmp.ne.s32.totalorder %s190, %s204
      %p206 = scmp.eq.s32.totalorder %s33, 0
      %p207 = por %p205, %p206
      %s209 = sadd.s32 %s208, 1
      %p212 = scmp.eq.s32.totalorder %s27, 1
      %p213 = scmp.ne.s32.totalorder %s208, %s210
      %p214 = scmp.eq.s32.totalorder %s27, 0
      %p215 = por %p213, %p214
      %p216 = scmp.ne.s32.totalorder %s208, %s210
      %p217 = scmp.eq.s32.totalorder %s32, 1
      %p218 = por %p216, %p217
      %p219 = scmp.ne.s32.totalorder %s210, %s211
      %p220 = scmp.eq.s32.totalorder %s32, 0
      %p221 = por %p219, %p220
      %p222 = scmp.ne.s32.totalorder %s210, %s211
      %p223 = scmp.eq.s32.totalorder %s33, 1
      %p224 = por %p222, %p223
      %p226 = scmp.ne.s32.totalorder %s211, %s225
      %p227 = scmp.eq.s32.totalorder %s33, 0
      %p228 = por %p226, %p227
      %s230 = sadd.s32 %s229, 1
      %p233 = scmp.eq.s32.totalorder %s27, 1
      %p234 = scmp.ne.s32.totalorder %s229, %s231
      %p235 = scmp.eq.s32.totalorder %s27, 0
      %p236 = por %p234, %p235
      %p237 = scmp.ne.s32.totalorder %s229, %s231
      %p238 = scmp.eq.s32.totalorder %s32, 1
      %p239 = por %p237, %p238
      %p240 = scmp.ne.s32.totalorder %s231, %s232
      %p241 = scmp.eq.s32.totalorder %s32, 0
      %p242 = por %p240, %p241
      %p243 = scmp.ne.s32.totalorder %s231, %s232
      %p244 = scmp.eq.s32.totalorder %s33, 1
      %p245 = por %p243, %p244
      %p247 = scmp.ne.s32.totalorder %s232, %s246
      %p248 = scmp.eq.s32.totalorder %s33, 0
      %p249 = por %p247, %p248
      %s251 = sadd.s32 %s250, 1
      %p254 = scmp.eq.s32.totalorder %s27, 1
      %p255 = scmp.ne.s32.totalorder %s250, %s252
      %p256 = scmp.eq.s32.totalorder %s27, 0
      %p257 = por %p255, %p256
      %p258 = scmp.ne.s32.totalorder %s250, %s252
      %p259 = scmp.eq.s32.totalorder %s32, 1
      %p260 = por %p258, %p259
      %p261 = scmp.ne.s32.totalorder %s252, %s253
      %p262 = scmp.eq.s32.totalorder %s32, 0
      %p263 = por %p261, %p262
      %p264 = scmp.ne.s32.totalorder %s252, %s253
      %p265 = scmp.eq.s32.totalorder %s33, 1
      %p266 = por %p264, %p265
      %p268 = scmp.ne.s32.totalorder %s253, %s267
      %p269 = scmp.eq.s32.totalorder %s33, 0
      %p270 = por %p268, %p269
      %s272 = sadd.s32 %s271, 1
      %p275 = scmp.eq.s32.totalorder %s27, 1
      %p276 = scmp.ne.s32.totalorder %s271, %s273
      %p277 = scmp.eq.s32.totalorder %s27, 0
      %p278 = por %p276, %p277
      %p279 = scmp.ne.s32.totalorder %s271, %s273
      %p280 = scmp.eq.s32.totalorder %s32, 1
      %p281 = por %p279, %p280
      %p282 = scmp.ne.s32.totalorder %s273, %s274
      %p283 = scmp.eq.s32.totalorder %s32, 0
      %p284 = por %p282, %p283
      %p285 = scmp.ne.s32.totalorder %s273, %s274
      %p286 = scmp.eq.s32.totalorder %s33, 1
      %p287 = por %p285, %p286
      %p289 = scmp.ne.s32.totalorder %s274, %s288
      %p290 = scmp.eq.s32.totalorder %s33, 0
      %p291 = por %p289, %p290
      %s293 = sadd.s32 %s292, 1
      %p296 = scmp.eq.s32.totalorder %s27, 1
      %p297 = scmp.ne.s32.totalorder %s292, %s294
      %p298 = scmp.eq.s32.totalorder %s27, 0
      %p299 = por %p297, %p298
      %p300 = scmp.ne.s32.totalorder %s292, %s294
      %p301 = scmp.eq.s32.totalorder %s32, 1
      %p302 = por %p300, %p301
      %p303 = scmp.ne.s32.totalorder %s294, %s295
      %p304 = scmp.eq.s32.totalorder %s32, 0
      %p305 = por %p303, %p304
      %p306 = scmp.ne.s32.totalorder %s294, %s295
      %p307 = scmp.eq.s32.totalorder %s33, 1
      %p308 = por %p306, %p307
      %p310 = scmp.ne.s32.totalorder %s295, %s309
      %p311 = scmp.eq.s32.totalorder %s33, 0
      %p312 = por %p310, %p311
      %s313 = ssub.s32 %s27, %s34
      %p314 = scmp.eq.s32.totalorder %s313, 0
      %s316 = sadd.s32 %s315, 1
      %s317 = scalar_select %p314, %s315, %s316
      %p320 = pneg %p314
      %p321 = scmp.eq.s32.totalorder %s27, 1
      %p322 = por %p320, %p321
      %p323 = scmp.ne.s32.totalorder %s315, %s318
      %p324 = scmp.eq.s32.totalorder %s27, 0
      %p325 = por %p323, %p324
      %p326 = scmp.ne.s32.totalorder %s315, %s318
      %p327 = scmp.eq.s32.totalorder %s32, 1
      %p328 = por %p326, %p327
      %p329 = scmp.ne.s32.totalorder %s318, %s319
      %p330 = scmp.eq.s32.totalorder %s32, 0
      %p331 = por %p329, %p330
      %p332 = scmp.ne.s32.totalorder %s318, %s319
      %p333 = scmp.eq.s32.totalorder %s33, 1
      %p334 = por %p332, %p333
      %p336 = scmp.ne.s32.totalorder %s319, %s335
      %p337 = scmp.eq.s32.totalorder %s33, 0
      %p338 = por %p336, %p337
      %p339 = scmp.le.s32.totalorder 1, %s27
      %p340 = scmp.lt.s32.totalorder %s27, 3
      %p341 = pnand %p339, %p340
      %p342 = pneg %p341
      // Predicated region
      $region9: #{tpu_custom_call.1} parent=5 // pred_check
        _
      $region10: #{tpu_custom_call.1} parent=5 // pred_check_branch
        %344 = sbr.rel (%p341) target = $region12
      $region11: #{tpu_custom_call.1} parent=5 // pred_region
        %s345 = ssub.s32 %s27, 1
        // Predicated region
        $region13: #{tpu_custom_call.1} parent=11 // pred_check
          %p346 = pneg %p74
        $region14: #{tpu_custom_call.1} parent=11 // pred_check_branch
          %348 = sbr.rel (%p346) target = $region16
        $region15: #{tpu_custom_call.1} parent=11 // pred_region
          %s350 = ssub.s32 16, 16
          %351 = vsyncadd [#allocation7], %s350
          %s353 = sshll.u32 [#allocation6], 4
          %s354 = int_to_ptr.vmem [resolvable:$true] %s353
          %356 = dma.hbm_to_vmem [thread:$0]  %s1, 16, %s354, [#allocation7]
        $region16: #{tpu_custom_call.1} parent=11 // pred_fallthru
          _
        // Predicated region
        $region17: #{tpu_custom_call.1} parent=11 // pred_check
          %p357 = pneg %p95
        $region18: #{tpu_custom_call.1} parent=11 // pred_check_branch
          %359 = sbr.rel (%p357) target = $region20
        $region19: #{tpu_custom_call.1} parent=11 // pred_region
          %s361 = ssub.s32 16, 16
          %362 = vsyncadd [#allocation10], %s361
          %s364 = sshll.u32 [#allocation9], 4
          %s365 = int_to_ptr.vmem [resolvable:$true] %s364
          %367 = dma.hbm_to_vmem [thread:$0]  %s2, 16, %s365, [#allocation10]
        $region20: #{tpu_custom_call.1} parent=11 // pred_fallthru
          _
        // Predicated region
        $region21: #{tpu_custom_call.1} parent=11 // pred_check
          %p368 = pneg %p116
        $region22: #{tpu_custom_call.1} parent=11 // pred_check_branch
          %370 = sbr.rel (%p368) target = $region24
        $region23: #{tpu_custom_call.1} parent=11 // pred_region
          %s372 = ssub.s32 16, 16
          %373 = vsyncadd [#allocation10], %s372
          %s375 = sshll.u32 [#allocation11], 4
          %s376 = int_to_ptr.vmem [resolvable:$true] %s375
          %378 = dma.hbm_to_vmem [thread:$0]  %s3, 16, %s376, [#allocation10]
        $region24: #{tpu_custom_call.1} parent=11 // pred_fallthru
          _
        // Predicated region
        $region25: #{tpu_custom_call.1} parent=11 // pred_check
          %p379 = pneg %p137
        $region26: #{tpu_custom_call.1} parent=11 // pred_check_branch
          %381 = sbr.rel (%p379) target = $region28
        $region27: #{tpu_custom_call.1} parent=11 // pred_region
          %s383 = ssub.s32 16, 16
          %384 = vsyncadd [#allocation13], %s383
          %s386 = sshll.u32 [#allocation12], 4
          %s387 = int_to_ptr.vmem [resolvable:$true] %s386
          %389 = dma.hbm_to_vmem [thread:$0]  %s4, 16, %s387, [#allocation13]
        $region28: #{tpu_custom_call.1} parent=11 // pred_fallthru
          _
        // Predicated region
        $region29: #{tpu_custom_call.1} parent=11 // pred_check
          %p390 = pneg %p158
        $region30: #{tpu_custom_call.1} parent=11 // pred_check_branch
          %392 = sbr.rel (%p390) target = $region32
        $region31: #{tpu_custom_call.1} parent=11 // pred_region
          _
        $region32: #{tpu_custom_call.1} parent=11 // pred_fallthru
          _
        // Predicated region
        $region33: #{tpu_custom_call.1} parent=11 // pred_check
          %p393 = pneg %p179
        $region34: #{tpu_custom_call.1} parent=11 // pred_check_branch
          %395 = sbr.rel (%p393) target = $region36
        $region35: #{tpu_custom_call.1} parent=11 // pred_region
          _
        $region36: #{tpu_custom_call.1} parent=11 // pred_fallthru
          _
        // Predicated region
        $region37: #{tpu_custom_call.1} parent=11 // pred_check
          %p396 = pneg %p200
        $region38: #{tpu_custom_call.1} parent=11 // pred_check_branch
          %398 = sbr.rel (%p396) target = $region40
        $region39: #{tpu_custom_call.1} parent=11 // pred_region
          %s400 = ssub.s32 256, 256
          %401 = vsyncadd [#allocation13], %s400
          %s402 = sshll.u32 [#allocation14], 4
          %s403 = int_to_ptr.vmem [resolvable:$true] %s402
          %408 = dma.hbm_to_vmem [thread:$0]  %s7, 256, %s403, [#allocation13], 64, 64, 4
        $region40: #{tpu_custom_call.1} parent=11 // pred_fallthru
          _
        // Predicated region
        $region41: #{tpu_custom_call.1} parent=11 // pred_check
          %p409 = pneg %p221
        $region42: #{tpu_custom_call.1} parent=11 // pred_check_branch
          %411 = sbr.rel (%p409) target = $region44
        $region43: #{tpu_custom_call.1} parent=11 // pred_region
          %s413 = ssub.s32 16, 16
          %414 = vsyncadd [#allocation16], %s413
          %s416 = sshll.u32 [#allocation15], 4
          %s417 = int_to_ptr.vmem [resolvable:$true] %s416
          %419 = dma.hbm_to_vmem [thread:$0]  %s8, 16, %s417, [#allocation16]
        $region44: #{tpu_custom_call.1} parent=11 // pred_fallthru
          _
        // Predicated region
        $region45: #{tpu_custom_call.1} parent=11 // pred_check
          %p420 = pneg %p242
        $region46: #{tpu_custom_call.1} parent=11 // pred_check_branch
          %422 = sbr.rel (%p420) target = $region48
        $region47: #{tpu_custom_call.1} parent=11 // pred_region
          %s424 = ssub.s32 16, 16
          %425 = vsyncadd [#allocation16], %s424
          %s427 = sshll.u32 [#allocation17], 4
          %s428 = int_to_ptr.vmem [resolvable:$true] %s427
          %430 = dma.hbm_to_vmem [thread:$0]  %s9, 16, %s428, [#allocation16]
        $region48: #{tpu_custom_call.1} parent=11 // pred_fallthru
          _
        // Predicated region
        $region49: #{tpu_custom_call.1} parent=11 // pred_check
          %p431 = pneg %p263
        $region50: #{tpu_custom_call.1} parent=11 // pred_check_branch
          %433 = sbr.rel (%p431) target = $region52
        $region51: #{tpu_custom_call.1} parent=11 // pred_region
          _
        $region52: #{tpu_custom_call.1} parent=11 // pred_fallthru
          _
        // Predicated region
        $region53: #{tpu_custom_call.1} parent=11 // pred_check
          %p434 = pneg %p284
        $region54: #{tpu_custom_call.1} parent=11 // pred_check_branch
          %436 = sbr.rel (%p434) target = $region56
        $region55: #{tpu_custom_call.1} parent=11 // pred_region
          %s438 = ssub.s32 256, 256
          %439 = vsyncadd [#allocation19], %s438
          %s440 = sshll.u32 [#allocation18], 4
          %s441 = int_to_ptr.vmem [resolvable:$true] %s440
          %446 = dma.hbm_to_vmem [thread:$0]  %s11, 256, %s441, [#allocation19], 64, 64, 4
        $region56: #{tpu_custom_call.1} parent=11 // pred_fallthru
          _
        // Predicated region
        $region57: #{tpu_custom_call.1} parent=11 // pred_check
          %p447 = pneg %p305
        $region58: #{tpu_custom_call.1} parent=11 // pred_check_branch
          %449 = sbr.rel (%p447) target = $region60
        $region59: #{tpu_custom_call.1} parent=11 // pred_region
          _
        $region60: #{tpu_custom_call.1} parent=11 // pred_fallthru
          _
      $region12: #{tpu_custom_call.1} parent=5 // pred_fallthru
        _
      %p450 = scmp.lt.s32.totalorder %s27, 2
      // Predicated region
      $region61: #{tpu_custom_call.1} parent=5 // pred_check
        %p451 = pneg %p450
      $region62: #{tpu_custom_call.1} parent=5 // pred_check_branch
        %453 = sbr.rel (%p451) target = $region64
      $region63: #{tpu_custom_call.1} parent=5 // pred_region
        // Predicated region
        $region65: #{tpu_custom_call.1} parent=63 // pred_check
          %p454 = pneg %p47
        $region66: #{tpu_custom_call.1} parent=63 // pred_check_branch
          %456 = sbr.rel (%p454) target = $region68
        $region67: #{tpu_custom_call.1} parent=63 // pred_region
          %p457 = scmp.lt.s32.totalorder %s27, 1
          %s458 = scalar_select %p457, %s27, 1
          %s459 = smul.addr %s458, 8
          %s460 = scalar_lea.vmem %s0, %s459
        $region68: #{tpu_custom_call.1} parent=63 // pred_fallthru
          _
      $region64: #{tpu_custom_call.1} parent=5 // pred_fallthru
        _
      %p461 = scmp.le.s32.totalorder 1, %s27
      %p462 = scmp.lt.s32.totalorder %s27, 3
      %p463 = pnand %p461, %p462
      %p464 = pneg %p463
      // Predicated region
      $region69: #{tpu_custom_call.1} parent=5 // pred_check
        _
      $region70: #{tpu_custom_call.1} parent=5 // pred_check_branch
        %466 = sbr.rel (%p463) target = $region72
      $region71: #{tpu_custom_call.1} parent=5 // pred_region
        %s467 = ssub.s32 %s27, 1
        // Predicated region
        $region73: #{tpu_custom_call.1} parent=71 // pred_check
          %p468 = pneg %p74
        $region74: #{tpu_custom_call.1} parent=71 // pred_check_branch
          %470 = sbr.rel (%p468) target = $region76
        $region75: #{tpu_custom_call.1} parent=71 // pred_region
          %471 = dma.done [#allocation7], 16
        $region76: #{tpu_custom_call.1} parent=71 // pred_fallthru
          _
        // Predicated region
        $region77: #{tpu_custom_call.1} parent=71 // pred_check
          %p472 = pneg %p95
        $region78: #{tpu_custom_call.1} parent=71 // pred_check_branch
          %474 = sbr.rel (%p472) target = $region80
        $region79: #{tpu_custom_call.1} parent=71 // pred_region
          %475 = dma.done [#allocation10], 16
        $region80: #{tpu_custom_call.1} parent=71 // pred_fallthru
          _
        // Predicated region
        $region81: #{tpu_custom_call.1} parent=71 // pred_check
          %p476 = pneg %p116
        $region82: #{tpu_custom_call.1} parent=71 // pred_check_branch
          %478 = sbr.rel (%p476) target = $region84
        $region83: #{tpu_custom_call.1} parent=71 // pred_region
          %479 = dma.done [#allocation10], 16
        $region84: #{tpu_custom_call.1} parent=71 // pred_fallthru
          _
        // Predicated region
        $region85: #{tpu_custom_call.1} parent=71 // pred_check
          %p480 = pneg %p137
        $region86: #{tpu_custom_call.1} parent=71 // pred_check_branch
          %482 = sbr.rel (%p480) target = $region88
        $region87: #{tpu_custom_call.1} parent=71 // pred_region
          %483 = dma.done [#allocation13], 16
        $region88: #{tpu_custom_call.1} parent=71 // pred_fallthru
          _
        // Predicated region
        $region89: #{tpu_custom_call.1} parent=71 // pred_check
          %p484 = pneg %p200
        $region90: #{tpu_custom_call.1} parent=71 // pred_check_branch
          %486 = sbr.rel (%p484) target = $region92
        $region91: #{tpu_custom_call.1} parent=71 // pred_region
          %487 = dma.done [#allocation13], 256
        $region92: #{tpu_custom_call.1} parent=71 // pred_fallthru
          _
        // Predicated region
        $region93: #{tpu_custom_call.1} parent=71 // pred_check
          %p488 = pneg %p221
        $region94: #{tpu_custom_call.1} parent=71 // pred_check_branch
          %490 = sbr.rel (%p488) target = $region96
        $region95: #{tpu_custom_call.1} parent=71 // pred_region
          %491 = dma.done [#allocation16], 16
        $region96: #{tpu_custom_call.1} parent=71 // pred_fallthru
          _
        // Predicated region
        $region97: #{tpu_custom_call.1} parent=71 // pred_check
          %p492 = pneg %p242
        $region98: #{tpu_custom_call.1} parent=71 // pred_check_branch
          %494 = sbr.rel (%p492) target = $region100
        $region99: #{tpu_custom_call.1} parent=71 // pred_region
          %495 = dma.done [#allocation16], 16
        $region100: #{tpu_custom_call.1} parent=71 // pred_fallthru
          _
        // Predicated region
        $region101: #{tpu_custom_call.1} parent=71 // pred_check
          %p496 = pneg %p284
        $region102: #{tpu_custom_call.1} parent=71 // pred_check_branch
          %498 = sbr.rel (%p496) target = $region104
        $region103: #{tpu_custom_call.1} parent=71 // pred_region
          %499 = dma.done [#allocation19], 256
        $region104: #{tpu_custom_call.1} parent=71 // pred_fallthru
          _
        %p500 = scmp.lt.s32.totalorder %s32, 1
        %s501 = scalar_select %p500, %s32, 1
        %s502 = smul.addr %s501, 8
        %s503 = scalar_lea.vmem %s0, %s502
        %p504 = pneg %p53
        %p505 = pneg %p50
        %p506 = pneg %p74
        %p507 = pneg %p71
        %p508 = pneg %p95
        %p509 = pneg %p92
        %p510 = pneg %p116
        %p511 = pneg %p113
        %p512 = pneg %p137
        %p513 = pneg %p134
        %p514 = pneg %p158
        %p515 = pneg %p155
        %p516 = pneg %p179
        %p517 = pneg %p176
        %p518 = pneg %p200
        %p519 = pneg %p197
        %p520 = pneg %p221
        %p521 = pneg %p218
        %p522 = pneg %p242
        %p523 = pneg %p239
        %p524 = pneg %p263
        %p525 = pneg %p260
        %p526 = pneg %p284
        %p527 = pneg %p281
        %p528 = pneg %p305
        %p529 = pneg %p302
        %p530 = pneg %p331
        %p531 = pneg %p328
        %s532 = sand.u32 %s318, 1
        %s533 = scalar_lea.sflag [#allocation8], %s532
        %s534 = sand.u32 %s318, 1
        %s535 = smul.addr %s534, 8
        %s536 = scalar_lea.vmem [#allocation20], %s535
        %p537 = scmp.lt.s32.totalorder %s32, 1
        %s538 = scalar_select %p537, %s32, 1
        %s539 = smul.addr %s538, 8
        %s540 = scalar_lea.vmem %s0, %s539
        %v542 = vld [vmem:[%s540] sm:$0xff]
        %v543 = vlaneseq
        %v544 = vshrl.u32 %v543, 7
        %vm545 = vcmp.lt.s32.totalorder %v544, 0
        %v546 = vsub.s32 0, %v544
        %v547 = vsel %vm545, %v546, %v544
        %v548 = vshrl.u32 %v547, 3
        %v549 = vand.u32 %v547, 7
        %v550 = vsub.s32 0, %v549
        %v551 = vsel %vm545, %v550, %v549
        %vm552 = vcmp.ne.s32.totalorder %v551, 0
        %vm553 = vcmp.lt.s32.totalorder %v551, 0
        %vm554 = vmand %vm553, %vm552
        %v555 = vadd.s32 %v551, 8
        %v556 = vsel %vm554, %v555, %v551
        %vm557 = vcmp.ne.s32.totalorder %v556, 0
        %vm558 = vcmask 261120
        %v559 = vsel %vm558, %v542, 0.0
        %560 = vadd.xlane.f32.xlu0 %v559
        %v561 = vpop.xlane.xlu0 %560
        %v562 = vrcp.pop 32.0
        %v563 = vmul.f32 %v561, %v562
        %v564 = vsub.f32 %v542, %v563
        %v565 = vmul.f32 %v564, %v564
        %v566 = vsel %vm558, %v565, 0.0
        %567 = vadd.xlane.f32.xlu0 %v566
        %v568 = vpop.xlane.xlu0 %567
        %v569 = vmul.f32 %v568, %v562
        %v570 = vadd.f32 %v569, 1e-12
        %v571 = vrsqrt.pop %v570
        %v572 = vmul.f32 %v564, %v571
        %v573 = vld [vmem:[#allocation6] sm:$0x1]
        %v575 = vlaneseq
        %v576 = vshrl.u32 %v575, 7
        %v577 = vsub.s32 0, %v576
        %v578 = vrot.slane %v573, %v577
        %v580 = vmul.f32 %v572, %v578
        %v581 = vld [vmem:[#allocation9] sm:$0x1]
        %v583 = vlaneseq
        %v584 = vshrl.u32 %v583, 7
        %v585 = vsub.s32 0, %v584
        %v586 = vrot.slane %v581, %v585
        %v588 = vadd.f32 %v580, %v586
        %v589 = vrot.slane %v588, 7
        %v590 = vsel %vm557, 1, 0
        %vm591 = vcmp.eq.s32.totalorder %v590, 1
        %v592 = vsel %vm591, %v589, 0.0
        %v593 = vpack.c.bf16 %v588, %v588
        %v594 = vld [vmem:[%s5] sm:$0xf]
        %v595 = vld [vmem:[%s5 + $0x4] sm:$0xf]
        %v596 = vld [vmem:[%s5 + $0x8] sm:$0xf]
        %v597 = vld [vmem:[%s5 + $0xc] sm:$0xf]
        %v598 = vpack.c.bf16 %v592, %v592
        %v599 = vld [vmem:[%s6] sm:$0xf]
        %v600 = vld [vmem:[%s6 + $0x4] sm:$0xf]
        %v601 = vld [vmem:[%s6 + $0x8] sm:$0xf]
        %v602 = vld [vmem:[%s6 + $0xc] sm:$0xf]
        %v607 = vunpack.c.l.b16 %v599
        %v608 = vunpack.c.l.b16 %v600
        %v609 = vunpack.c.l.b16 %v601
        %v610 = vunpack.c.l.b16 %v602
        %v611 = vpack.c.b16 %v608, %v607
        %v612 = vpack.c.b16 %v610, %v609
        %v616 = vsel %vm558, %v598, 0
        %618 = vmatprep.subr.bf16.mxu0 0
        %619 = vmatpush1.bf16.msra.mxu0 0
        %620 = vmatprep.subr.bf16.mxu0 0
        %621 = vmatpush1.bf16.msra.mxu0 0
        %622 = vmatprep.subr.bf16.mxu0 0
        %623 = vmatpush1.bf16.msra.mxu0 0
        %624 = vmatprep.subr.bf16.mxu0 0
        %625 = vmatpush1.bf16.msra.mxu0 0
        %626 = vmatprep.subr.bf16.mxu0 0
        %627 = vmatpush1.bf16.msra.mxu0 0
        %628 = vmatprep.subr.bf16.mxu0 0
        %629 = vmatpush1.bf16.msra.mxu0 0
        %630 = vmatprep.subr.bf16.mxu0 0
        %631 = vmatpush1.bf16.msra.mxu0 %v612
        %632 = vmatprep.subr.bf16.mxu0 0
        %633 = vmatpush1.bf16.msra.mxu0 %v611
        %634 = vmatprep.subr.bf16.mxu0 0
        %635 = vmatpush2.bf16.msra.mxu0 0
        %636 = vmatprep.subr.bf16.mxu0 0
        %637 = vmatpush2.bf16.msra.mxu0 0
        %638 = vmatprep.subr.bf16.mxu0 0
        %639 = vmatpush2.bf16.msra.mxu0 0
        %640 = vmatprep.subr.bf16.mxu0 0
        %641 = vmatpush2.bf16.msra.mxu0 0
        %642 = vmatprep.subr.bf16.mxu0 0
        %643 = vmatpush2.bf16.msra.mxu0 0
        %644 = vmatprep.subr.bf16.mxu0 0
        %645 = vmatpush2.bf16.msra.mxu0 0
        %646 = vmatprep.subr.bf16.mxu0 0
        %647 = vmatpush2.bf16.msra.mxu0 0
        %648 = vmatprep.subr.bf16.mxu0 0
        %649 = vmatpush2.bf16.msra.mxu0 0
        %650 = vmatprep.mubr.bf16.mxu0 0
        %651 = vmatmul.mubr.bf16.gmra.mxu0 %v616
        %v652 = vpop.f32.mrf.mxu0
        %v653 = vadd.f32 0.0, %v652
        %v654 = vpop.f32.mrf.mxu0
        %v655 = vpop.f32.mrf.mxu0
        %v656 = vpop.f32.mrf.mxu0
        %657 = vdwg.mxu0
        %v662 = vunpack.c.l.b16 %v594
        %v663 = vunpack.c.l.b16 %v595
        %v664 = vunpack.c.l.b16 %v596
        %v665 = vunpack.c.l.b16 %v597
        %v666 = vpack.c.b16 %v663, %v662
        %v667 = vpack.c.b16 %v665, %v664
        %v671 = vsel %vm558, %v593, 0
        %673 = vmatprep.subr.bf16.mxu0 0
        %674 = vmatpush1.bf16.msra.mxu0 0
        %675 = vmatprep.subr.bf16.mxu0 0
        %676 = vmatpush1.bf16.msra.mxu0 0
        %677 = vmatprep.subr.bf16.mxu0 0
        %678 = vmatpush1.bf16.msra.mxu0 0
        %679 = vmatprep.subr.bf16.mxu0 0
        %680 = vmatpush1.bf16.msra.mxu0 0
        %681 = vmatprep.subr.bf16.mxu0 0
        %682 = vmatpush1.bf16.msra.mxu0 0
        %683 = vmatprep.subr.bf16.mxu0 0
        %684 = vmatpush1.bf16.msra.mxu0 0
        %685 = vmatprep.subr.bf16.mxu0 0
        %686 = vmatpush1.bf16.msra.mxu0 %v667
        %687 = vmatprep.subr.bf16.mxu0 0
        %688 = vmatpush1.bf16.msra.mxu0 %v666
        %689 = vmatprep.subr.bf16.mxu0 0
        %690 = vmatpush2.bf16.msra.mxu0 0
        %691 = vmatprep.subr.bf16.mxu0 0
        %692 = vmatpush2.bf16.msra.mxu0 0
        %693 = vmatprep.subr.bf16.mxu0 0
        %694 = vmatpush2.bf16.msra.mxu0 0
        %695 = vmatprep.subr.bf16.mxu0 0
        %696 = vmatpush2.bf16.msra.mxu0 0
        %697 = vmatprep.subr.bf16.mxu0 0
        %698 = vmatpush2.bf16.msra.mxu0 0
        %699 = vmatprep.subr.bf16.mxu0 0
        %700 = vmatpush2.bf16.msra.mxu0 0
        %701 = vmatprep.subr.bf16.mxu0 0
        %702 = vmatpush2.bf16.msra.mxu0 0
        %703 = vmatprep.subr.bf16.mxu0 0
        %704 = vmatpush2.bf16.msra.mxu0 0
        %705 = vmatprep.mubr.bf16.mxu0 0
        %706 = vmatmul.mubr.bf16.gmra.mxu0 %v671
        %v707 = vpop.f32.mrf.mxu0
        %v708 = vadd.f32 %v653, %v707
        %v709 = vpop.f32.mrf.mxu0
        %v710 = vpop.f32.mrf.mxu0
        %v711 = vpop.f32.mrf.mxu0
        %712 = vdwg.mxu0
        %713 = vst.msk [vmem:[#allocation2] sm:$0xff] %vm558, %v708
        %715 = vrot.lane.b32.xlu0 %v708, 96
        %v716 = vpop.permute.xlu0 %715
        %718 = vst.msk [vmem:[#allocation3] sm:$0xff] %vm558, %v716
        %v719 = vxor.u32 %v708, 2147483648
        %v720 = vmul.f32 %v719, 1.442695
        %v721 = vpow.pop %v720
        %v722 = vadd.f32 %v721, 1.0
        %v723 = vrcp.pop %v722
        %v724 = vmul.f32 1.0, %v723
        %726 = vrot.lane.b32.xlu0 %v724, 64
        %v727 = vpop.permute.xlu0 %726
        %729 = vst.msk [vmem:[#allocation4] sm:$0xff] %vm558, %v727
        %v730 = vld [vmem:[#allocation11] sm:$0x1]
        %v731 = vld [vmem:[#allocation12] sm:$0x1]
        %v732 = vld [vmem:[#allocation2] sm:$0x1]
        %v733 = vld [vmem:[#allocation3] sm:$0x1]
        %v734 = vadd.f32 %v731, %v732
        %v735 = vmax.f32 %v734, -1e+38
        %v736 = vsub.f32 -1e+38, %v735
        %v737 = vmul.f32 %v736, 1.442695
        %v738 = vpow.pop %v737
        %v739 = vsub.f32 %v734, %v735
        %v740 = vmul.f32 %v739, 1.442695
        %v741 = vpow.pop %v740
        %v742 = vld [vmem:[#allocation4] sm:$0x1]
        %v743 = vmul.f32 %v738, 0.0
        %v744 = vmul.f32 %v741, %v733
        %v745 = vadd.f32 %v743, %v744
        %v746 = vmul.f32 %v742, %v745
        %v747 = vadd.f32 %v743, %v741
        %v748 = vrcp.pop %v747
        %v749 = vmul.f32 %v746, %v748
        %vm750 = vcmask 253952
        %751 = vst.msk [vmem:[#allocation5] sm:$0x1] %vm750, %v749
        %v752 = vadd.f32 %v730, -1e+38
        %v753 = vmax.f32 %v752, %v732
        %v754 = vsub.f32 %v752, %v753
        %v755 = vmul.f32 %v754, 1.442695
        %v756 = vpow.pop %v755
        %v757 = vsub.f32 %v732, %v753
        %v758 = vmul.f32 %v757, 1.442695
        %v759 = vpow.pop %v758
        %v760 = vmul.f32 %v756, 0.0
        %v761 = vmul.f32 %v759, %v733
        %v762 = vadd.f32 %v760, %v761
        %v763 = vadd.f32 %v760, %v759
        %v764 = vld [vmem:[#allocation2 + $0x1] sm:$0x1]
        %v765 = vld [vmem:[#allocation3 + $0x1] sm:$0x1]
        %v766 = vadd.f32 %v731, %v764
        %v767 = vmax.f32 %v753, %v766
        %v768 = vsub.f32 %v753, %v767
        %v769 = vmul.f32 %v768, 1.442695
        %v770 = vpow.pop %v769
        %v771 = vsub.f32 %v766, %v767
        %v772 = vmul.f32 %v771, 1.442695
        %v773 = vpow.pop %v772
        %v774 = vld [vmem:[#allocation4 + $0x1] sm:$0x1]
        %v775 = vmul.f32 %v770, %v762
        %v776 = vmul.f32 %v773, %v765
        %v777 = vadd.f32 %v775, %v776
        %v778 = vmul.f32 %v774, %v777
        %v779 = vmul.f32 %v770, %v763
        %v780 = vadd.f32 %v779, %v773
        %v781 = vrcp.pop %v780
        %v782 = vmul.f32 %v778, %v781
        %783 = vst.msk [vmem:[#allocation5 + $0x1] sm:$0x1] %vm750, %v782
        %v784 = vadd.f32 %v753, %v730
        %v785 = vmax.f32 %v784, %v764
        %v786 = vsub.f32 %v784, %v785
        %v787 = vmul.f32 %v786, 1.442695
        %v788 = vpow.pop %v787
        %v789 = vsub.f32 %v764, %v785
        %v790 = vmul.f32 %v789, 1.442695
        %v791 = vpow.pop %v790
        %v792 = vmul.f32 %v788, %v762
        %v793 = vmul.f32 %v791, %v765
        %v794 = vadd.f32 %v792, %v793
        %v795 = vmul.f32 %v788, %v763
        %v796 = vadd.f32 %v795, %v791
        %v797 = vld [vmem:[#allocation2 + $0x2] sm:$0x1]
        %v798 = vld [vmem:[#allocation3 + $0x2] sm:$0x1]
        %v799 = vadd.f32 %v731, %v797
        %v800 = vmax.f32 %v785, %v799
        %v801 = vsub.f32 %v785, %v800
        %v802 = vmul.f32 %v801, 1.442695
        %v803 = vpow.pop %v802
        %v804 = vsub.f32 %v799, %v800
        %v805 = vmul.f32 %v804, 1.442695
        %v806 = vpow.pop %v805
        %v807 = vld [vmem:[#allocation4 + $0x2] sm:$0x1]
        %v808 = vmul.f32 %v803, %v794
        %v809 = vmul.f32 %v806, %v798
        %v810 = vadd.f32 %v808, %v809
        %v811 = vmul.f32 %v807, %v810
        %v812 = vmul.f32 %v803, %v796
        %v813 = vadd.f32 %v812, %v806
        %v814 = vrcp.pop %v813
        %v815 = vmul.f32 %v811, %v814
        %816 = vst.msk [vmem:[#allocation5 + $0x2] sm:$0x1] %vm750, %v815
        %v817 = vadd.f32 %v785, %v730
        %v818 = vmax.f32 %v817, %v797
        %v819 = vsub.f32 %v817, %v818
        %v820 = vmul.f32 %v819, 1.442695
        %v821 = vpow.pop %v820
        %v822 = vsub.f32 %v797, %v818
        %v823 = vmul.f32 %v822, 1.442695
        %v824 = vpow.pop %v823
        %v825 = vmul.f32 %v821, %v794
        %v826 = vmul.f32 %v824, %v798
        %v827 = vadd.f32 %v825, %v826
        %v828 = vmul.f32 %v821, %v796
        %v829 = vadd.f32 %v828, %v824
        %v830 = vld [vmem:[#allocation2 + $0x3] sm:$0x1]
        %v831 = vld [vmem:[#allocation3 + $0x3] sm:$0x1]
        %v832 = vadd.f32 %v731, %v830
        %v833 = vmax.f32 %v818, %v832
        %v834 = vsub.f32 %v818, %v833
        %v835 = vmul.f32 %v834, 1.442695
        %v836 = vpow.pop %v835
        %v837 = vsub.f32 %v832, %v833
        %v838 = vmul.f32 %v837, 1.442695
        %v839 = vpow.pop %v838
        %v840 = vld [vmem:[#allocation4 + $0x3] sm:$0x1]
        %v841 = vmul.f32 %v836, %v827
        %v842 = vmul.f32 %v839, %v831
        %v843 = vadd.f32 %v841, %v842
        %v844 = vmul.f32 %v840, %v843
        %v845 = vmul.f32 %v836, %v829
        %v846 = vadd.f32 %v845, %v839
        %v847 = vrcp.pop %v846
        %v848 = vmul.f32 %v844, %v847
        %849 = vst.msk [vmem:[#allocation5 + $0x3] sm:$0x1] %vm750, %v848
        %v850 = vadd.f32 %v818, %v730
        %v851 = vmax.f32 %v850, %v830
        %v852 = vsub.f32 %v850, %v851
        %v853 = vmul.f32 %v852, 1.442695
        %v854 = vpow.pop %v853
        %v855 = vsub.f32 %v830, %v851
        %v856 = vmul.f32 %v855, 1.442695
        %v857 = vpow.pop %v856
        %v858 = vmul.f32 %v854, %v827
        %v859 = vmul.f32 %v857, %v831
        %v860 = vadd.f32 %v858, %v859
        %v861 = vmul.f32 %v854, %v829
        %v862 = vadd.f32 %v861, %v857
        %v863 = vld [vmem:[#allocation2 + $0x4] sm:$0x1]
        %v864 = vld [vmem:[#allocation3 + $0x4] sm:$0x1]
        %v865 = vadd.f32 %v731, %v863
        %v866 = vmax.f32 %v851, %v865
        %v867 = vsub.f32 %v851, %v866
        %v868 = vmul.f32 %v867, 1.442695
        %v869 = vpow.pop %v868
        %v870 = vsub.f32 %v865, %v866
        %v871 = vmul.f32 %v870, 1.442695
        %v872 = vpow.pop %v871
        %v873 = vld [vmem:[#allocation4 + $0x4] sm:$0x1]
        %v874 = vmul.f32 %v869, %v860
        %v875 = vmul.f32 %v872, %v864
        %v876 = vadd.f32 %v874, %v875
        %v877 = vmul.f32 %v873, %v876
        %v878 = vmul.f32 %v869, %v862
        %v879 = vadd.f32 %v878, %v872
        %v880 = vrcp.pop %v879
        %v881 = vmul.f32 %v877, %v880
        %882 = vst.msk [vmem:[#allocation5 + $0x4] sm:$0x1] %vm750, %v881
        %v883 = vadd.f32 %v851, %v730
        %v884 = vmax.f32 %v883, %v863
        %v885 = vsub.f32 %v883, %v884
        %v886 = vmul.f32 %v885, 1.442695
        %v887 = vpow.pop %v886
        %v888 = vsub.f32 %v863, %v884
        %v889 = vmul.f32 %v888, 1.442695
        %v890 = vpow.pop %v889
        %v891 = vmul.f32 %v887, %v860
        %v892 = vmul.f32 %v890, %v864
        %v893 = vadd.f32 %v891, %v892
        %v894 = vmul.f32 %v887, %v862
        %v895 = vadd.f32 %v894, %v890
        %v896 = vld [vmem:[#allocation2 + $0x5] sm:$0x1]
        %v897 = vld [vmem:[#allocation3 + $0x5] sm:$0x1]
        %v898 = vadd.f32 %v731, %v896
        %v899 = vmax.f32 %v884, %v898
        %v900 = vsub.f32 %v884, %v899
        %v901 = vmul.f32 %v900, 1.442695
        %v902 = vpow.pop %v901
        %v903 = vsub.f32 %v898, %v899
        %v904 = vmul.f32 %v903, 1.442695
        %v905 = vpow.pop %v904
        %v906 = vld [vmem:[#allocation4 + $0x5] sm:$0x1]
        %v907 = vmul.f32 %v902, %v893
        %v908 = vmul.f32 %v905, %v897
        %v909 = vadd.f32 %v907, %v908
        %v910 = vmul.f32 %v906, %v909
        %v911 = vmul.f32 %v902, %v895
        %v912 = vadd.f32 %v911, %v905
        %v913 = vrcp.pop %v912
        %v914 = vmul.f32 %v910, %v913
        %915 = vst.msk [vmem:[#allocation5 + $0x5] sm:$0x1] %vm750, %v914
        %v916 = vadd.f32 %v884, %v730
        %v917 = vmax.f32 %v916, %v896
        %v918 = vsub.f32 %v916, %v917
        %v919 = vmul.f32 %v918, 1.442695
        %v920 = vpow.pop %v919
        %v921 = vsub.f32 %v896, %v917
        %v922 = vmul.f32 %v921, 1.442695
        %v923 = vpow.pop %v922
        %v924 = vmul.f32 %v920, %v893
        %v925 = vmul.f32 %v923, %v897
        %v926 = vadd.f32 %v924, %v925
        %v927 = vmul.f32 %v920, %v895
        %v928 = vadd.f32 %v927, %v923
        %v929 = vld [vmem:[#allocation2 + $0x6] sm:$0x1]
        %v930 = vld [vmem:[#allocation3 + $0x6] sm:$0x1]
        %v931 = vadd.f32 %v731, %v929
        %v932 = vmax.f32 %v917, %v931
        %v933 = vsub.f32 %v917, %v932
        %v934 = vmul.f32 %v933, 1.442695
        %v935 = vpow.pop %v934
        %v936 = vsub.f32 %v931, %v932
        %v937 = vmul.f32 %v936, 1.442695
        %v938 = vpow.pop %v937
        %v939 = vld [vmem:[#allocation4 + $0x6] sm:$0x1]
        %v940 = vmul.f32 %v935, %v926
        %v941 = vmul.f32 %v938, %v930
        %v942 = vadd.f32 %v940, %v941
        %v943 = vmul.f32 %v939, %v942
        %v944 = vmul.f32 %v935, %v928
        %v945 = vadd.f32 %v944, %v938
        %v946 = vrcp.pop %v945
        %v947 = vmul.f32 %v943, %v946
        %948 = vst.msk [vmem:[#allocation5 + $0x6] sm:$0x1] %vm750, %v947
        %v949 = vadd.f32 %v917, %v730
        %v950 = vmax.f32 %v949, %v929
        %v951 = vsub.f32 %v949, %v950
        %v952 = vmul.f32 %v951, 1.442695
        %v953 = vpow.pop %v952
        %v954 = vsub.f32 %v929, %v950
        %v955 = vmul.f32 %v954, 1.442695
        %v956 = vpow.pop %v955
        %v957 = vmul.f32 %v953, %v926
        %v958 = vmul.f32 %v956, %v930
        %v959 = vadd.f32 %v957, %v958
        %v960 = vmul.f32 %v953, %v928
        %v961 = vadd.f32 %v960, %v956
        %v962 = vld [vmem:[#allocation2 + $0x7] sm:$0x1]
        %v963 = vld [vmem:[#allocation3 + $0x7] sm:$0x1]
        %v964 = vadd.f32 %v731, %v962
        %v965 = vmax.f32 %v950, %v964
        %v966 = vsub.f32 %v950, %v965
        %v967 = vmul.f32 %v966, 1.442695
        %v968 = vpow.pop %v967
        %v969 = vsub.f32 %v964, %v965
        %v970 = vmul.f32 %v969, 1.442695
        %v971 = vpow.pop %v970
        %v972 = vld [vmem:[#allocation4 + $0x7] sm:$0x1]
        %v973 = vmul.f32 %v968, %v959
        %v974 = vmul.f32 %v971, %v963
        %v975 = vadd.f32 %v973, %v974
        %v976 = vmul.f32 %v972, %v975
        %v977 = vmul.f32 %v968, %v961
        %v978 = vadd.f32 %v977, %v971
        %v979 = vrcp.pop %v978
        %v980 = vmul.f32 %v976, %v979
        %981 = vst.msk [vmem:[#allocation5 + $0x7] sm:$0x1] %vm750, %v980
        %v982 = vld [vmem:[#allocation5] sm:$0xff]
        %v983 = vpack.c.bf16 %v982, %v982
        %v984 = vld [vmem:[#allocation14] sm:$0xf]
        %v985 = vld [vmem:[#allocation14 + $0x4] sm:$0xf]
        %v986 = vld [vmem:[#allocation14 + $0x8] sm:$0xf]
        %v987 = vld [vmem:[#allocation14 + $0xc] sm:$0xf]
        %v992 = vunpack.c.l.b16 %v984
        %v993 = vunpack.c.l.b16 %v985
        %v994 = vunpack.c.l.b16 %v986
        %v995 = vunpack.c.l.b16 %v987
        %v996 = vpack.c.b16 %v993, %v992
        %v997 = vpack.c.b16 %v995, %v994
        %v1001 = vsel %vm558, %v983, 0
        %1003 = vmatprep.subr.bf16.mxu0 0
        %1004 = vmatpush1.bf16.msra.mxu0 0
        %1005 = vmatprep.subr.bf16.mxu0 0
        %1006 = vmatpush1.bf16.msra.mxu0 0
        %1007 = vmatprep.subr.bf16.mxu0 0
        %1008 = vmatpush1.bf16.msra.mxu0 0
        %1009 = vmatprep.subr.bf16.mxu0 0
        %1010 = vmatpush1.bf16.msra.mxu0 0
        %1011 = vmatprep.subr.bf16.mxu0 0
        %1012 = vmatpush1.bf16.msra.mxu0 0
        %1013 = vmatprep.subr.bf16.mxu0 0
        %1014 = vmatpush1.bf16.msra.mxu0 0
        %1015 = vmatprep.subr.bf16.mxu0 0
        %1016 = vmatpush1.bf16.msra.mxu0 %v997
        %1017 = vmatprep.subr.bf16.mxu0 0
        %1018 = vmatpush1.bf16.msra.mxu0 %v996
        %1019 = vmatprep.subr.bf16.mxu0 0
        %1020 = vmatpush2.bf16.msra.mxu0 0
        %1021 = vmatprep.subr.bf16.mxu0 0
        %1022 = vmatpush2.bf16.msra.mxu0 0
        %1023 = vmatprep.subr.bf16.mxu0 0
        %1024 = vmatpush2.bf16.msra.mxu0 0
        %1025 = vmatprep.subr.bf16.mxu0 0
        %1026 = vmatpush2.bf16.msra.mxu0 0
        %1027 = vmatprep.subr.bf16.mxu0 0
        %1028 = vmatpush2.bf16.msra.mxu0 0
        %1029 = vmatprep.subr.bf16.mxu0 0
        %1030 = vmatpush2.bf16.msra.mxu0 0
        %1031 = vmatprep.subr.bf16.mxu0 0
        %1032 = vmatpush2.bf16.msra.mxu0 0
        %1033 = vmatprep.subr.bf16.mxu0 0
        %1034 = vmatpush2.bf16.msra.mxu0 0
        %1035 = vmatprep.mubr.bf16.mxu0 0
        %1036 = vmatmul.mubr.bf16.gmra.mxu0 %v1001
        %v1037 = vpop.f32.mrf.mxu0
        %v1038 = vadd.f32 0.0, %v1037
        %v1039 = vpop.f32.mrf.mxu0
        %v1040 = vpop.f32.mrf.mxu0
        %v1041 = vpop.f32.mrf.mxu0
        %1042 = vdwg.mxu0
        %v1043 = vadd.f32 %v542, %v1038
        %v1044 = vsel %vm558, %v1043, 0.0
        %1045 = vadd.xlane.f32.xlu0 %v1044
        %v1046 = vpop.xlane.xlu0 %1045
        %v1047 = vmul.f32 %v1046, %v562
        %v1048 = vsub.f32 %v1043, %v1047
        %v1049 = vmul.f32 %v1048, %v1048
        %v1050 = vsel %vm558, %v1049, 0.0
        %1051 = vadd.xlane.f32.xlu0 %v1050
        %v1052 = vpop.xlane.xlu0 %1051
        %v1053 = vmul.f32 %v1052, %v562
        %v1054 = vadd.f32 %v1053, 1e-12
        %v1055 = vrsqrt.pop %v1054
        %v1056 = vmul.f32 %v1048, %v1055
        %v1057 = vld [vmem:[#allocation15] sm:$0x1]
        %v1059 = vlaneseq
        %v1060 = vshrl.u32 %v1059, 7
        %v1061 = vsub.s32 0, %v1060
        %v1062 = vrot.slane %v1057, %v1061
        %v1064 = vmul.f32 %v1056, %v1062
        %v1065 = vld [vmem:[#allocation17] sm:$0x1]
        %v1067 = vlaneseq
        %v1068 = vshrl.u32 %v1067, 7
        %v1069 = vsub.s32 0, %v1068
        %v1070 = vrot.slane %v1065, %v1069
        %v1072 = vadd.f32 %v1064, %v1070
        %v1073 = vrot.slane %v1072, 7
        %v1074 = vsel %vm591, %v1073, 0.0
        %v1075 = vpack.c.bf16 %v1072, %v1072
        %v1076 = vld [vmem:[%s10] sm:$0xf]
        %v1077 = vld [vmem:[%s10 + $0x4] sm:$0xf]
        %v1078 = vld [vmem:[%s10 + $0x8] sm:$0xf]
        %v1079 = vld [vmem:[%s10 + $0xc] sm:$0xf]
        %v1080 = vpack.c.bf16 %v1074, %v1074
        %v1081 = vld [vmem:[#allocation18] sm:$0xf]
        %v1082 = vld [vmem:[#allocation18 + $0x4] sm:$0xf]
        %v1083 = vld [vmem:[#allocation18 + $0x8] sm:$0xf]
        %v1084 = vld [vmem:[#allocation18 + $0xc] sm:$0xf]
        %v1089 = vunpack.c.l.b16 %v1081
        %v1090 = vunpack.c.l.b16 %v1082
        %v1091 = vunpack.c.l.b16 %v1083
        %v1092 = vunpack.c.l.b16 %v1084
        %v1093 = vpack.c.b16 %v1090, %v1089
        %v1094 = vpack.c.b16 %v1092, %v1091
        %v1098 = vsel %vm558, %v1080, 0
        %1100 = vmatprep.subr.bf16.mxu0 0
        %1101 = vmatpush1.bf16.msra.mxu0 0
        %1102 = vmatprep.subr.bf16.mxu0 0
        %1103 = vmatpush1.bf16.msra.mxu0 0
        %1104 = vmatprep.subr.bf16.mxu0 0
        %1105 = vmatpush1.bf16.msra.mxu0 0
        %1106 = vmatprep.subr.bf16.mxu0 0
        %1107 = vmatpush1.bf16.msra.mxu0 0
        %1108 = vmatprep.subr.bf16.mxu0 0
        %1109 = vmatpush1.bf16.msra.mxu0 0
        %1110 = vmatprep.subr.bf16.mxu0 0
        %1111 = vmatpush1.bf16.msra.mxu0 0
        %1112 = vmatprep.subr.bf16.mxu0 0
        %1113 = vmatpush1.bf16.msra.mxu0 %v1094
        %1114 = vmatprep.subr.bf16.mxu0 0
        %1115 = vmatpush1.bf16.msra.mxu0 %v1093
        %1116 = vmatprep.subr.bf16.mxu0 0
        %1117 = vmatpush2.bf16.msra.mxu0 0
        %1118 = vmatprep.subr.bf16.mxu0 0
        %1119 = vmatpush2.bf16.msra.mxu0 0
        %1120 = vmatprep.subr.bf16.mxu0 0
        %1121 = vmatpush2.bf16.msra.mxu0 0
        %1122 = vmatprep.subr.bf16.mxu0 0
        %1123 = vmatpush2.bf16.msra.mxu0 0
        %1124 = vmatprep.subr.bf16.mxu0 0
        %1125 = vmatpush2.bf16.msra.mxu0 0
        %1126 = vmatprep.subr.bf16.mxu0 0
        %1127 = vmatpush2.bf16.msra.mxu0 0
        %1128 = vmatprep.subr.bf16.mxu0 0
        %1129 = vmatpush2.bf16.msra.mxu0 0
        %1130 = vmatprep.subr.bf16.mxu0 0
        %1131 = vmatpush2.bf16.msra.mxu0 0
        %1132 = vmatprep.mubr.bf16.mxu0 0
        %1133 = vmatmul.mubr.bf16.gmra.mxu0 %v1098
        %v1134 = vpop.f32.mrf.mxu0
        %v1135 = vadd.f32 0.0, %v1134
        %v1136 = vpop.f32.mrf.mxu0
        %v1137 = vpop.f32.mrf.mxu0
        %v1138 = vpop.f32.mrf.mxu0
        %1139 = vdwg.mxu0
        %v1144 = vunpack.c.l.b16 %v1076
        %v1145 = vunpack.c.l.b16 %v1077
        %v1146 = vunpack.c.l.b16 %v1078
        %v1147 = vunpack.c.l.b16 %v1079
        %v1148 = vpack.c.b16 %v1145, %v1144
        %v1149 = vpack.c.b16 %v1147, %v1146
        %v1153 = vsel %vm558, %v1075, 0
        %1155 = vmatprep.subr.bf16.mxu0 0
        %1156 = vmatpush1.bf16.msra.mxu0 0
        %1157 = vmatprep.subr.bf16.mxu0 0
        %1158 = vmatpush1.bf16.msra.mxu0 0
        %1159 = vmatprep.subr.bf16.mxu0 0
        %1160 = vmatpush1.bf16.msra.mxu0 0
        %1161 = vmatprep.subr.bf16.mxu0 0
        %1162 = vmatpush1.bf16.msra.mxu0 0
        %1163 = vmatprep.subr.bf16.mxu0 0
        %1164 = vmatpush1.bf16.msra.mxu0 0
        %1165 = vmatprep.subr.bf16.mxu0 0
        %1166 = vmatpush1.bf16.msra.mxu0 0
        %1167 = vmatprep.subr.bf16.mxu0 0
        %1168 = vmatpush1.bf16.msra.mxu0 %v1149
        %1169 = vmatprep.subr.bf16.mxu0 0
        %1170 = vmatpush1.bf16.msra.mxu0 %v1148
        %1171 = vmatprep.subr.bf16.mxu0 0
        %1172 = vmatpush2.bf16.msra.mxu0 0
        %1173 = vmatprep.subr.bf16.mxu0 0
        %1174 = vmatpush2.bf16.msra.mxu0 0
        %1175 = vmatprep.subr.bf16.mxu0 0
        %1176 = vmatpush2.bf16.msra.mxu0 0
        %1177 = vmatprep.subr.bf16.mxu0 0
        %1178 = vmatpush2.bf16.msra.mxu0 0
        %1179 = vmatprep.subr.bf16.mxu0 0
        %1180 = vmatpush2.bf16.msra.mxu0 0
        %1181 = vmatprep.subr.bf16.mxu0 0
        %1182 = vmatpush2.bf16.msra.mxu0 0
        %1183 = vmatprep.subr.bf16.mxu0 0
        %1184 = vmatpush2.bf16.msra.mxu0 0
        %1185 = vmatprep.subr.bf16.mxu0 0
        %1186 = vmatpush2.bf16.msra.mxu0 0
        %1187 = vmatprep.mubr.bf16.mxu0 0
        %1188 = vmatmul.mubr.bf16.gmra.mxu0 %v1153
        %v1189 = vpop.f32.mrf.mxu0
        %v1190 = vadd.f32 %v1135, %v1189
        %v1191 = vpop.f32.mrf.mxu0
        %v1192 = vpop.f32.mrf.mxu0
        %v1193 = vpop.f32.mrf.mxu0
        %1194 = vdwg.mxu0
        %v1195 = vmax.f32 %v1190, 0.0
        %v1196 = vmul.f32 %v1195, %v1195
        %v1197 = vxor.u32 %v1190, 2147483648
        %v1198 = vmul.f32 %v1197, 1.442695
        %v1199 = vpow.pop %v1198
        %v1200 = vadd.f32 %v1199, 1.0
        %v1201 = vrcp.pop %v1200
        %v1202 = vmul.f32 1.0, %v1201
        %v1203 = vpack.c.bf16 %v1196, %v1196
        %v1204 = vld [vmem:[%s12] sm:$0xf]
        %v1205 = vld [vmem:[%s12 + $0x4] sm:$0xf]
        %v1206 = vld [vmem:[%s12 + $0x8] sm:$0xf]
        %v1207 = vld [vmem:[%s12 + $0xc] sm:$0xf]
        %v1208 = vld [vmem:[%s12 + $0x10] sm:$0xf]
        %v1209 = vld [vmem:[%s12 + $0x14] sm:$0xf]
        %v1210 = vld [vmem:[%s12 + $0x18] sm:$0xf]
        %v1211 = vld [vmem:[%s12 + $0x1c] sm:$0xf]
        %v1220 = vunpack.c.l.b16 %v1204
        %v1221 = vunpack.c.l.b16 %v1205
        %v1222 = vunpack.c.l.b16 %v1206
        %v1223 = vunpack.c.l.b16 %v1207
        %v1224 = vunpack.c.l.b16 %v1208
        %v1225 = vunpack.c.l.b16 %v1209
        %v1226 = vunpack.c.l.b16 %v1210
        %v1227 = vunpack.c.l.b16 %v1211
        %v1228 = vpack.c.b16 %v1221, %v1220
        %v1229 = vpack.c.b16 %v1223, %v1222
        %v1230 = vpack.c.b16 %v1225, %v1224
        %v1231 = vpack.c.b16 %v1227, %v1226
        %vm1236 = vcmask 523264
        %v1238 = vsel %vm1236, %v1203, 0
        %1240 = vmatprep.subr.bf16.mxu0 0
        %1241 = vmatpush1.bf16.msra.mxu0 0
        %1242 = vmatprep.subr.bf16.mxu0 0
        %1243 = vmatpush1.bf16.msra.mxu0 0
        %1244 = vmatprep.subr.bf16.mxu0 0
        %1245 = vmatpush1.bf16.msra.mxu0 0
        %1246 = vmatprep.subr.bf16.mxu0 0
        %1247 = vmatpush1.bf16.msra.mxu0 0
        %1248 = vmatprep.subr.bf16.mxu0 0
        %1249 = vmatpush1.bf16.msra.mxu0 %v1231
        %1250 = vmatprep.subr.bf16.mxu0 0
        %1251 = vmatpush1.bf16.msra.mxu0 %v1230
        %1252 = vmatprep.subr.bf16.mxu0 0
        %1253 = vmatpush1.bf16.msra.mxu0 %v1229
        %1254 = vmatprep.subr.bf16.mxu0 0
        %1255 = vmatpush1.bf16.msra.mxu0 %v1228
        %1256 = vmatprep.subr.bf16.mxu0 0
        %1257 = vmatpush2.bf16.msra.mxu0 0
        %1258 = vmatprep.subr.bf16.mxu0 0
        %1259 = vmatpush2.bf16.msra.mxu0 0
        %1260 = vmatprep.subr.bf16.mxu0 0
        %1261 = vmatpush2.bf16.msra.mxu0 0
        %1262 = vmatprep.subr.bf16.mxu0 0
        %1263 = vmatpush2.bf16.msra.mxu0 0
        %1264 = vmatprep.subr.bf16.mxu0 0
        %1265 = vmatpush2.bf16.msra.mxu0 0
        %1266 = vmatprep.subr.bf16.mxu0 0
        %1267 = vmatpush2.bf16.msra.mxu0 0
        %1268 = vmatprep.subr.bf16.mxu0 0
        %1269 = vmatpush2.bf16.msra.mxu0 0
        %1270 = vmatprep.subr.bf16.mxu0 0
        %1271 = vmatpush2.bf16.msra.mxu0 0
        %1272 = vmatprep.mubr.bf16.mxu0 0
        %1273 = vmatmul.mubr.bf16.gmra.mxu0 %v1238
        %v1274 = vpop.f32.mrf.mxu0
        %v1275 = vadd.f32 0.0, %v1274
        %v1276 = vpop.f32.mrf.mxu0
        %v1277 = vpop.f32.mrf.mxu0
        %v1278 = vpop.f32.mrf.mxu0
        %1279 = vdwg.mxu0
        %1281 = vrot.lane.b32.xlu0 %v1275, 64
        %v1282 = vpop.permute.xlu0 %1281
        %v1284 = vmul.f32 %v1202, %v1282
        %1286 = vrot.lane.b32.xlu0 %v1284, 64
        %v1287 = vpop.permute.xlu0 %1286
        %v1289 = vadd.f32 %v1043, %v1287
        %1290 = vst.msk [vmem:[%s536] sm:$0xff] %vm558, %v1289
        %s1291 = sand.u32 %s318, 1
        %s1292 = scalar_lea.sflag [#allocation8], %s1291
        %s1293 = sand.u32 %s318, 1
        %s1294 = smul.addr %s1293, 8
        %s1295 = scalar_lea.vmem [#allocation20], %s1294
        // Predicated region
        $region105: #{tpu_custom_call.1} parent=71 // pred_check
          %p1296 = pneg %p328
        $region106: #{tpu_custom_call.1} parent=71 // pred_check_branch
          %1298 = sbr.rel (%p1296) target = $region108
        $region107: #{tpu_custom_call.1} parent=71 // pred_region
          %s1300 = ssub.s32 128, 128
          %1301 = vsyncadd %s1292, %s1300
          %s1302 = smul.addr %s32, 128
          %s1303 = scalar_lea.hbm %s13, %s1302
          %s1305 = sshll.u32 %s1295, 4
          %s1306 = int_to_ptr.vmem [resolvable:$true] %s1305
          %1308 = dma.vmem_to_hbm [thread:$0]  %s1306, 128, %s1303, %s1292
        $region108: #{tpu_custom_call.1} parent=71 // pred_fallthru
          _
      $region72: #{tpu_custom_call.1} parent=5 // pred_fallthru
        _
      %p1309 = scmp.le.s32.totalorder 2, %s27
      // Predicated region
      $region109: #{tpu_custom_call.1} parent=5 // pred_check
        %p1310 = pneg %p1309
      $region110: #{tpu_custom_call.1} parent=5 // pred_check_branch
        %1312 = sbr.rel (%p1310) target = $region112
      $region111: #{tpu_custom_call.1} parent=5 // pred_region
        %s1313 = ssub.s32 %s27, 2
        // Predicated region
        $region113: #{tpu_custom_call.1} parent=111 // pred_check
          %p1314 = pneg %p334
        $region114: #{tpu_custom_call.1} parent=111 // pred_check_branch
          %1316 = sbr.rel (%p1314) target = $region116
        $region115: #{tpu_custom_call.1} parent=111 // pred_region
          %s1317 = sand.u32 %s319, 1
          %s1318 = scalar_lea.sflag [#allocation8], %s1317
          %s1319 = sand.u32 %s319, 1
          %s1320 = smul.addr %s1319, 8
          %s1321 = scalar_lea.vmem [#allocation20], %s1320
          %1322 = dma.done %s1318, 128
        $region116: #{tpu_custom_call.1} parent=111 // pred_fallthru
          _
      $region112: #{tpu_custom_call.1} parent=5 // pred_fallthru
        _
    $region6: #{tpu_custom_call.1} parent=1 // loop_footer
      %s31 = sadd.s32 1, %s27
    $region7: #{tpu_custom_call.1} parent=1 // loop_footer_branch
      %26 = sbr.rel target = $region3
    $region8: #{tpu_custom_call.1} parent=1 // loop_exit
      _
    %1323 = vsyncpa [#allocation7], 1
    %s1324 = scalar_lea.sflag [#allocation7], 1
    %1325 = vsyncpa %s1324, 1
    %1326 = vsyncpa [#allocation10], 1
    %1327 = vsyncpa [#allocation13], 1
    %1328 = vsyncpa [#allocation16], 1
    %1329 = vsyncpa [#allocation19], 1
    %1330 = vsyncpa [#allocation8], 1
    %s1331 = scalar_lea.sflag [#allocation8], 1
    %1332 = vsyncpa %s1331, 1

</llo_original>
